<compile_context>
chip_gen: v6e
topology: v6e:2x2x1
jax: 0.10.0
libtpu: 0.0.40
codegen_flags: <defaults>
</compile_context>

<pallas_src>
import jax
import jax.numpy as jnp
from jax.experimental import pallas as pl
from jax.experimental.pallas import tpu as pltpu


# ----------------------------------------------------------------------------
# Pallas kernel: full 3-block DAnet forward for one batch tile, transposed
# layout (features on sublanes, batch on lanes).
#
# Per block b in {0,1}:
#   wb_in  : (2d, din)  rows [0:d) = folded fm chain + mlp first half (F^T)
#                       rows [d:2d) = BN-folded residual Linear-1 (Wr1^T)
#   bb_in  : (2d, 1)
#   wb_res : (d, d)     residual Linear-2 (transposed)
#   bb_res : (d, 1)
#   wb_mix : (d, d)     mlp second half (transposed)
# Block 2 (logr):
#   w2_in  : (d+1, d)   rows [0:d) = Wr1^T, row d = folded fm->logit row
#   b2_in  : (d+1, 1)   (row d includes the logr bias)
#   w2_mix : (1, d)     logr second half (transposed)
# ----------------------------------------------------------------------------
def danet_kernel(x_ref,
                 w0_in, b0_in, w0_res, b0_res, w0_mix,
                 w1_in, b1_in, w1_res, b1_res, w1_mix,
                 w2_in, b2_in, w2_res, b2_res, w2_mix,
                 out_ref):
    d = w0_res.shape[0]

    def elu(v):
        # guard exp against overflow on the (masked) positive branch
        return jnp.where(v > 0, v, jnp.exp(jnp.minimum(v, 0.0)) - 1.0)

    def block(h, w_in, b_in, w_res, b_res, w_mix):
        # h: (din, tb)
        t = jnp.dot(w_in[...], h, preferred_element_type=jnp.float32) + b_in[...]
        fm = t[:d, :]                    # rows 0..d-1  : fm path (sublane-aligned)
        z = elu(t[d:, :])                # rows d..2d-1 : residual Linear-1 + BN
        r = elu(jnp.dot(w_res[...], z, preferred_element_type=jnp.float32)
                + b_res[...])            # residual Linear-2 -> ELU
        return fm + jnp.dot(w_mix[...], r, preferred_element_type=jnp.float32)

    h = block(x_ref[...], w0_in, b0_in, w0_res, b0_res, w0_mix)   # (d, tb)
    h = block(h,          w1_in, b1_in, w1_res, b1_res, w1_mix)   # (d, tb)

    # Block 3 (logr): residual rows first, single fm/logit row last (row d).
    t = jnp.dot(w2_in[...], h, preferred_element_type=jnp.float32) + b2_in[...]
    z = elu(t[:d, :])
    r = elu(jnp.dot(w2_res[...], z, preferred_element_type=jnp.float32) + b2_res[...])
    logit = t[d:d + 1, :] + jnp.dot(w2_mix[...], r,
                                    preferred_element_type=jnp.float32)  # (1, tb)
    out_ref[...] = jax.nn.sigmoid(logit).astype(out_ref.dtype)


# ----------------------------------------------------------------------------
# Wrapper: batch tiled on the lane axis; weights as constant-resident blocks.
# ----------------------------------------------------------------------------
def _pick_tile_b(n):
    """Lane-aligned batch tile: multiple of 128, >=2 grid steps when possible
    (v7x has 2 TensorCores), capped so the f32 working set stays far below
    v7x's 64 MiB VMEM."""
    if n % 256 != 0:
        return n                          # small / ragged batch: one whole-batch tile
    tile = 128
    while tile * 2 <= 2048 and n % (tile * 2) == 0 and n // (tile * 2) >= 2:
        tile *= 2
    return tile


def danet_forward(x, folded, *, tile_b=None):
    n, din = x.shape
    # Batch on the 128-lane axis.  (In a real pipeline the producer would emit
    # this layout directly; here the transpose is a one-time host/XLA op.)
    xT = x.astype(jnp.float32).T          # (din, n)

    if tile_b is None:
        tile_b = _pick_tile_b(n)
    assert n % tile_b == 0, "batch must be divisible by tile_b (pad batch on host)"
    assert tile_b == n or tile_b % 128 == 0, "tile_b must be lane-aligned (x128) or whole batch"
    grid = (n // tile_b,)

    x_spec = pl.BlockSpec((din, tile_b), lambda i: (0, i))
    # Constant index_map -> each weight is DMA'd once and stays VMEM-resident.
    w_specs = [pl.BlockSpec(p.shape, lambda i: (0, 0)) for p in folded]

    outT = pl.pallas_call(
        danet_kernel,
        out_shape=jax.ShapeDtypeStruct((1, n), jnp.float32),
        grid=grid,
        in_specs=[x_spec] + w_specs,
        out_specs=pl.BlockSpec((1, tile_b), lambda i: (0, i)),
        compiler_params=pltpu.CompilerParams(dimension_semantics=("parallel",)),
    )(xT, *folded)
    return outT.reshape(n, 1)


# ----------------------------------------------------------------------------
# Deterministic "raw" parameters mirroring the PyTorch module structure.
# All weights stored as (in, out) so the reference forward is `h @ W + b`.
# ----------------------------------------------------------------------------
def make_raw_params(key, dim_data, d):
    ki = iter(jax.random.split(key, 96))

    def w(shape, scale=0.1):
        return (scale * jax.random.normal(next(ki), shape)).astype(jnp.float32)

    blocks = []
    for blk in range(3):
        din = dim_data if blk == 0 else d
        dout = d if blk < 2 else 1        # mlp_1/2 vs logr
        p = dict(
            W_ae=w((din, d)), b_ae=w((d,)),   # atten_embedding
            W_v=w((d, d)), b_v=w((d,)),       # MHA in_proj (V slice)
            W_o=w((d, d)), b_o=w((d,)),       # MHA out_proj
            W_fc=w((d, d)), b_fc=w((d,)),     # attn_fc
            W_r1=w((din, d)), b_r1=w((d,)),   # residual Linear-1
            gamma=(1.0 + 0.1 * jax.random.normal(next(ki), (d,))).astype(jnp.float32),
            beta=w((d,)),
            mean=w((d,)),
            var=(jnp.abs(jax.random.normal(next(ki), (d,))) + 0.5).astype(jnp.float32),
            W_r2=w((d, d)), b_r2=w((d,)),     # residual Linear-2
            W_m=w((2 * d, dout)), b_m=w((dout,)),   # mlp_k / logr
        )
        blocks.append(p)
    return blocks


# ----------------------------------------------------------------------------
# Host-side folding into the 15 transposed tensors consumed by the kernel.
# ----------------------------------------------------------------------------
def fold_params(blocks, d, eps=1e-5):
    folded = []
    for p in blocks:
        # fm affine chain composed into a single affine map
        A = p["W_ae"] @ p["W_v"] @ p["W_o"] @ p["W_fc"]
        a = ((p["b_ae"] @ p["W_v"] + p["b_v"]) @ p["W_o"] + p["b_o"]) @ p["W_fc"] + p["b_fc"]
        Wm_a, Wm_b, bm = p["W_m"][:d], p["W_m"][d:], p["b_m"]
        F = A @ Wm_a                              # (din, dout)
        fb = a @ Wm_a + bm                        # (dout,) -- includes mlp/logr bias

        # BatchNorm (eval) folded into residual Linear-1
        scale = p["gamma"] / jnp.sqrt(p["var"] + eps)
        Wr1 = p["W_r1"] * scale[None, :]
        br1 = p["b_r1"] * scale + (p["beta"] - p["mean"] * scale)

        if F.shape[1] == 1:
            # logr block: residual rows [0:d), single fm/logit row at row d
            w_in = jnp.concatenate([Wr1.T, F.T], axis=0)      # (d+1, din)
            b_in = jnp.concatenate([br1, fb])[:, None]        # (d+1, 1)
        else:
            # fm rows [0:d), residual rows [d:2d)
            w_in = jnp.concatenate([F.T, Wr1.T], axis=0)      # (2d, din)
            b_in = jnp.concatenate([fb, br1])[:, None]        # (2d, 1)

        folded += [w_in.astype(jnp.float32),
                   b_in.astype(jnp.float32),
                   p["W_r2"].T.astype(jnp.float32),            # (d, d)
                   p["b_r2"][:, None].astype(jnp.float32),     # (d, 1)
                   Wm_b.T.astype(jnp.float32)]                 # (dout, d)
    return tuple(folded)


# ----------------------------------------------------------------------------
# Pure-JAX reference on the RAW (unfolded) params — PyTorch eval semantics.
# ----------------------------------------------------------------------------
def ref_forward(x, blocks, eps=1e-5):
    def elu(v):
        return jnp.where(v > 0, v, jnp.exp(jnp.minimum(v, 0.0)) - 1.0)

    h = x
    for p in blocks:
        a = h @ p["W_ae"] + p["b_ae"]
        v = a @ p["W_v"] + p["b_v"]               # L=1 attention == v_proj
        o = v @ p["W_o"] + p["b_o"]
        f = o @ p["W_fc"] + p["b_fc"]
        z = h @ p["W_r1"] + p["b_r1"]
        z = (z - p["mean"]) / jnp.sqrt(p["var"] + eps) * p["gamma"] + p["beta"]
        z = elu(z)
        r = elu(z @ p["W_r2"] + p["b_r2"])
        h = jnp.concatenate([f, r], axis=1) @ p["W_m"] + p["b_m"]
    return jax.nn.sigmoid(h)


if __name__ == "__main__":
    # args.dim_data = 16, args.dim_embed = 32; batch sized so the grid has
    # multiple parallel steps (tile_b=256 -> grid=(4,)).
    batch, dim_data, dim_embed = 1024, 16, 32

    key = jax.random.PRNGKey(0)
    k_x, k_p = jax.random.split(key)
    x = jax.random.normal(k_x, (batch, dim_data), dtype=jnp.float32)

    raw = make_raw_params(k_p, dim_data, dim_embed)
    folded = fold_params(raw, dim_embed)

    out = danet_forward(x, folded)
    out = jax.block_until_ready(out)

    expected = ref_forward(x, raw)
    assert out.shape == (batch, 1)
    max_diff = float(jnp.max(jnp.abs(out - expected)))
    assert jnp.allclose(out, expected, atol=1e-4, rtol=1e-4), (
        f"mismatch vs reference: max abs diff {max_diff}")

    print("KERNEL_OK")
</pallas_src>

<mosaic_0001>
module attributes {stable_mosaic.version = 11 : i64} {
  func.func @danet_kernel(%arg0: i32, %arg1: memref<16x512xf32, #tpu.memory_space<vmem>>, %arg2: memref<64x16xf32, #tpu.memory_space<vmem>>, %arg3: memref<64x1xf32, #tpu.memory_space<vmem>>, %arg4: memref<32x32xf32, #tpu.memory_space<vmem>>, %arg5: memref<32x1xf32, #tpu.memory_space<vmem>>, %arg6: memref<32x32xf32, #tpu.memory_space<vmem>>, %arg7: memref<64x32xf32, #tpu.memory_space<vmem>>, %arg8: memref<64x1xf32, #tpu.memory_space<vmem>>, %arg9: memref<32x32xf32, #tpu.memory_space<vmem>>, %arg10: memref<32x1xf32, #tpu.memory_space<vmem>>, %arg11: memref<32x32xf32, #tpu.memory_space<vmem>>, %arg12: memref<33x32xf32, #tpu.memory_space<vmem>>, %arg13: memref<33x1xf32, #tpu.memory_space<vmem>>, %arg14: memref<32x32xf32, #tpu.memory_space<vmem>>, %arg15: memref<32x1xf32, #tpu.memory_space<vmem>>, %arg16: memref<1x32xf32, #tpu.memory_space<vmem>>, %arg17: memref<1x512xf32, #tpu.memory_space<vmem>>) attributes {dimension_semantics = [#tpu.dimension_semantics<parallel>], iteration_bounds = array<i64: 2>, scalar_prefetch = 0 : i64, scratch_operands = 0 : i64, tpu.core_type = #tpu.core_type<tc>, window_params = [{transform_indices = @transform_0, window_bounds = array<i64: 16, 512>}, {pipeline_mode = #tpu.pipeline_mode<synchronous>, transform_indices = @transform_1, window_bounds = array<i64: 64, 16>}, {pipeline_mode = #tpu.pipeline_mode<synchronous>, transform_indices = @transform_2, window_bounds = array<i64: 64, 1>}, {pipeline_mode = #tpu.pipeline_mode<synchronous>, transform_indices = @transform_3, window_bounds = array<i64: 32, 32>}, {pipeline_mode = #tpu.pipeline_mode<synchronous>, transform_indices = @transform_4, window_bounds = array<i64: 32, 1>}, {pipeline_mode = #tpu.pipeline_mode<synchronous>, transform_indices = @transform_5, window_bounds = array<i64: 32, 32>}, {pipeline_mode = #tpu.pipeline_mode<synchronous>, transform_indices = @transform_6, window_bounds = array<i64: 64, 32>}, {pipeline_mode = #tpu.pipeline_mode<synchronous>, transform_indices = @transform_7, window_bounds = array<i64: 64, 1>}, {pipeline_mode = #tpu.pipeline_mode<synchronous>, transform_indices = @transform_8, window_bounds = array<i64: 32, 32>}, {pipeline_mode = #tpu.pipeline_mode<synchronous>, transform_indices = @transform_9, window_bounds = array<i64: 32, 1>}, {pipeline_mode = #tpu.pipeline_mode<synchronous>, transform_indices = @transform_10, window_bounds = array<i64: 32, 32>}, {pipeline_mode = #tpu.pipeline_mode<synchronous>, transform_indices = @transform_11, window_bounds = array<i64: 33, 32>}, {pipeline_mode = #tpu.pipeline_mode<synchronous>, transform_indices = @transform_12, window_bounds = array<i64: 33, 1>}, {pipeline_mode = #tpu.pipeline_mode<synchronous>, transform_indices = @transform_13, window_bounds = array<i64: 32, 32>}, {pipeline_mode = #tpu.pipeline_mode<synchronous>, transform_indices = @transform_14, window_bounds = array<i64: 32, 1>}, {pipeline_mode = #tpu.pipeline_mode<synchronous>, transform_indices = @transform_15, window_bounds = array<i64: 1, 32>}, {transform_indices = @transform_16, window_bounds = array<i64: 1, 512>}]} {
    %c0 = arith.constant 0 : index
    %c0_0 = arith.constant 0 : index
    %0 = vector.load %arg1[%c0, %c0_0] : memref<16x512xf32, #tpu.memory_space<vmem>>, vector<16x512xf32>
    %c0_1 = arith.constant 0 : index
    %c0_2 = arith.constant 0 : index
    %1 = vector.load %arg2[%c0_1, %c0_2] : memref<64x16xf32, #tpu.memory_space<vmem>>, vector<64x16xf32>
    %cst = arith.constant dense<0.000000e+00> : vector<64x512xf32>
    %2 = tpu.matmul %1, %0, %cst {dimension_numbers = #tpu.dot_dimension_numbers<[1], [0], [0], [1], [0, 0, 1, 1], [], []>} : vector<64x16xf32>, vector<16x512xf32>, vector<64x512xf32> -> vector<64x512xf32>
    %c0_3 = arith.constant 0 : index
    %c0_4 = arith.constant 0 : index
    %3 = vector.load %arg3[%c0_3, %c0_4] : memref<64x1xf32, #tpu.memory_space<vmem>>, vector<64x1xf32>
    %4 = vector.broadcast %3 : vector<64x1xf32> to vector<64x512xf32>
    %5 = arith.addf %2, %4 : vector<64x512xf32>
    %6 = vector.extract_strided_slice %5 {offsets = [0, 0], sizes = [32, 512], strides = [1, 1]} : vector<64x512xf32> to vector<32x512xf32>
    %7 = vector.extract_strided_slice %5 {offsets = [32, 0], sizes = [32, 512], strides = [1, 1]} : vector<64x512xf32> to vector<32x512xf32>
    %cst_5 = arith.constant 0.000000e+00 : f32
    %8 = vector.broadcast %cst_5 : f32 to vector<32x512xf32>
    %9 = arith.cmpf ogt, %7, %8 : vector<32x512xf32>
    %cst_6 = arith.constant 0.000000e+00 : f32
    %10 = vector.broadcast %cst_6 : f32 to vector<32x512xf32>
    %11 = arith.minimumf %7, %10 : vector<32x512xf32>
    %12 = math.exp %11 : vector<32x512xf32>
    %cst_7 = arith.constant 1.000000e+00 : f32
    %13 = vector.broadcast %cst_7 : f32 to vector<32x512xf32>
    %14 = arith.subf %12, %13 : vector<32x512xf32>
    %15 = arith.select %9, %7, %14 : vector<32x512xi1>, vector<32x512xf32>
    %c0_8 = arith.constant 0 : index
    %c0_9 = arith.constant 0 : index
    %16 = vector.load %arg4[%c0_8, %c0_9] : memref<32x32xf32, #tpu.memory_space<vmem>>, vector<32x32xf32>
    %cst_10 = arith.constant dense<0.000000e+00> : vector<32x512xf32>
    %17 = tpu.matmul %16, %15, %cst_10 {dimension_numbers = #tpu.dot_dimension_numbers<[1], [0], [0], [1], [0, 0, 1, 1], [], []>} : vector<32x32xf32>, vector<32x512xf32>, vector<32x512xf32> -> vector<32x512xf32>
    %c0_11 = arith.constant 0 : index
    %c0_12 = arith.constant 0 : index
    %18 = vector.load %arg5[%c0_11, %c0_12] : memref<32x1xf32, #tpu.memory_space<vmem>>, vector<32x1xf32>
    %19 = vector.broadcast %18 : vector<32x1xf32> to vector<32x512xf32>
    %20 = arith.addf %17, %19 : vector<32x512xf32>
    %cst_13 = arith.constant 0.000000e+00 : f32
    %21 = vector.broadcast %cst_13 : f32 to vector<32x512xf32>
    %22 = arith.cmpf ogt, %20, %21 : vector<32x512xf32>
    %cst_14 = arith.constant 0.000000e+00 : f32
    %23 = vector.broadcast %cst_14 : f32 to vector<32x512xf32>
    %24 = arith.minimumf %20, %23 : vector<32x512xf32>
    %25 = math.exp %24 : vector<32x512xf32>
    %cst_15 = arith.constant 1.000000e+00 : f32
    %26 = vector.broadcast %cst_15 : f32 to vector<32x512xf32>
    %27 = arith.subf %25, %26 : vector<32x512xf32>
    %28 = arith.select %22, %20, %27 : vector<32x512xi1>, vector<32x512xf32>
    %c0_16 = arith.constant 0 : index
    %c0_17 = arith.constant 0 : index
    %29 = vector.load %arg6[%c0_16, %c0_17] : memref<32x32xf32, #tpu.memory_space<vmem>>, vector<32x32xf32>
    %cst_18 = arith.constant dense<0.000000e+00> : vector<32x512xf32>
    %30 = tpu.matmul %29, %28, %cst_18 {dimension_numbers = #tpu.dot_dimension_numbers<[1], [0], [0], [1], [0, 0, 1, 1], [], []>} : vector<32x32xf32>, vector<32x512xf32>, vector<32x512xf32> -> vector<32x512xf32>
    %31 = arith.addf %6, %30 : vector<32x512xf32>
    %c0_19 = arith.constant 0 : index
    %c0_20 = arith.constant 0 : index
    %32 = vector.load %arg7[%c0_19, %c0_20] : memref<64x32xf32, #tpu.memory_space<vmem>>, vector<64x32xf32>
    %cst_21 = arith.constant dense<0.000000e+00> : vector<64x512xf32>
    %33 = tpu.matmul %32, %31, %cst_21 {dimension_numbers = #tpu.dot_dimension_numbers<[1], [0], [0], [1], [0, 0, 1, 1], [], []>} : vector<64x32xf32>, vector<32x512xf32>, vector<64x512xf32> -> vector<64x512xf32>
    %c0_22 = arith.constant 0 : index
    %c0_23 = arith.constant 0 : index
    %34 = vector.load %arg8[%c0_22, %c0_23] : memref<64x1xf32, #tpu.memory_space<vmem>>, vector<64x1xf32>
    %35 = vector.broadcast %34 : vector<64x1xf32> to vector<64x512xf32>
    %36 = arith.addf %33, %35 : vector<64x512xf32>
    %37 = vector.extract_strided_slice %36 {offsets = [0, 0], sizes = [32, 512], strides = [1, 1]} : vector<64x512xf32> to vector<32x512xf32>
    %38 = vector.extract_strided_slice %36 {offsets = [32, 0], sizes = [32, 512], strides = [1, 1]} : vector<64x512xf32> to vector<32x512xf32>
    %cst_24 = arith.constant 0.000000e+00 : f32
    %39 = vector.broadcast %cst_24 : f32 to vector<32x512xf32>
    %40 = arith.cmpf ogt, %38, %39 : vector<32x512xf32>
    %cst_25 = arith.constant 0.000000e+00 : f32
    %41 = vector.broadcast %cst_25 : f32 to vector<32x512xf32>
    %42 = arith.minimumf %38, %41 : vector<32x512xf32>
    %43 = math.exp %42 : vector<32x512xf32>
    %cst_26 = arith.constant 1.000000e+00 : f32
    %44 = vector.broadcast %cst_26 : f32 to vector<32x512xf32>
    %45 = arith.subf %43, %44 : vector<32x512xf32>
    %46 = arith.select %40, %38, %45 : vector<32x512xi1>, vector<32x512xf32>
    %c0_27 = arith.constant 0 : index
    %c0_28 = arith.constant 0 : index
    %47 = vector.load %arg9[%c0_27, %c0_28] : memref<32x32xf32, #tpu.memory_space<vmem>>, vector<32x32xf32>
    %cst_29 = arith.constant dense<0.000000e+00> : vector<32x512xf32>
    %48 = tpu.matmul %47, %46, %cst_29 {dimension_numbers = #tpu.dot_dimension_numbers<[1], [0], [0], [1], [0, 0, 1, 1], [], []>} : vector<32x32xf32>, vector<32x512xf32>, vector<32x512xf32> -> vector<32x512xf32>
    %c0_30 = arith.constant 0 : index
    %c0_31 = arith.constant 0 : index
    %49 = vector.load %arg10[%c0_30, %c0_31] : memref<32x1xf32, #tpu.memory_space<vmem>>, vector<32x1xf32>
    %50 = vector.broadcast %49 : vector<32x1xf32> to vector<32x512xf32>
    %51 = arith.addf %48, %50 : vector<32x512xf32>
    %cst_32 = arith.constant 0.000000e+00 : f32
    %52 = vector.broadcast %cst_32 : f32 to vector<32x512xf32>
    %53 = arith.cmpf ogt, %51, %52 : vector<32x512xf32>
    %cst_33 = arith.constant 0.000000e+00 : f32
    %54 = vector.broadcast %cst_33 : f32 to vector<32x512xf32>
    %55 = arith.minimumf %51, %54 : vector<32x512xf32>
    %56 = math.exp %55 : vector<32x512xf32>
    %cst_34 = arith.constant 1.000000e+00 : f32
    %57 = vector.broadcast %cst_34 : f32 to vector<32x512xf32>
    %58 = arith.subf %56, %57 : vector<32x512xf32>
    %59 = arith.select %53, %51, %58 : vector<32x512xi1>, vector<32x512xf32>
    %c0_35 = arith.constant 0 : index
    %c0_36 = arith.constant 0 : index
    %60 = vector.load %arg11[%c0_35, %c0_36] : memref<32x32xf32, #tpu.memory_space<vmem>>, vector<32x32xf32>
    %cst_37 = arith.constant dense<0.000000e+00> : vector<32x512xf32>
    %61 = tpu.matmul %60, %59, %cst_37 {dimension_numbers = #tpu.dot_dimension_numbers<[1], [0], [0], [1], [0, 0, 1, 1], [], []>} : vector<32x32xf32>, vector<32x512xf32>, vector<32x512xf32> -> vector<32x512xf32>
    %62 = arith.addf %37, %61 : vector<32x512xf32>
    %c0_38 = arith.constant 0 : index
    %c0_39 = arith.constant 0 : index
    %63 = vector.load %arg12[%c0_38, %c0_39] : memref<33x32xf32, #tpu.memory_space<vmem>>, vector<33x32xf32>
    %cst_40 = arith.constant dense<0.000000e+00> : vector<33x512xf32>
    %64 = tpu.matmul %63, %62, %cst_40 {dimension_numbers = #tpu.dot_dimension_numbers<[1], [0], [0], [1], [0, 0, 1, 1], [], []>} : vector<33x32xf32>, vector<32x512xf32>, vector<33x512xf32> -> vector<33x512xf32>
    %c0_41 = arith.constant 0 : index
    %c0_42 = arith.constant 0 : index
    %65 = vector.load %arg13[%c0_41, %c0_42] : memref<33x1xf32, #tpu.memory_space<vmem>>, vector<33x1xf32>
    %66 = vector.broadcast %65 : vector<33x1xf32> to vector<33x512xf32>
    %67 = arith.addf %64, %66 : vector<33x512xf32>
    %68 = vector.extract_strided_slice %67 {offsets = [0, 0], sizes = [32, 512], strides = [1, 1]} : vector<33x512xf32> to vector<32x512xf32>
    %cst_43 = arith.constant 0.000000e+00 : f32
    %69 = vector.broadcast %cst_43 : f32 to vector<32x512xf32>
    %70 = arith.cmpf ogt, %68, %69 : vector<32x512xf32>
    %cst_44 = arith.constant 0.000000e+00 : f32
    %71 = vector.broadcast %cst_44 : f32 to vector<32x512xf32>
    %72 = arith.minimumf %68, %71 : vector<32x512xf32>
    %73 = math.exp %72 : vector<32x512xf32>
    %cst_45 = arith.constant 1.000000e+00 : f32
    %74 = vector.broadcast %cst_45 : f32 to vector<32x512xf32>
    %75 = arith.subf %73, %74 : vector<32x512xf32>
    %76 = arith.select %70, %68, %75 : vector<32x512xi1>, vector<32x512xf32>
    %c0_46 = arith.constant 0 : index
    %c0_47 = arith.constant 0 : index
    %77 = vector.load %arg14[%c0_46, %c0_47] : memref<32x32xf32, #tpu.memory_space<vmem>>, vector<32x32xf32>
    %cst_48 = arith.constant dense<0.000000e+00> : vector<32x512xf32>
    %78 = tpu.matmul %77, %76, %cst_48 {dimension_numbers = #tpu.dot_dimension_numbers<[1], [0], [0], [1], [0, 0, 1, 1], [], []>} : vector<32x32xf32>, vector<32x512xf32>, vector<32x512xf32> -> vector<32x512xf32>
    %c0_49 = arith.constant 0 : index
    %c0_50 = arith.constant 0 : index
    %79 = vector.load %arg15[%c0_49, %c0_50] : memref<32x1xf32, #tpu.memory_space<vmem>>, vector<32x1xf32>
    %80 = vector.broadcast %79 : vector<32x1xf32> to vector<32x512xf32>
    %81 = arith.addf %78, %80 : vector<32x512xf32>
    %cst_51 = arith.constant 0.000000e+00 : f32
    %82 = vector.broadcast %cst_51 : f32 to vector<32x512xf32>
    %83 = arith.cmpf ogt, %81, %82 : vector<32x512xf32>
    %cst_52 = arith.constant 0.000000e+00 : f32
    %84 = vector.broadcast %cst_52 : f32 to vector<32x512xf32>
    %85 = arith.minimumf %81, %84 : vector<32x512xf32>
    %86 = math.exp %85 : vector<32x512xf32>
    %cst_53 = arith.constant 1.000000e+00 : f32
    %87 = vector.broadcast %cst_53 : f32 to vector<32x512xf32>
    %88 = arith.subf %86, %87 : vector<32x512xf32>
    %89 = arith.select %83, %81, %88 : vector<32x512xi1>, vector<32x512xf32>
    %90 = vector.extract_strided_slice %67 {offsets = [32, 0], sizes = [1, 512], strides = [1, 1]} : vector<33x512xf32> to vector<1x512xf32>
    %c0_54 = arith.constant 0 : index
    %c0_55 = arith.constant 0 : index
    %91 = vector.load %arg16[%c0_54, %c0_55] : memref<1x32xf32, #tpu.memory_space<vmem>>, vector<1x32xf32>
    %cst_56 = arith.constant dense<0.000000e+00> : vector<1x512xf32>
    %92 = tpu.matmul %91, %89, %cst_56 {dimension_numbers = #tpu.dot_dimension_numbers<[1], [0], [0], [1], [0, 0, 1, 1], [], []>} : vector<1x32xf32>, vector<32x512xf32>, vector<1x512xf32> -> vector<1x512xf32>
    %93 = arith.addf %90, %92 : vector<1x512xf32>
    %94 = arith.negf %93 : vector<1x512xf32>
    %95 = math.exp %94 : vector<1x512xf32>
    %cst_57 = arith.constant 1.000000e+00 : f32
    %96 = vector.broadcast %cst_57 : f32 to vector<1x512xf32>
    %97 = arith.addf %96, %95 : vector<1x512xf32>
    %98 = arith.divf %96, %97 : vector<1x512xf32>
    %c0_58 = arith.constant 0 : index
    %c0_59 = arith.constant 0 : index
    %99 = vector.load %arg17[%c0_58, %c0_59] : memref<1x512xf32, #tpu.memory_space<vmem>>, vector<1x512xf32>
    tpu.vector_store %arg17[%c0_58, %c0_59], %98 {strides = array<i32>} : memref<1x512xf32, #tpu.memory_space<vmem>>, vector<1x512xf32>,
    return
  }
  func.func @transform_0(%arg0: i32) -> (i32, i32) {
    %c0_i32 = arith.constant 0 : i32
    %c0_i32_0 = arith.constant 0 : i32
    return %c0_i32, %arg0 : i32, i32
  }
  func.func @transform_1(%arg0: i32) -> (i32, i32) {
    %c0_i32 = arith.constant 0 : i32
    %c0_i32_0 = arith.constant 0 : i32
    %c0_i32_1 = arith.constant 0 : i32
    return %c0_i32, %c0_i32_0 : i32, i32
  }
  func.func @transform_2(%arg0: i32) -> (i32, i32) {
    %c0_i32 = arith.constant 0 : i32
    %c0_i32_0 = arith.constant 0 : i32
    %c0_i32_1 = arith.constant 0 : i32
    return %c0_i32, %c0_i32_0 : i32, i32
  }
  func.func @transform_3(%arg0: i32) -> (i32, i32) {
    %c0_i32 = arith.constant 0 : i32
    %c0_i32_0 = arith.constant 0 : i32
    %c0_i32_1 = arith.constant 0 : i32
    return %c0_i32, %c0_i32_0 : i32, i32
  }
  func.func @transform_4(%arg0: i32) -> (i32, i32) {
    %c0_i32 = arith.constant 0 : i32
    %c0_i32_0 = arith.constant 0 : i32
    %c0_i32_1 = arith.constant 0 : i32
    return %c0_i32, %c0_i32_0 : i32, i32
  }
  func.func @transform_5(%arg0: i32) -> (i32, i32) {
    %c0_i32 = arith.constant 0 : i32
    %c0_i32_0 = arith.constant 0 : i32
    %c0_i32_1 = arith.constant 0 : i32
    return %c0_i32, %c0_i32_0 : i32, i32
  }
  func.func @transform_6(%arg0: i32) -> (i32, i32) {
    %c0_i32 = arith.constant 0 : i32
    %c0_i32_0 = arith.constant 0 : i32
    %c0_i32_1 = arith.constant 0 : i32
    return %c0_i32, %c0_i32_0 : i32, i32
  }
  func.func @transform_7(%arg0: i32) -> (i32, i32) {
    %c0_i32 = arith.constant 0 : i32
    %c0_i32_0 = arith.constant 0 : i32
    %c0_i32_1 = arith.constant 0 : i32
    return %c0_i32, %c0_i32_0 : i32, i32
  }
  func.func @transform_8(%arg0: i32) -> (i32, i32) {
    %c0_i32 = arith.constant 0 : i32
    %c0_i32_0 = arith.constant 0 : i32
    %c0_i32_1 = arith.constant 0 : i32
    return %c0_i32, %c0_i32_0 : i32, i32
  }
  func.func @transform_9(%arg0: i32) -> (i32, i32) {
    %c0_i32 = arith.constant 0 : i32
    %c0_i32_0 = arith.constant 0 : i32
    %c0_i32_1 = arith.constant 0 : i32
    return %c0_i32, %c0_i32_0 : i32, i32
  }
  func.func @transform_10(%arg0: i32) -> (i32, i32) {
    %c0_i32 = arith.constant 0 : i32
    %c0_i32_0 = arith.constant 0 : i32
    %c0_i32_1 = arith.constant 0 : i32
    return %c0_i32, %c0_i32_0 : i32, i32
  }
  func.func @transform_11(%arg0: i32) -> (i32, i32) {
    %c0_i32 = arith.constant 0 : i32
    %c0_i32_0 = arith.constant 0 : i32
    %c0_i32_1 = arith.constant 0 : i32
    return %c0_i32, %c0_i32_0 : i32, i32
  }
  func.func @transform_12(%arg0: i32) -> (i32, i32) {
    %c0_i32 = arith.constant 0 : i32
    %c0_i32_0 = arith.constant 0 : i32
    %c0_i32_1 = arith.constant 0 : i32
    return %c0_i32, %c0_i32_0 : i32, i32
  }
  func.func @transform_13(%arg0: i32) -> (i32, i32) {
    %c0_i32 = arith.constant 0 : i32
    %c0_i32_0 = arith.constant 0 : i32
    %c0_i32_1 = arith.constant 0 : i32
    return %c0_i32, %c0_i32_0 : i32, i32
  }
  func.func @transform_14(%arg0: i32) -> (i32, i32) {
    %c0_i32 = arith.constant 0 : i32
    %c0_i32_0 = arith.constant 0 : i32
    %c0_i32_1 = arith.constant 0 : i32
    return %c0_i32, %c0_i32_0 : i32, i32
  }
  func.func @transform_15(%arg0: i32) -> (i32, i32) {
    %c0_i32 = arith.constant 0 : i32
    %c0_i32_0 = arith.constant 0 : i32
    %c0_i32_1 = arith.constant 0 : i32
    return %c0_i32, %c0_i32_0 : i32, i32
  }
  func.func @transform_16(%arg0: i32) -> (i32, i32) {
    %c0_i32 = arith.constant 0 : i32
    %c0_i32_0 = arith.constant 0 : i32
    return %c0_i32, %arg0 : i32, i32
  }
}

</mosaic_0001>

<llo_original>
// kernel: tpu_custom_call.1
$region0: #{tpu_custom_call.1}
  #allocation0 [shape = 'u32[]', space=smem, size = 0x4, offset = 0x4, fixed_abs, tag = 'smem constant byte address 0x4 - core index']
  #allocation1 [shape = 'u32[144,128]{1,0:T(1,128)}', space=vmem, size = 0x12000, scoped, tag = 'internal scratch']
  %s0 = inlined_call_operand.vmem [shape: f32[16,1024], index: 0, kind: input, shape index: {}]
  %s1 = inlined_call_operand.vmem [shape: f32[64,16], index: 1, kind: input, shape index: {}]
  %s2 = inlined_call_operand.vmem [shape: f32[64,1], index: 2, kind: input, shape index: {}]
  %s3 = inlined_call_operand.vmem [shape: f32[32,32], index: 3, kind: input, shape index: {}]
  %s4 = inlined_call_operand.vmem [shape: f32[32,1], index: 4, kind: input, shape index: {}]
  %s5 = inlined_call_operand.vmem [shape: f32[32,32], index: 5, kind: input, shape index: {}]
  %s6 = inlined_call_operand.vmem [shape: f32[64,32], index: 6, kind: input, shape index: {}]
  %s7 = inlined_call_operand.vmem [shape: f32[64,1], index: 7, kind: input, shape index: {}]
  %s8 = inlined_call_operand.vmem [shape: f32[32,32], index: 8, kind: input, shape index: {}]
  %s9 = inlined_call_operand.vmem [shape: f32[32,1], index: 9, kind: input, shape index: {}]
  %s10 = inlined_call_operand.vmem [shape: f32[32,32], index: 10, kind: input, shape index: {}]
  %s11 = inlined_call_operand.vmem [shape: f32[33,32], index: 11, kind: input, shape index: {}]
  %s12 = inlined_call_operand.vmem [shape: f32[33,1], index: 12, kind: input, shape index: {}]
  %s13 = inlined_call_operand.vmem [shape: f32[32,32], index: 13, kind: input, shape index: {}]
  %s14 = inlined_call_operand.vmem [shape: f32[32,1], index: 14, kind: input, shape index: {}]
  %s15 = inlined_call_operand.vmem [shape: f32[1,32], index: 15, kind: input, shape index: {}]
  %s16 = inlined_call_operand.hbm [shape: f32[1,1024], index: 16, kind: output, shape index: {}]
  %s17 = sld [smem:[#allocation0]]
  $region120: #{tpu_custom_call.1} parent=0
    _
  %s19 = ssub.s32 1, %s17
  %s20 = scalar_select 0, %s19, %s17
  $region1: #{tpu_custom_call.1} parent=0
    #allocation2 [shape = 'u8[65536]{0}', space=vmem, size = 0x10000, scoped, tag = 'input window, operand 0']
    #allocation3 [shape = 'u8[4096]{0}', space=vmem, size = 0x1000, scoped, tag = 'output window, operand 0']
    #allocation4 [shape = 's32[2]{0}', space=sflag, size = 0x8, scoped, tag = 'scoped memory for tpu_custom_call.1']
    %21 = vsyncpa [#allocation4], 0
    %s22 = scalar_lea.sflag [#allocation4], 1
    %23 = vsyncpa %s22, 0
    loop: start=0, step=1, limit=4
    $region2: #{tpu_custom_call.1} parent=1 // loop_pre_header
      _
    $region3: #{tpu_custom_call.1} parent=1 // loop_header
      %s25 = sphi 0, %s29
      %p26 = scmp.ge.s32.totalorder %s25, 4
      %s35 = sphi 0, %s37
      %s38 = sphi 0, %s35
      %s39 = sphi 0, %s38
      %s55 = sphi 0, %s39
      %s59 = sphi 0, %s59
      %s61 = sphi 0, %s59
      %s62 = sphi 0, %s61
      %s76 = sphi 0, %s62
      %s80 = sphi 0, %s80
      %s82 = sphi 0, %s80
      %s83 = sphi 0, %s82
      %s97 = sphi 0, %s83
      %s101 = sphi 0, %s101
      %s103 = sphi 0, %s101
      %s104 = sphi 0, %s103
      %s118 = sphi 0, %s104
      %s122 = sphi 0, %s122
      %s124 = sphi 0, %s122
      %s125 = sphi 0, %s124
      %s139 = sphi 0, %s125
      %s143 = sphi 0, %s143
      %s145 = sphi 0, %s143
      %s146 = sphi 0, %s145
      %s160 = sphi 0, %s146
      %s164 = sphi 0, %s164
      %s166 = sphi 0, %s164
      %s167 = sphi 0, %s166
      %s181 = sphi 0, %s167
      %s185 = sphi 0, %s185
      %s187 = sphi 0, %s185
      %s188 = sphi 0, %s187
      %s202 = sphi 0, %s188
      %s206 = sphi 0, %s206
      %s208 = sphi 0, %s206
      %s209 = sphi 0, %s208
      %s223 = sphi 0, %s209
      %s227 = sphi 0, %s227
      %s229 = sphi 0, %s227
      %s230 = sphi 0, %s229
      %s244 = sphi 0, %s230
      %s248 = sphi 0, %s248
      %s250 = sphi 0, %s248
      %s251 = sphi 0, %s250
      %s265 = sphi 0, %s251
      %s269 = sphi 0, %s269
      %s271 = sphi 0, %s269
      %s272 = sphi 0, %s271
      %s286 = sphi 0, %s272
      %s290 = sphi 0, %s290
      %s292 = sphi 0, %s290
      %s293 = sphi 0, %s292
      %s307 = sphi 0, %s293
      %s311 = sphi 0, %s311
      %s313 = sphi 0, %s311
      %s314 = sphi 0, %s313
      %s328 = sphi 0, %s314
      %s332 = sphi 0, %s332
      %s334 = sphi 0, %s332
      %s335 = sphi 0, %s334
      %s349 = sphi 0, %s335
      %s353 = sphi 0, %s353
      %s355 = sphi 0, %s353
      %s356 = sphi 0, %s355
      %s370 = sphi 0, %s356
      %s376 = sphi 0, %s378
      %s379 = sphi 0, %s376
      %s380 = sphi 0, %s379
      %s396 = sphi 0, %s380
    $region4: #{tpu_custom_call.1} parent=1 // loop_header_branch
      %28 = sbr.rel (%p26) target = $region8
    $region5: #{tpu_custom_call.1} parent=1 // loop_body
      %s30 = ssub.s32 %s25, 1
      %s31 = ssub.s32 %s25, 2
      %s32 = sadd.s32 %s25, 1
      %s33 = ssub.s32 %s25, %s32
      %p34 = scmp.eq.s32.totalorder %s33, 0
      %s36 = sadd.s32 %s35, 1
      %s37 = scalar_select %p34, %s35, %s36
      %p40 = pneg %p34
      %p41 = scmp.eq.s32.totalorder %s25, 1
      %p42 = por %p40, %p41
      %p43 = scmp.ne.s32.totalorder %s35, %s38
      %p44 = scmp.eq.s32.totalorder %s25, 0
      %p45 = por %p43, %p44
      %p46 = scmp.ne.s32.totalorder %s35, %s38
      %p47 = scmp.eq.s32.totalorder %s30, 1
      %p48 = por %p46, %p47
      %p49 = scmp.ne.s32.totalorder %s38, %s39
      %p50 = scmp.eq.s32.totalorder %s30, 0
      %p51 = por %p49, %p50
      %p52 = scmp.ne.s32.totalorder %s38, %s39
      %p53 = scmp.eq.s32.totalorder %s31, 1
      %p54 = por %p52, %p53
      %p56 = scmp.ne.s32.totalorder %s39, %s55
      %p57 = scmp.eq.s32.totalorder %s31, 0
      %p58 = por %p56, %p57
      %s60 = sadd.s32 %s59, 1
      %p63 = scmp.eq.s32.totalorder %s25, 1
      %p64 = scmp.ne.s32.totalorder %s59, %s61
      %p65 = scmp.eq.s32.totalorder %s25, 0
      %p66 = por %p64, %p65
      %p67 = scmp.ne.s32.totalorder %s59, %s61
      %p68 = scmp.eq.s32.totalorder %s30, 1
      %p69 = por %p67, %p68
      %p70 = scmp.ne.s32.totalorder %s61, %s62
      %p71 = scmp.eq.s32.totalorder %s30, 0
      %p72 = por %p70, %p71
      %p73 = scmp.ne.s32.totalorder %s61, %s62
      %p74 = scmp.eq.s32.totalorder %s31, 1
      %p75 = por %p73, %p74
      %p77 = scmp.ne.s32.totalorder %s62, %s76
      %p78 = scmp.eq.s32.totalorder %s31, 0
      %p79 = por %p77, %p78
      %s81 = sadd.s32 %s80, 1
      %p84 = scmp.eq.s32.totalorder %s25, 1
      %p85 = scmp.ne.s32.totalorder %s80, %s82
      %p86 = scmp.eq.s32.totalorder %s25, 0
      %p87 = por %p85, %p86
      %p88 = scmp.ne.s32.totalorder %s80, %s82
      %p89 = scmp.eq.s32.totalorder %s30, 1
      %p90 = por %p88, %p89
      %p91 = scmp.ne.s32.totalorder %s82, %s83
      %p92 = scmp.eq.s32.totalorder %s30, 0
      %p93 = por %p91, %p92
      %p94 = scmp.ne.s32.totalorder %s82, %s83
      %p95 = scmp.eq.s32.totalorder %s31, 1
      %p96 = por %p94, %p95
      %p98 = scmp.ne.s32.totalorder %s83, %s97
      %p99 = scmp.eq.s32.totalorder %s31, 0
      %p100 = por %p98, %p99
      %s102 = sadd.s32 %s101, 1
      %p105 = scmp.eq.s32.totalorder %s25, 1
      %p106 = scmp.ne.s32.totalorder %s101, %s103
      %p107 = scmp.eq.s32.totalorder %s25, 0
      %p108 = por %p106, %p107
      %p109 = scmp.ne.s32.totalorder %s101, %s103
      %p110 = scmp.eq.s32.totalorder %s30, 1
      %p111 = por %p109, %p110
      %p112 = scmp.ne.s32.totalorder %s103, %s104
      %p113 = scmp.eq.s32.totalorder %s30, 0
      %p114 = por %p112, %p113
      %p115 = scmp.ne.s32.totalorder %s103, %s104
      %p116 = scmp.eq.s32.totalorder %s31, 1
      %p117 = por %p115, %p116
      %p119 = scmp.ne.s32.totalorder %s104, %s118
      %p120 = scmp.eq.s32.totalorder %s31, 0
      %p121 = por %p119, %p120
      %s123 = sadd.s32 %s122, 1
      %p126 = scmp.eq.s32.totalorder %s25, 1
      %p127 = scmp.ne.s32.totalorder %s122, %s124
      %p128 = scmp.eq.s32.totalorder %s25, 0
      %p129 = por %p127, %p128
      %p130 = scmp.ne.s32.totalorder %s122, %s124
      %p131 = scmp.eq.s32.totalorder %s30, 1
      %p132 = por %p130, %p131
      %p133 = scmp.ne.s32.totalorder %s124, %s125
      %p134 = scmp.eq.s32.totalorder %s30, 0
      %p135 = por %p133, %p134
      %p136 = scmp.ne.s32.totalorder %s124, %s125
      %p137 = scmp.eq.s32.totalorder %s31, 1
      %p138 = por %p136, %p137
      %p140 = scmp.ne.s32.totalorder %s125, %s139
      %p141 = scmp.eq.s32.totalorder %s31, 0
      %p142 = por %p140, %p141
      %s144 = sadd.s32 %s143, 1
      %p147 = scmp.eq.s32.totalorder %s25, 1
      %p148 = scmp.ne.s32.totalorder %s143, %s145
      %p149 = scmp.eq.s32.totalorder %s25, 0
      %p150 = por %p148, %p149
      %p151 = scmp.ne.s32.totalorder %s143, %s145
      %p152 = scmp.eq.s32.totalorder %s30, 1
      %p153 = por %p151, %p152
      %p154 = scmp.ne.s32.totalorder %s145, %s146
      %p155 = scmp.eq.s32.totalorder %s30, 0
      %p156 = por %p154, %p155
      %p157 = scmp.ne.s32.totalorder %s145, %s146
      %p158 = scmp.eq.s32.totalorder %s31, 1
      %p159 = por %p157, %p158
      %p161 = scmp.ne.s32.totalorder %s146, %s160
      %p162 = scmp.eq.s32.totalorder %s31, 0
      %p163 = por %p161, %p162
      %s165 = sadd.s32 %s164, 1
      %p168 = scmp.eq.s32.totalorder %s25, 1
      %p169 = scmp.ne.s32.totalorder %s164, %s166
      %p170 = scmp.eq.s32.totalorder %s25, 0
      %p171 = por %p169, %p170
      %p172 = scmp.ne.s32.totalorder %s164, %s166
      %p173 = scmp.eq.s32.totalorder %s30, 1
      %p174 = por %p172, %p173
      %p175 = scmp.ne.s32.totalorder %s166, %s167
      %p176 = scmp.eq.s32.totalorder %s30, 0
      %p177 = por %p175, %p176
      %p178 = scmp.ne.s32.totalorder %s166, %s167
      %p179 = scmp.eq.s32.totalorder %s31, 1
      %p180 = por %p178, %p179
      %p182 = scmp.ne.s32.totalorder %s167, %s181
      %p183 = scmp.eq.s32.totalorder %s31, 0
      %p184 = por %p182, %p183
      %s186 = sadd.s32 %s185, 1
      %p189 = scmp.eq.s32.totalorder %s25, 1
      %p190 = scmp.ne.s32.totalorder %s185, %s187
      %p191 = scmp.eq.s32.totalorder %s25, 0
      %p192 = por %p190, %p191
      %p193 = scmp.ne.s32.totalorder %s185, %s187
      %p194 = scmp.eq.s32.totalorder %s30, 1
      %p195 = por %p193, %p194
      %p196 = scmp.ne.s32.totalorder %s187, %s188
      %p197 = scmp.eq.s32.totalorder %s30, 0
      %p198 = por %p196, %p197
      %p199 = scmp.ne.s32.totalorder %s187, %s188
      %p200 = scmp.eq.s32.totalorder %s31, 1
      %p201 = por %p199, %p200
      %p203 = scmp.ne.s32.totalorder %s188, %s202
      %p204 = scmp.eq.s32.totalorder %s31, 0
      %p205 = por %p203, %p204
      %s207 = sadd.s32 %s206, 1
      %p210 = scmp.eq.s32.totalorder %s25, 1
      %p211 = scmp.ne.s32.totalorder %s206, %s208
      %p212 = scmp.eq.s32.totalorder %s25, 0
      %p213 = por %p211, %p212
      %p214 = scmp.ne.s32.totalorder %s206, %s208
      %p215 = scmp.eq.s32.totalorder %s30, 1
      %p216 = por %p214, %p215
      %p217 = scmp.ne.s32.totalorder %s208, %s209
      %p218 = scmp.eq.s32.totalorder %s30, 0
      %p219 = por %p217, %p218
      %p220 = scmp.ne.s32.totalorder %s208, %s209
      %p221 = scmp.eq.s32.totalorder %s31, 1
      %p222 = por %p220, %p221
      %p224 = scmp.ne.s32.totalorder %s209, %s223
      %p225 = scmp.eq.s32.totalorder %s31, 0
      %p226 = por %p224, %p225
      %s228 = sadd.s32 %s227, 1
      %p231 = scmp.eq.s32.totalorder %s25, 1
      %p232 = scmp.ne.s32.totalorder %s227, %s229
      %p233 = scmp.eq.s32.totalorder %s25, 0
      %p234 = por %p232, %p233
      %p235 = scmp.ne.s32.totalorder %s227, %s229
      %p236 = scmp.eq.s32.totalorder %s30, 1
      %p237 = por %p235, %p236
      %p238 = scmp.ne.s32.totalorder %s229, %s230
      %p239 = scmp.eq.s32.totalorder %s30, 0
      %p240 = por %p238, %p239
      %p241 = scmp.ne.s32.totalorder %s229, %s230
      %p242 = scmp.eq.s32.totalorder %s31, 1
      %p243 = por %p241, %p242
      %p245 = scmp.ne.s32.totalorder %s230, %s244
      %p246 = scmp.eq.s32.totalorder %s31, 0
      %p247 = por %p245, %p246
      %s249 = sadd.s32 %s248, 1
      %p252 = scmp.eq.s32.totalorder %s25, 1
      %p253 = scmp.ne.s32.totalorder %s248, %s250
      %p254 = scmp.eq.s32.totalorder %s25, 0
      %p255 = por %p253, %p254
      %p256 = scmp.ne.s32.totalorder %s248, %s250
      %p257 = scmp.eq.s32.totalorder %s30, 1
      %p258 = por %p256, %p257
      %p259 = scmp.ne.s32.totalorder %s250, %s251
      %p260 = scmp.eq.s32.totalorder %s30, 0
      %p261 = por %p259, %p260
      %p262 = scmp.ne.s32.totalorder %s250, %s251
      %p263 = scmp.eq.s32.totalorder %s31, 1
      %p264 = por %p262, %p263
      %p266 = scmp.ne.s32.totalorder %s251, %s265
      %p267 = scmp.eq.s32.totalorder %s31, 0
      %p268 = por %p266, %p267
      %s270 = sadd.s32 %s269, 1
      %p273 = scmp.eq.s32.totalorder %s25, 1
      %p274 = scmp.ne.s32.totalorder %s269, %s271
      %p275 = scmp.eq.s32.totalorder %s25, 0
      %p276 = por %p274, %p275
      %p277 = scmp.ne.s32.totalorder %s269, %s271
      %p278 = scmp.eq.s32.totalorder %s30, 1
      %p279 = por %p277, %p278
      %p280 = scmp.ne.s32.totalorder %s271, %s272
      %p281 = scmp.eq.s32.totalorder %s30, 0
      %p282 = por %p280, %p281
      %p283 = scmp.ne.s32.totalorder %s271, %s272
      %p284 = scmp.eq.s32.totalorder %s31, 1
      %p285 = por %p283, %p284
      %p287 = scmp.ne.s32.totalorder %s272, %s286
      %p288 = scmp.eq.s32.totalorder %s31, 0
      %p289 = por %p287, %p288
      %s291 = sadd.s32 %s290, 1
      %p294 = scmp.eq.s32.totalorder %s25, 1
      %p295 = scmp.ne.s32.totalorder %s290, %s292
      %p296 = scmp.eq.s32.totalorder %s25, 0
      %p297 = por %p295, %p296
      %p298 = scmp.ne.s32.totalorder %s290, %s292
      %p299 = scmp.eq.s32.totalorder %s30, 1
      %p300 = por %p298, %p299
      %p301 = scmp.ne.s32.totalorder %s292, %s293
      %p302 = scmp.eq.s32.totalorder %s30, 0
      %p303 = por %p301, %p302
      %p304 = scmp.ne.s32.totalorder %s292, %s293
      %p305 = scmp.eq.s32.totalorder %s31, 1
      %p306 = por %p304, %p305
      %p308 = scmp.ne.s32.totalorder %s293, %s307
      %p309 = scmp.eq.s32.totalorder %s31, 0
      %p310 = por %p308, %p309
      %s312 = sadd.s32 %s311, 1
      %p315 = scmp.eq.s32.totalorder %s25, 1
      %p316 = scmp.ne.s32.totalorder %s311, %s313
      %p317 = scmp.eq.s32.totalorder %s25, 0
      %p318 = por %p316, %p317
      %p319 = scmp.ne.s32.totalorder %s311, %s313
      %p320 = scmp.eq.s32.totalorder %s30, 1
      %p321 = por %p319, %p320
      %p322 = scmp.ne.s32.totalorder %s313, %s314
      %p323 = scmp.eq.s32.totalorder %s30, 0
      %p324 = por %p322, %p323
      %p325 = scmp.ne.s32.totalorder %s313, %s314
      %p326 = scmp.eq.s32.totalorder %s31, 1
      %p327 = por %p325, %p326
      %p329 = scmp.ne.s32.totalorder %s314, %s328
      %p330 = scmp.eq.s32.totalorder %s31, 0
      %p331 = por %p329, %p330
      %s333 = sadd.s32 %s332, 1
      %p336 = scmp.eq.s32.totalorder %s25, 1
      %p337 = scmp.ne.s32.totalorder %s332, %s334
      %p338 = scmp.eq.s32.totalorder %s25, 0
      %p339 = por %p337, %p338
      %p340 = scmp.ne.s32.totalorder %s332, %s334
      %p341 = scmp.eq.s32.totalorder %s30, 1
      %p342 = por %p340, %p341
      %p343 = scmp.ne.s32.totalorder %s334, %s335
      %p344 = scmp.eq.s32.totalorder %s30, 0
      %p345 = por %p343, %p344
      %p346 = scmp.ne.s32.totalorder %s334, %s335
      %p347 = scmp.eq.s32.totalorder %s31, 1
      %p348 = por %p346, %p347
      %p350 = scmp.ne.s32.totalorder %s335, %s349
      %p351 = scmp.eq.s32.totalorder %s31, 0
      %p352 = por %p350, %p351
      %s354 = sadd.s32 %s353, 1
      %p357 = scmp.eq.s32.totalorder %s25, 1
      %p358 = scmp.ne.s32.totalorder %s353, %s355
      %p359 = scmp.eq.s32.totalorder %s25, 0
      %p360 = por %p358, %p359
      %p361 = scmp.ne.s32.totalorder %s353, %s355
      %p362 = scmp.eq.s32.totalorder %s30, 1
      %p363 = por %p361, %p362
      %p364 = scmp.ne.s32.totalorder %s355, %s356
      %p365 = scmp.eq.s32.totalorder %s30, 0
      %p366 = por %p364, %p365
      %p367 = scmp.ne.s32.totalorder %s355, %s356
      %p368 = scmp.eq.s32.totalorder %s31, 1
      %p369 = por %p367, %p368
      %p371 = scmp.ne.s32.totalorder %s356, %s370
      %p372 = scmp.eq.s32.totalorder %s31, 0
      %p373 = por %p371, %p372
      %s374 = ssub.s32 %s25, %s32
      %p375 = scmp.eq.s32.totalorder %s374, 0
      %s377 = sadd.s32 %s376, 1
      %s378 = scalar_select %p375, %s376, %s377
      %p381 = pneg %p375
      %p382 = scmp.eq.s32.totalorder %s25, 1
      %p383 = por %p381, %p382
      %p384 = scmp.ne.s32.totalorder %s376, %s379
      %p385 = scmp.eq.s32.totalorder %s25, 0
      %p386 = por %p384, %p385
      %p387 = scmp.ne.s32.totalorder %s376, %s379
      %p388 = scmp.eq.s32.totalorder %s30, 1
      %p389 = por %p387, %p388
      %p390 = scmp.ne.s32.totalorder %s379, %s380
      %p391 = scmp.eq.s32.totalorder %s30, 0
      %p392 = por %p390, %p391
      %p393 = scmp.ne.s32.totalorder %s379, %s380
      %p394 = scmp.eq.s32.totalorder %s31, 1
      %p395 = por %p393, %p394
      %p397 = scmp.ne.s32.totalorder %s380, %s396
      %p398 = scmp.eq.s32.totalorder %s31, 0
      %p399 = por %p397, %p398
      %p400 = scmp.le.s32.totalorder 1, %s25
      %p401 = scmp.lt.s32.totalorder %s25, 3
      %p402 = pnand %p400, %p401
      %p403 = pneg %p402
      // Predicated region
      $region9: #{tpu_custom_call.1} parent=5 // pred_check
        _
      $region10: #{tpu_custom_call.1} parent=5 // pred_check_branch
        %405 = sbr.rel (%p402) target = $region12
      $region11: #{tpu_custom_call.1} parent=5 // pred_region
        %s406 = ssub.s32 %s25, 1
        // Predicated region
        $region13: #{tpu_custom_call.1} parent=11 // pred_check
          %p407 = pneg %p72
        $region14: #{tpu_custom_call.1} parent=11 // pred_check_branch
          %409 = sbr.rel (%p407) target = $region16
        $region15: #{tpu_custom_call.1} parent=11 // pred_region
          _
        $region16: #{tpu_custom_call.1} parent=11 // pred_fallthru
          _
        // Predicated region
        $region17: #{tpu_custom_call.1} parent=11 // pred_check
          %p410 = pneg %p93
        $region18: #{tpu_custom_call.1} parent=11 // pred_check_branch
          %412 = sbr.rel (%p410) target = $region20
        $region19: #{tpu_custom_call.1} parent=11 // pred_region
          _
        $region20: #{tpu_custom_call.1} parent=11 // pred_fallthru
          _
        // Predicated region
        $region21: #{tpu_custom_call.1} parent=11 // pred_check
          %p413 = pneg %p114
        $region22: #{tpu_custom_call.1} parent=11 // pred_check_branch
          %415 = sbr.rel (%p413) target = $region24
        $region23: #{tpu_custom_call.1} parent=11 // pred_region
          _
        $region24: #{tpu_custom_call.1} parent=11 // pred_fallthru
          _
        // Predicated region
        $region25: #{tpu_custom_call.1} parent=11 // pred_check
          %p416 = pneg %p135
        $region26: #{tpu_custom_call.1} parent=11 // pred_check_branch
          %418 = sbr.rel (%p416) target = $region28
        $region27: #{tpu_custom_call.1} parent=11 // pred_region
          _
        $region28: #{tpu_custom_call.1} parent=11 // pred_fallthru
          _
        // Predicated region
        $region29: #{tpu_custom_call.1} parent=11 // pred_check
          %p419 = pneg %p156
        $region30: #{tpu_custom_call.1} parent=11 // pred_check_branch
          %421 = sbr.rel (%p419) target = $region32
        $region31: #{tpu_custom_call.1} parent=11 // pred_region
          _
        $region32: #{tpu_custom_call.1} parent=11 // pred_fallthru
          _
        // Predicated region
        $region33: #{tpu_custom_call.1} parent=11 // pred_check
          %p422 = pneg %p177
        $region34: #{tpu_custom_call.1} parent=11 // pred_check_branch
          %424 = sbr.rel (%p422) target = $region36
        $region35: #{tpu_custom_call.1} parent=11 // pred_region
          _
        $region36: #{tpu_custom_call.1} parent=11 // pred_fallthru
          _
        // Predicated region
        $region37: #{tpu_custom_call.1} parent=11 // pred_check
          %p425 = pneg %p198
        $region38: #{tpu_custom_call.1} parent=11 // pred_check_branch
          %427 = sbr.rel (%p425) target = $region40
        $region39: #{tpu_custom_call.1} parent=11 // pred_region
          _
        $region40: #{tpu_custom_call.1} parent=11 // pred_fallthru
          _
        // Predicated region
        $region41: #{tpu_custom_call.1} parent=11 // pred_check
          %p428 = pneg %p219
        $region42: #{tpu_custom_call.1} parent=11 // pred_check_branch
          %430 = sbr.rel (%p428) target = $region44
        $region43: #{tpu_custom_call.1} parent=11 // pred_region
          _
        $region44: #{tpu_custom_call.1} parent=11 // pred_fallthru
          _
        // Predicated region
        $region45: #{tpu_custom_call.1} parent=11 // pred_check
          %p431 = pneg %p240
        $region46: #{tpu_custom_call.1} parent=11 // pred_check_branch
          %433 = sbr.rel (%p431) target = $region48
        $region47: #{tpu_custom_call.1} parent=11 // pred_region
          _
        $region48: #{tpu_custom_call.1} parent=11 // pred_fallthru
          _
        // Predicated region
        $region49: #{tpu_custom_call.1} parent=11 // pred_check
          %p434 = pneg %p261
        $region50: #{tpu_custom_call.1} parent=11 // pred_check_branch
          %436 = sbr.rel (%p434) target = $region52
        $region51: #{tpu_custom_call.1} parent=11 // pred_region
          _
        $region52: #{tpu_custom_call.1} parent=11 // pred_fallthru
          _
        // Predicated region
        $region53: #{tpu_custom_call.1} parent=11 // pred_check
          %p437 = pneg %p282
        $region54: #{tpu_custom_call.1} parent=11 // pred_check_branch
          %439 = sbr.rel (%p437) target = $region56
        $region55: #{tpu_custom_call.1} parent=11 // pred_region
          _
        $region56: #{tpu_custom_call.1} parent=11 // pred_fallthru
          _
        // Predicated region
        $region57: #{tpu_custom_call.1} parent=11 // pred_check
          %p440 = pneg %p303
        $region58: #{tpu_custom_call.1} parent=11 // pred_check_branch
          %442 = sbr.rel (%p440) target = $region60
        $region59: #{tpu_custom_call.1} parent=11 // pred_region
          _
        $region60: #{tpu_custom_call.1} parent=11 // pred_fallthru
          _
        // Predicated region
        $region61: #{tpu_custom_call.1} parent=11 // pred_check
          %p443 = pneg %p324
        $region62: #{tpu_custom_call.1} parent=11 // pred_check_branch
          %445 = sbr.rel (%p443) target = $region64
        $region63: #{tpu_custom_call.1} parent=11 // pred_region
          _
        $region64: #{tpu_custom_call.1} parent=11 // pred_fallthru
          _
        // Predicated region
        $region65: #{tpu_custom_call.1} parent=11 // pred_check
          %p446 = pneg %p345
        $region66: #{tpu_custom_call.1} parent=11 // pred_check_branch
          %448 = sbr.rel (%p446) target = $region68
        $region67: #{tpu_custom_call.1} parent=11 // pred_region
          _
        $region68: #{tpu_custom_call.1} parent=11 // pred_fallthru
          _
        // Predicated region
        $region69: #{tpu_custom_call.1} parent=11 // pred_check
          %p449 = pneg %p366
        $region70: #{tpu_custom_call.1} parent=11 // pred_check_branch
          %451 = sbr.rel (%p449) target = $region72
        $region71: #{tpu_custom_call.1} parent=11 // pred_region
          _
        $region72: #{tpu_custom_call.1} parent=11 // pred_fallthru
          _
      $region12: #{tpu_custom_call.1} parent=5 // pred_fallthru
        _
      %p452 = scmp.lt.s32.totalorder %s25, 2
      // Predicated region
      $region73: #{tpu_custom_call.1} parent=5 // pred_check
        %p453 = pneg %p452
      $region74: #{tpu_custom_call.1} parent=5 // pred_check_branch
        %455 = sbr.rel (%p453) target = $region76
      $region75: #{tpu_custom_call.1} parent=5 // pred_region
        // Predicated region
        $region77: #{tpu_custom_call.1} parent=75 // pred_check
          %p456 = pneg %p45
        $region78: #{tpu_custom_call.1} parent=75 // pred_check_branch
          %458 = sbr.rel (%p456) target = $region80
        $region79: #{tpu_custom_call.1} parent=75 // pred_region
          %s459 = sand.u32 %s35, 1
          %s460 = sand.u32 %s35, 1
          %s461 = smul.addr %s460, 64
          %s462 = scalar_lea.vmem [#allocation2], %s461
          %s463 = smul.u32 4, %s25
          %s464 = smul.addr %s463, 8
          %s465 = scalar_lea.vmem %s0, %s464
          // Predicated region
          $region81: #{tpu_custom_call.1} parent=79 // pred_check
            _
          $region82: #{tpu_custom_call.1} parent=79 // pred_check_branch
            %467 = sbr.rel (0) target = $region84
          $region83: #{tpu_custom_call.1} parent=79 // pred_region
            // Predicated region
            $region85: #{tpu_custom_call.1} parent=83 // pred_check
              _
            $region86: #{tpu_custom_call.1} parent=83 // pred_check_branch
              %469 = sbr.rel (0) target = $region88
            $region87: #{tpu_custom_call.1} parent=83 // pred_region
              loop: start=0, step=1, limit=1
              $region89: #{tpu_custom_call.1} parent=87 // loop_pre_header
                _
              $region90: #{tpu_custom_call.1} parent=87 // loop_header
                %s471 = sphi 0, %s475
                %p472 = scmp.ge.s32.totalorder %s471, 1
                %s476 = sphi %s465, %s465
                %s477 = sphi %s462, %s462
              $region91: #{tpu_custom_call.1} parent=87 // loop_header_branch
                %474 = sbr.rel (%p472) target = $region95
              $region92: #{tpu_custom_call.1} parent=87 // loop_body
                %v478 = vld [vmem:[%s476] sm:$0xff]
                %479 = vst [vmem:[%s477] sm:$0xff] %v478
                %v480 = vld [vmem:[%s476 + $0x8] sm:$0xff]
                %481 = vst [vmem:[%s477 + $0x8] sm:$0xff] %v480
                %v482 = vld [vmem:[%s476 + $0x10] sm:$0xff]
                %483 = vst [vmem:[%s477 + $0x10] sm:$0xff] %v482
                %v484 = vld [vmem:[%s476 + $0x18] sm:$0xff]
                %485 = vst [vmem:[%s477 + $0x18] sm:$0xff] %v484
                %v486 = vld [vmem:[%s476 + $0x40] sm:$0xff]
                %487 = vst [vmem:[%s477 + $0x20] sm:$0xff] %v486
                %v488 = vld [vmem:[%s476 + $0x48] sm:$0xff]
                %489 = vst [vmem:[%s477 + $0x28] sm:$0xff] %v488
                %v490 = vld [vmem:[%s476 + $0x50] sm:$0xff]
                %491 = vst [vmem:[%s477 + $0x30] sm:$0xff] %v490
                %v492 = vld [vmem:[%s476 + $0x58] sm:$0xff]
                %493 = vst [vmem:[%s477 + $0x38] sm:$0xff] %v492
              $region93: #{tpu_custom_call.1} parent=87 // loop_footer
                %s475 = sadd.s32 1, %s471
              $region94: #{tpu_custom_call.1} parent=87 // loop_footer_branch
                %470 = sbr.rel target = $region90
              $region95: #{tpu_custom_call.1} parent=87 // loop_exit
                _
            $region88: #{tpu_custom_call.1} parent=83 // pred_fallthru
              _
            // Predicated region
            $region96: #{tpu_custom_call.1} parent=83 // pred_check
              _
            $region97: #{tpu_custom_call.1} parent=83 // pred_check_branch
              %495 = sbr.rel target = $region99
            $region98: #{tpu_custom_call.1} parent=83 // pred_region
              _
            $region99: #{tpu_custom_call.1} parent=83 // pred_fallthru
              _
          $region84: #{tpu_custom_call.1} parent=79 // pred_fallthru
            _
          %496 = vnop
        $region80: #{tpu_custom_call.1} parent=75 // pred_fallthru
          _
      $region76: #{tpu_custom_call.1} parent=5 // pred_fallthru
        _
      %p497 = scmp.le.s32.totalorder 1, %s25
      %p498 = scmp.lt.s32.totalorder %s25, 3
      %p499 = pnand %p497, %p498
      %p500 = pneg %p499
      // Predicated region
      $region100: #{tpu_custom_call.1} parent=5 // pred_check
        _
      $region101: #{tpu_custom_call.1} parent=5 // pred_check_branch
        %502 = sbr.rel (%p499) target = $region103
      $region102: #{tpu_custom_call.1} parent=5 // pred_region
        %s503 = ssub.s32 %s25, 1
        %s504 = sand.u32 %s38, 1
        %s505 = sand.u32 %s38, 1
        %s506 = smul.addr %s505, 64
        %s507 = scalar_lea.vmem [#allocation2], %s506
        // Predicated region
        $region104: #{tpu_custom_call.1} parent=102 // pred_check
          %p508 = pneg %p51
        $region105: #{tpu_custom_call.1} parent=102 // pred_check_branch
          %510 = sbr.rel (%p508) target = $region107
        $region106: #{tpu_custom_call.1} parent=102 // pred_region
          _
        $region107: #{tpu_custom_call.1} parent=102 // pred_fallthru
          _
        %s511 = sand.u32 %s38, 1
        %s512 = sand.u32 %s38, 1
        %s513 = smul.addr %s512, 64
        %s514 = scalar_lea.vmem [#allocation2], %s513
        %p515 = pneg %p51
        %p516 = pneg %p48
        %p517 = pneg %p72
        %p518 = pneg %p69
        %p519 = pneg %p93
        %p520 = pneg %p90
        %p521 = pneg %p114
        %p522 = pneg %p111
        %p523 = pneg %p135
        %p524 = pneg %p132
        %p525 = pneg %p156
        %p526 = pneg %p153
        %p527 = pneg %p177
        %p528 = pneg %p174
        %p529 = pneg %p198
        %p530 = pneg %p195
        %p531 = pneg %p219
        %p532 = pneg %p216
        %p533 = pneg %p240
        %p534 = pneg %p237
        %p535 = pneg %p261
        %p536 = pneg %p258
        %p537 = pneg %p282
        %p538 = pneg %p279
        %p539 = pneg %p303
        %p540 = pneg %p300
        %p541 = pneg %p324
        %p542 = pneg %p321
        %p543 = pneg %p345
        %p544 = pneg %p342
        %p545 = pneg %p366
        %p546 = pneg %p363
        %p547 = pneg %p392
        %p548 = pneg %p389
        %s549 = sand.u32 %s379, 1
        %s550 = scalar_lea.sflag [#allocation4], %s549
        %s551 = sand.u32 %s379, 1
        %s552 = smul.addr %s551, 4
        %s553 = scalar_lea.vmem [#allocation3], %s552
        %s554 = smul.u32 4, %s30
        %s555 = smul.u32 4, %s30
        %v556 = vld [vmem:[%s507] sm:$0xff]
        %v557 = vld [vmem:[%s507 + $0x8] sm:$0xff]
        %v558 = vld [vmem:[%s507 + $0x10] sm:$0xff]
        %v559 = vld [vmem:[%s507 + $0x18] sm:$0xff]
        %v560 = vld [vmem:[%s507 + $0x20] sm:$0xff]
        %v561 = vld [vmem:[%s507 + $0x28] sm:$0xff]
        %v562 = vld [vmem:[%s507 + $0x30] sm:$0xff]
        %v563 = vld [vmem:[%s507 + $0x38] sm:$0xff]
        %v564 = vld [vmem:[%s1] sm:$0xff]
        %v565 = vld [vmem:[%s1 + $0x8] sm:$0xff]
        %v566 = vld [vmem:[%s1 + $0x10] sm:$0xff]
        %v567 = vld [vmem:[%s1 + $0x18] sm:$0xff]
        %v568 = vld [vmem:[%s1 + $0x20] sm:$0xff]
        %v569 = vld [vmem:[%s1 + $0x28] sm:$0xff]
        %v570 = vld [vmem:[%s1 + $0x30] sm:$0xff]
        %v571 = vld [vmem:[%s1 + $0x38] sm:$0xff]
        %v572 = vld [vmem:[%s2] sm:$0xff]
        %v573 = vld [vmem:[%s2 + $0x8] sm:$0xff]
        %v574 = vld [vmem:[%s2 + $0x10] sm:$0xff]
        %v575 = vld [vmem:[%s2 + $0x18] sm:$0xff]
        %v576 = vld [vmem:[%s2 + $0x20] sm:$0xff]
        %v577 = vld [vmem:[%s2 + $0x28] sm:$0xff]
        %v578 = vld [vmem:[%s2 + $0x30] sm:$0xff]
        %v579 = vld [vmem:[%s2 + $0x38] sm:$0xff]
        %581 = vset.pattern.permute.xlu0 0
        %582 = vperm.xlu0 %581, %v572
        %v583 = vpop.permute.xlu0 %582
        %586 = vset.pattern.permute.xlu0 0
        %587 = vperm.xlu0 %586, %v573
        %v588 = vpop.permute.xlu0 %587
        %591 = vset.pattern.permute.xlu0 0
        %592 = vperm.xlu0 %591, %v574
        %v593 = vpop.permute.xlu0 %592
        %596 = vset.pattern.permute.xlu0 0
        %597 = vperm.xlu0 %596, %v575
        %v598 = vpop.permute.xlu0 %597
        %601 = vset.pattern.permute.xlu0 0
        %602 = vperm.xlu0 %601, %v576
        %v603 = vpop.permute.xlu0 %602
        %606 = vset.pattern.permute.xlu0 0
        %607 = vperm.xlu0 %606, %v577
        %v608 = vpop.permute.xlu0 %607
        %611 = vset.pattern.permute.xlu0 0
        %612 = vperm.xlu0 %611, %v578
        %v613 = vpop.permute.xlu0 %612
        %616 = vset.pattern.permute.xlu0 0
        %617 = vperm.xlu0 %616, %v579
        %v618 = vpop.permute.xlu0 %617
        %vm620 = vcmask 130048
        %v622 = vsel %vm620, %v564, 0
        %v625 = vsel %vm620, %v565, 0
        %v628 = vsel %vm620, %v566, 0
        %v631 = vsel %vm620, %v567, 0
        %v634 = vsel %vm620, %v568, 0
        %v637 = vsel %vm620, %v569, 0
        %v640 = vsel %vm620, %v570, 0
        %v643 = vsel %vm620, %v571, 0
        %645 = vmatprep.subr.mxu0 0.0
        %646 = vmatpush1.msra.mxu0 0.0
        %647 = vmatprep.subr.mxu0 0.0
        %648 = vmatpush1.msra.mxu0 0.0
        %649 = vmatprep.subr.mxu0 0.0
        %650 = vmatpush1.msra.mxu0 0.0
        %651 = vmatprep.subr.mxu0 0.0
        %652 = vmatpush1.msra.mxu0 0.0
        %653 = vmatprep.subr.mxu0 0.0
        %654 = vmatpush1.msra.mxu0 0.0
        %655 = vmatprep.subr.mxu0 0.0
        %656 = vmatpush1.msra.mxu0 0.0
        %657 = vmatprep.subr.mxu0 0.0
        %658 = vmatpush1.msra.mxu0 0.0
        %659 = vmatprep.subr.mxu0 0.0
        %660 = vmatpush1.msra.mxu0 0.0
        %661 = vmatprep.subr.mxu0 0.0
        %662 = vmatpush1.msra.mxu0 0.0
        %663 = vmatprep.subr.mxu0 0.0
        %664 = vmatpush1.msra.mxu0 0.0
        %665 = vmatprep.subr.mxu0 0.0
        %666 = vmatpush1.msra.mxu0 0.0
        %667 = vmatprep.subr.mxu0 0.0
        %668 = vmatpush1.msra.mxu0 0.0
        %669 = vmatprep.subr.mxu0 0.0
        %670 = vmatpush1.msra.mxu0 0.0
        %671 = vmatprep.subr.mxu0 0.0
        %672 = vmatpush1.msra.mxu0 0.0
        %673 = vmatprep.subr.mxu0 %v561
        %674 = vmatpush1.msra.mxu0 %v560
        %675 = vmatprep.subr.mxu0 %v557
        %676 = vmatpush1.msra.mxu0 %v556
        %677 = vmatprep.subr.mxu0 0.0
        %678 = vmatpush2.msra.mxu0 0.0
        %679 = vmatprep.subr.mxu0 0.0
        %680 = vmatpush2.msra.mxu0 0.0
        %681 = vmatprep.subr.mxu0 0.0
        %682 = vmatpush2.msra.mxu0 0.0
        %683 = vmatprep.subr.mxu0 0.0
        %684 = vmatpush2.msra.mxu0 0.0
        %685 = vmatprep.subr.mxu0 0.0
        %686 = vmatpush2.msra.mxu0 0.0
        %687 = vmatprep.subr.mxu0 0.0
        %688 = vmatpush2.msra.mxu0 0.0
        %689 = vmatprep.subr.mxu0 0.0
        %690 = vmatpush2.msra.mxu0 0.0
        %691 = vmatprep.subr.mxu0 0.0
        %692 = vmatpush2.msra.mxu0 0.0
        %693 = vmatprep.subr.mxu0 0.0
        %694 = vmatpush2.msra.mxu0 0.0
        %695 = vmatprep.subr.mxu0 0.0
        %696 = vmatpush2.msra.mxu0 0.0
        %697 = vmatprep.subr.mxu0 0.0
        %698 = vmatpush2.msra.mxu0 0.0
        %699 = vmatprep.subr.mxu0 0.0
        %700 = vmatpush2.msra.mxu0 0.0
        %701 = vmatprep.subr.mxu0 0.0
        %702 = vmatpush2.msra.mxu0 0.0
        %703 = vmatprep.subr.mxu0 0.0
        %704 = vmatpush2.msra.mxu0 0.0
        %705 = vmatprep.subr.mxu0 0.0
        %706 = vmatpush2.msra.mxu0 0.0
        %707 = vmatprep.subr.mxu0 0.0
        %708 = vmatpush2.msra.mxu0 0.0
        %709 = vmatprep.mubr.f32.mxu0 0.0
        %710 = vmatmul.mubr.f32.gmra.mxu0 %v622
        %v711 = vpop.f32.mrf.mxu0
        %v712 = vadd.f32 %v583, %v711
        %v713 = vpop.f32.mrf.mxu0
        %v714 = vadd.f32 %v583, %v713
        %715 = vmatprep.mubr.f32.mxu0 0.0
        %716 = vmatmul.mubr.f32.gmra.mxu0 %v625
        %v717 = vpop.f32.mrf.mxu0
        %v718 = vadd.f32 %v588, %v717
        %v719 = vpop.f32.mrf.mxu0
        %v720 = vadd.f32 %v588, %v719
        %721 = vmatprep.mubr.f32.mxu0 0.0
        %722 = vmatmul.mubr.f32.gmra.mxu0 %v628
        %v723 = vpop.f32.mrf.mxu0
        %v724 = vadd.f32 %v593, %v723
        %v725 = vpop.f32.mrf.mxu0
        %v726 = vadd.f32 %v593, %v725
        %727 = vmatprep.mubr.f32.mxu0 0.0
        %728 = vmatmul.mubr.f32.gmra.mxu0 %v631
        %v729 = vpop.f32.mrf.mxu0
        %v730 = vadd.f32 %v598, %v729
        %v731 = vpop.f32.mrf.mxu0
        %v732 = vadd.f32 %v598, %v731
        %733 = vmatprep.mubr.f32.mxu0 0.0
        %734 = vmatmul.mubr.f32.gmra.mxu0 %v634
        %v735 = vpop.f32.mrf.mxu0
        %v736 = vadd.f32 %v603, %v735
        %v737 = vpop.f32.mrf.mxu0
        %v738 = vadd.f32 %v603, %v737
        %739 = vmatprep.mubr.f32.mxu0 0.0
        %740 = vmatmul.mubr.f32.gmra.mxu0 %v637
        %v741 = vpop.f32.mrf.mxu0
        %v742 = vadd.f32 %v608, %v741
        %v743 = vpop.f32.mrf.mxu0
        %v744 = vadd.f32 %v608, %v743
        %745 = vmatprep.mubr.f32.mxu0 0.0
        %746 = vmatmul.mubr.f32.gmra.mxu0 %v640
        %v747 = vpop.f32.mrf.mxu0
        %v748 = vadd.f32 %v613, %v747
        %v749 = vpop.f32.mrf.mxu0
        %v750 = vadd.f32 %v613, %v749
        %751 = vmatprep.mubr.f32.mxu0 0.0
        %752 = vmatmul.mubr.f32.gmra.mxu0 %v643
        %v753 = vpop.f32.mrf.mxu0
        %v754 = vadd.f32 %v618, %v753
        %v755 = vpop.f32.mrf.mxu0
        %v756 = vadd.f32 %v618, %v755
        %757 = vdwg.mxu0
        %758 = vmatprep.subr.mxu0 0.0
        %759 = vmatpush1.msra.mxu0 0.0
        %760 = vmatprep.subr.mxu0 0.0
        %761 = vmatpush1.msra.mxu0 0.0
        %762 = vmatprep.subr.mxu0 0.0
        %763 = vmatpush1.msra.mxu0 0.0
        %764 = vmatprep.subr.mxu0 0.0
        %765 = vmatpush1.msra.mxu0 0.0
        %766 = vmatprep.subr.mxu0 0.0
        %767 = vmatpush1.msra.mxu0 0.0
        %768 = vmatprep.subr.mxu0 0.0
        %769 = vmatpush1.msra.mxu0 0.0
        %770 = vmatprep.subr.mxu0 0.0
        %771 = vmatpush1.msra.mxu0 0.0
        %772 = vmatprep.subr.mxu0 0.0
        %773 = vmatpush1.msra.mxu0 0.0
        %774 = vmatprep.subr.mxu0 0.0
        %775 = vmatpush1.msra.mxu0 0.0
        %776 = vmatprep.subr.mxu0 0.0
        %777 = vmatpush1.msra.mxu0 0.0
        %778 = vmatprep.subr.mxu0 0.0
        %779 = vmatpush1.msra.mxu0 0.0
        %780 = vmatprep.subr.mxu0 0.0
        %781 = vmatpush1.msra.mxu0 0.0
        %782 = vmatprep.subr.mxu0 0.0
        %783 = vmatpush1.msra.mxu0 0.0
        %784 = vmatprep.subr.mxu0 0.0
        %785 = vmatpush1.msra.mxu0 0.0
        %786 = vmatprep.subr.mxu0 %v563
        %787 = vmatpush1.msra.mxu0 %v562
        %788 = vmatprep.subr.mxu0 %v559
        %789 = vmatpush1.msra.mxu0 %v558
        %790 = vmatprep.subr.mxu0 0.0
        %791 = vmatpush2.msra.mxu0 0.0
        %792 = vmatprep.subr.mxu0 0.0
        %793 = vmatpush2.msra.mxu0 0.0
        %794 = vmatprep.subr.mxu0 0.0
        %795 = vmatpush2.msra.mxu0 0.0
        %796 = vmatprep.subr.mxu0 0.0
        %797 = vmatpush2.msra.mxu0 0.0
        %798 = vmatprep.subr.mxu0 0.0
        %799 = vmatpush2.msra.mxu0 0.0
        %800 = vmatprep.subr.mxu0 0.0
        %801 = vmatpush2.msra.mxu0 0.0
        %802 = vmatprep.subr.mxu0 0.0
        %803 = vmatpush2.msra.mxu0 0.0
        %804 = vmatprep.subr.mxu0 0.0
        %805 = vmatpush2.msra.mxu0 0.0
        %806 = vmatprep.subr.mxu0 0.0
        %807 = vmatpush2.msra.mxu0 0.0
        %808 = vmatprep.subr.mxu0 0.0
        %809 = vmatpush2.msra.mxu0 0.0
        %810 = vmatprep.subr.mxu0 0.0
        %811 = vmatpush2.msra.mxu0 0.0
        %812 = vmatprep.subr.mxu0 0.0
        %813 = vmatpush2.msra.mxu0 0.0
        %814 = vmatprep.subr.mxu0 0.0
        %815 = vmatpush2.msra.mxu0 0.0
        %816 = vmatprep.subr.mxu0 0.0
        %817 = vmatpush2.msra.mxu0 0.0
        %818 = vmatprep.subr.mxu0 0.0
        %819 = vmatpush2.msra.mxu0 0.0
        %820 = vmatprep.subr.mxu0 0.0
        %821 = vmatpush2.msra.mxu0 0.0
        %822 = vmatprep.mubr.f32.mxu0 0.0
        %823 = vmatmul.mubr.f32.gmra.mxu0 %v622
        %v824 = vpop.f32.mrf.mxu0
        %v825 = vadd.f32 %v583, %v824
        %v826 = vpop.f32.mrf.mxu0
        %v827 = vadd.f32 %v583, %v826
        %828 = vmatprep.mubr.f32.mxu0 0.0
        %829 = vmatmul.mubr.f32.gmra.mxu0 %v625
        %v830 = vpop.f32.mrf.mxu0
        %v831 = vadd.f32 %v588, %v830
        %v832 = vpop.f32.mrf.mxu0
        %v833 = vadd.f32 %v588, %v832
        %834 = vmatprep.mubr.f32.mxu0 0.0
        %835 = vmatmul.mubr.f32.gmra.mxu0 %v628
        %v836 = vpop.f32.mrf.mxu0
        %v837 = vadd.f32 %v593, %v836
        %v838 = vpop.f32.mrf.mxu0
        %v839 = vadd.f32 %v593, %v838
        %840 = vmatprep.mubr.f32.mxu0 0.0
        %841 = vmatmul.mubr.f32.gmra.mxu0 %v631
        %v842 = vpop.f32.mrf.mxu0
        %v843 = vadd.f32 %v598, %v842
        %v844 = vpop.f32.mrf.mxu0
        %v845 = vadd.f32 %v598, %v844
        %846 = vmatprep.mubr.f32.mxu0 0.0
        %847 = vmatmul.mubr.f32.gmra.mxu0 %v634
        %v848 = vpop.f32.mrf.mxu0
        %v849 = vadd.f32 %v603, %v848
        %v850 = vpop.f32.mrf.mxu0
        %v851 = vadd.f32 %v603, %v850
        %852 = vmatprep.mubr.f32.mxu0 0.0
        %853 = vmatmul.mubr.f32.gmra.mxu0 %v637
        %v854 = vpop.f32.mrf.mxu0
        %v855 = vadd.f32 %v608, %v854
        %v856 = vpop.f32.mrf.mxu0
        %v857 = vadd.f32 %v608, %v856
        %858 = vmatprep.mubr.f32.mxu0 0.0
        %859 = vmatmul.mubr.f32.gmra.mxu0 %v640
        %v860 = vpop.f32.mrf.mxu0
        %v861 = vadd.f32 %v613, %v860
        %v862 = vpop.f32.mrf.mxu0
        %v863 = vadd.f32 %v613, %v862
        %864 = vmatprep.mubr.f32.mxu0 0.0
        %865 = vmatmul.mubr.f32.gmra.mxu0 %v643
        %v866 = vpop.f32.mrf.mxu0
        %v867 = vadd.f32 %v618, %v866
        %v868 = vpop.f32.mrf.mxu0
        %v869 = vadd.f32 %v618, %v868
        %870 = vdwg.mxu0
        %vm871 = vcmp.gt.f32.partialorder %v736, 0.0
        %vm872 = vcmp.gt.f32.partialorder %v738, 0.0
        %vm873 = vcmp.gt.f32.partialorder %v849, 0.0
        %vm874 = vcmp.gt.f32.partialorder %v851, 0.0
        %vm875 = vcmp.gt.f32.partialorder %v742, 0.0
        %vm876 = vcmp.gt.f32.partialorder %v744, 0.0
        %vm877 = vcmp.gt.f32.partialorder %v855, 0.0
        %vm878 = vcmp.gt.f32.partialorder %v857, 0.0
        %vm879 = vcmp.gt.f32.partialorder %v748, 0.0
        %vm880 = vcmp.gt.f32.partialorder %v750, 0.0
        %vm881 = vcmp.gt.f32.partialorder %v861, 0.0
        %vm882 = vcmp.gt.f32.partialorder %v863, 0.0
        %vm883 = vcmp.gt.f32.partialorder %v754, 0.0
        %vm884 = vcmp.gt.f32.partialorder %v756, 0.0
        %vm885 = vcmp.gt.f32.partialorder %v867, 0.0
        %vm886 = vcmp.gt.f32.partialorder %v869, 0.0
        %v887 = vmin.f32 %v736, 0.0
        %v888 = vmin.f32 %v738, 0.0
        %v889 = vmin.f32 %v849, 0.0
        %v890 = vmin.f32 %v851, 0.0
        %v891 = vmin.f32 %v742, 0.0
        %v892 = vmin.f32 %v744, 0.0
        %v893 = vmin.f32 %v855, 0.0
        %v894 = vmin.f32 %v857, 0.0
        %v895 = vmin.f32 %v748, 0.0
        %v896 = vmin.f32 %v750, 0.0
        %v897 = vmin.f32 %v861, 0.0
        %v898 = vmin.f32 %v863, 0.0
        %v899 = vmin.f32 %v754, 0.0
        %v900 = vmin.f32 %v756, 0.0
        %v901 = vmin.f32 %v867, 0.0
        %v902 = vmin.f32 %v869, 0.0
        %v903 = vmul.f32 %v887, 1.442695
        %v904 = vpow.pop %v903
        %v905 = vmul.f32 %v888, 1.442695
        %v906 = vpow.pop %v905
        %v907 = vmul.f32 %v889, 1.442695
        %v908 = vpow.pop %v907
        %v909 = vmul.f32 %v890, 1.442695
        %v910 = vpow.pop %v909
        %v911 = vmul.f32 %v891, 1.442695
        %v912 = vpow.pop %v911
        %v913 = vmul.f32 %v892, 1.442695
        %v914 = vpow.pop %v913
        %v915 = vmul.f32 %v893, 1.442695
        %v916 = vpow.pop %v915
        %v917 = vmul.f32 %v894, 1.442695
        %v918 = vpow.pop %v917
        %v919 = vmul.f32 %v895, 1.442695
        %v920 = vpow.pop %v919
        %v921 = vmul.f32 %v896, 1.442695
        %v922 = vpow.pop %v921
        %v923 = vmul.f32 %v897, 1.442695
        %v924 = vpow.pop %v923
        %v925 = vmul.f32 %v898, 1.442695
        %v926 = vpow.pop %v925
        %v927 = vmul.f32 %v899, 1.442695
        %v928 = vpow.pop %v927
        %v929 = vmul.f32 %v900, 1.442695
        %v930 = vpow.pop %v929
        %v931 = vmul.f32 %v901, 1.442695
        %v932 = vpow.pop %v931
        %v933 = vmul.f32 %v902, 1.442695
        %v934 = vpow.pop %v933
        %v935 = vsub.f32 %v904, 1.0
        %v936 = vsub.f32 %v906, 1.0
        %v937 = vsub.f32 %v908, 1.0
        %v938 = vsub.f32 %v910, 1.0
        %v939 = vsub.f32 %v912, 1.0
        %v940 = vsub.f32 %v914, 1.0
        %v941 = vsub.f32 %v916, 1.0
        %v942 = vsub.f32 %v918, 1.0
        %v943 = vsub.f32 %v920, 1.0
        %v944 = vsub.f32 %v922, 1.0
        %v945 = vsub.f32 %v924, 1.0
        %v946 = vsub.f32 %v926, 1.0
        %v947 = vsub.f32 %v928, 1.0
        %v948 = vsub.f32 %v930, 1.0
        %v949 = vsub.f32 %v932, 1.0
        %v950 = vsub.f32 %v934, 1.0
        %v951 = vsel %vm871, %v736, %v935
        %v952 = vsel %vm872, %v738, %v936
        %v953 = vsel %vm873, %v849, %v937
        %v954 = vsel %vm874, %v851, %v938
        %v955 = vsel %vm875, %v742, %v939
        %v956 = vsel %vm876, %v744, %v940
        %v957 = vsel %vm877, %v855, %v941
        %v958 = vsel %vm878, %v857, %v942
        %v959 = vsel %vm879, %v748, %v943
        %v960 = vsel %vm880, %v750, %v944
        %v961 = vsel %vm881, %v861, %v945
        %v962 = vsel %vm882, %v863, %v946
        %v963 = vsel %vm883, %v754, %v947
        %v964 = vsel %vm884, %v756, %v948
        %v965 = vsel %vm885, %v867, %v949
        %v966 = vsel %vm886, %v869, %v950
        %v967 = vld [vmem:[%s3] sm:$0xff]
        %v968 = vld [vmem:[%s3 + $0x8] sm:$0xff]
        %v969 = vld [vmem:[%s3 + $0x10] sm:$0xff]
        %v970 = vld [vmem:[%s3 + $0x18] sm:$0xff]
        %v971 = vld [vmem:[%s4] sm:$0xff]
        %v972 = vld [vmem:[%s4 + $0x8] sm:$0xff]
        %v973 = vld [vmem:[%s4 + $0x10] sm:$0xff]
        %v974 = vld [vmem:[%s4 + $0x18] sm:$0xff]
        %976 = vset.pattern.permute.xlu0 0
        %977 = vperm.xlu0 %976, %v971
        %v978 = vpop.permute.xlu0 %977
        %981 = vset.pattern.permute.xlu0 0
        %982 = vperm.xlu0 %981, %v972
        %v983 = vpop.permute.xlu0 %982
        %986 = vset.pattern.permute.xlu0 0
        %987 = vperm.xlu0 %986, %v973
        %v988 = vpop.permute.xlu0 %987
        %991 = vset.pattern.permute.xlu0 0
        %992 = vperm.xlu0 %991, %v974
        %v993 = vpop.permute.xlu0 %992
        %vm995 = vcmask 261120
        %v997 = vsel %vm995, %v967, 0
        %v1000 = vsel %vm995, %v968, 0
        %v1003 = vsel %vm995, %v969, 0
        %v1006 = vsel %vm995, %v970, 0
        %1008 = vmatprep.subr.mxu0 0.0
        %1009 = vmatpush1.msra.mxu0 0.0
        %1010 = vmatprep.subr.mxu0 0.0
        %1011 = vmatpush1.msra.mxu0 0.0
        %1012 = vmatprep.subr.mxu0 0.0
        %1013 = vmatpush1.msra.mxu0 0.0
        %1014 = vmatprep.subr.mxu0 0.0
        %1015 = vmatpush1.msra.mxu0 0.0
        %1016 = vmatprep.subr.mxu0 0.0
        %1017 = vmatpush1.msra.mxu0 0.0
        %1018 = vmatprep.subr.mxu0 0.0
        %1019 = vmatpush1.msra.mxu0 0.0
        %1020 = vmatprep.subr.mxu0 0.0
        %1021 = vmatpush1.msra.mxu0 0.0
        %1022 = vmatprep.subr.mxu0 0.0
        %1023 = vmatpush1.msra.mxu0 0.0
        %1024 = vmatprep.subr.mxu0 0.0
        %1025 = vmatpush1.msra.mxu0 0.0
        %1026 = vmatprep.subr.mxu0 0.0
        %1027 = vmatpush1.msra.mxu0 0.0
        %1028 = vmatprep.subr.mxu0 0.0
        %1029 = vmatpush1.msra.mxu0 0.0
        %1030 = vmatprep.subr.mxu0 0.0
        %1031 = vmatpush1.msra.mxu0 0.0
        %1032 = vmatprep.subr.mxu0 %v964
        %1033 = vmatpush1.msra.mxu0 %v963
        %1034 = vmatprep.subr.mxu0 %v960
        %1035 = vmatpush1.msra.mxu0 %v959
        %1036 = vmatprep.subr.mxu0 %v956
        %1037 = vmatpush1.msra.mxu0 %v955
        %1038 = vmatprep.subr.mxu0 %v952
        %1039 = vmatpush1.msra.mxu0 %v951
        %1040 = vmatprep.subr.mxu0 0.0
        %1041 = vmatpush2.msra.mxu0 0.0
        %1042 = vmatprep.subr.mxu0 0.0
        %1043 = vmatpush2.msra.mxu0 0.0
        %1044 = vmatprep.subr.mxu0 0.0
        %1045 = vmatpush2.msra.mxu0 0.0
        %1046 = vmatprep.subr.mxu0 0.0
        %1047 = vmatpush2.msra.mxu0 0.0
        %1048 = vmatprep.subr.mxu0 0.0
        %1049 = vmatpush2.msra.mxu0 0.0
        %1050 = vmatprep.subr.mxu0 0.0
        %1051 = vmatpush2.msra.mxu0 0.0
        %1052 = vmatprep.subr.mxu0 0.0
        %1053 = vmatpush2.msra.mxu0 0.0
        %1054 = vmatprep.subr.mxu0 0.0
        %1055 = vmatpush2.msra.mxu0 0.0
        %1056 = vmatprep.subr.mxu0 0.0
        %1057 = vmatpush2.msra.mxu0 0.0
        %1058 = vmatprep.subr.mxu0 0.0
        %1059 = vmatpush2.msra.mxu0 0.0
        %1060 = vmatprep.subr.mxu0 0.0
        %1061 = vmatpush2.msra.mxu0 0.0
        %1062 = vmatprep.subr.mxu0 0.0
        %1063 = vmatpush2.msra.mxu0 0.0
        %1064 = vmatprep.subr.mxu0 0.0
        %1065 = vmatpush2.msra.mxu0 0.0
        %1066 = vmatprep.subr.mxu0 0.0
        %1067 = vmatpush2.msra.mxu0 0.0
        %1068 = vmatprep.subr.mxu0 0.0
        %1069 = vmatpush2.msra.mxu0 0.0
        %1070 = vmatprep.subr.mxu0 0.0
        %1071 = vmatpush2.msra.mxu0 0.0
        %1072 = vmatprep.mubr.f32.mxu0 0.0
        %1073 = vmatmul.mubr.f32.gmra.mxu0 %v997
        %v1074 = vpop.f32.mrf.mxu0
        %v1075 = vadd.f32 %v978, %v1074
        %v1076 = vpop.f32.mrf.mxu0
        %v1077 = vadd.f32 %v978, %v1076
        %1078 = vmatprep.mubr.f32.mxu0 0.0
        %1079 = vmatmul.mubr.f32.gmra.mxu0 %v1000
        %v1080 = vpop.f32.mrf.mxu0
        %v1081 = vadd.f32 %v983, %v1080
        %v1082 = vpop.f32.mrf.mxu0
        %v1083 = vadd.f32 %v983, %v1082
        %1084 = vmatprep.mubr.f32.mxu0 0.0
        %1085 = vmatmul.mubr.f32.gmra.mxu0 %v1003
        %v1086 = vpop.f32.mrf.mxu0
        %v1087 = vadd.f32 %v988, %v1086
        %v1088 = vpop.f32.mrf.mxu0
        %v1089 = vadd.f32 %v988, %v1088
        %1090 = vmatprep.mubr.f32.mxu0 0.0
        %1091 = vmatmul.mubr.f32.gmra.mxu0 %v1006
        %v1092 = vpop.f32.mrf.mxu0
        %v1093 = vadd.f32 %v993, %v1092
        %v1094 = vpop.f32.mrf.mxu0
        %v1095 = vadd.f32 %v993, %v1094
        %1096 = vdwg.mxu0
        %1097 = vmatprep.subr.mxu0 0.0
        %1098 = vmatpush1.msra.mxu0 0.0
        %1099 = vmatprep.subr.mxu0 0.0
        %1100 = vmatpush1.msra.mxu0 0.0
        %1101 = vmatprep.subr.mxu0 0.0
        %1102 = vmatpush1.msra.mxu0 0.0
        %1103 = vmatprep.subr.mxu0 0.0
        %1104 = vmatpush1.msra.mxu0 0.0
        %1105 = vmatprep.subr.mxu0 0.0
        %1106 = vmatpush1.msra.mxu0 0.0
        %1107 = vmatprep.subr.mxu0 0.0
        %1108 = vmatpush1.msra.mxu0 0.0
        %1109 = vmatprep.subr.mxu0 0.0
        %1110 = vmatpush1.msra.mxu0 0.0
        %1111 = vmatprep.subr.mxu0 0.0
        %1112 = vmatpush1.msra.mxu0 0.0
        %1113 = vmatprep.subr.mxu0 0.0
        %1114 = vmatpush1.msra.mxu0 0.0
        %1115 = vmatprep.subr.mxu0 0.0
        %1116 = vmatpush1.msra.mxu0 0.0
        %1117 = vmatprep.subr.mxu0 0.0
        %1118 = vmatpush1.msra.mxu0 0.0
        %1119 = vmatprep.subr.mxu0 0.0
        %1120 = vmatpush1.msra.mxu0 0.0
        %1121 = vmatprep.subr.mxu0 %v966
        %1122 = vmatpush1.msra.mxu0 %v965
        %1123 = vmatprep.subr.mxu0 %v962
        %1124 = vmatpush1.msra.mxu0 %v961
        %1125 = vmatprep.subr.mxu0 %v958
        %1126 = vmatpush1.msra.mxu0 %v957
        %1127 = vmatprep.subr.mxu0 %v954
        %1128 = vmatpush1.msra.mxu0 %v953
        %1129 = vmatprep.subr.mxu0 0.0
        %1130 = vmatpush2.msra.mxu0 0.0
        %1131 = vmatprep.subr.mxu0 0.0
        %1132 = vmatpush2.msra.mxu0 0.0
        %1133 = vmatprep.subr.mxu0 0.0
        %1134 = vmatpush2.msra.mxu0 0.0
        %1135 = vmatprep.subr.mxu0 0.0
        %1136 = vmatpush2.msra.mxu0 0.0
        %1137 = vmatprep.subr.mxu0 0.0
        %1138 = vmatpush2.msra.mxu0 0.0
        %1139 = vmatprep.subr.mxu0 0.0
        %1140 = vmatpush2.msra.mxu0 0.0
        %1141 = vmatprep.subr.mxu0 0.0
        %1142 = vmatpush2.msra.mxu0 0.0
        %1143 = vmatprep.subr.mxu0 0.0
        %1144 = vmatpush2.msra.mxu0 0.0
        %1145 = vmatprep.subr.mxu0 0.0
        %1146 = vmatpush2.msra.mxu0 0.0
        %1147 = vmatprep.subr.mxu0 0.0
        %1148 = vmatpush2.msra.mxu0 0.0
        %1149 = vmatprep.subr.mxu0 0.0
        %1150 = vmatpush2.msra.mxu0 0.0
        %1151 = vmatprep.subr.mxu0 0.0
        %1152 = vmatpush2.msra.mxu0 0.0
        %1153 = vmatprep.subr.mxu0 0.0
        %1154 = vmatpush2.msra.mxu0 0.0
        %1155 = vmatprep.subr.mxu0 0.0
        %1156 = vmatpush2.msra.mxu0 0.0
        %1157 = vmatprep.subr.mxu0 0.0
        %1158 = vmatpush2.msra.mxu0 0.0
        %1159 = vmatprep.subr.mxu0 0.0
        %1160 = vmatpush2.msra.mxu0 0.0
        %1161 = vmatprep.mubr.f32.mxu0 0.0
        %1162 = vmatmul.mubr.f32.gmra.mxu0 %v997
        %v1163 = vpop.f32.mrf.mxu0
        %v1164 = vadd.f32 %v978, %v1163
        %v1165 = vpop.f32.mrf.mxu0
        %v1166 = vadd.f32 %v978, %v1165
        %1167 = vmatprep.mubr.f32.mxu0 0.0
        %1168 = vmatmul.mubr.f32.gmra.mxu0 %v1000
        %v1169 = vpop.f32.mrf.mxu0
        %v1170 = vadd.f32 %v983, %v1169
        %v1171 = vpop.f32.mrf.mxu0
        %v1172 = vadd.f32 %v983, %v1171
        %1173 = vmatprep.mubr.f32.mxu0 0.0
        %1174 = vmatmul.mubr.f32.gmra.mxu0 %v1003
        %v1175 = vpop.f32.mrf.mxu0
        %v1176 = vadd.f32 %v988, %v1175
        %v1177 = vpop.f32.mrf.mxu0
        %v1178 = vadd.f32 %v988, %v1177
        %1179 = vmatprep.mubr.f32.mxu0 0.0
        %1180 = vmatmul.mubr.f32.gmra.mxu0 %v1006
        %v1181 = vpop.f32.mrf.mxu0
        %v1182 = vadd.f32 %v993, %v1181
        %v1183 = vpop.f32.mrf.mxu0
        %v1184 = vadd.f32 %v993, %v1183
        %1185 = vdwg.mxu0
        %vm1186 = vcmp.gt.f32.partialorder %v1075, 0.0
        %vm1187 = vcmp.gt.f32.partialorder %v1077, 0.0
        %vm1188 = vcmp.gt.f32.partialorder %v1164, 0.0
        %vm1189 = vcmp.gt.f32.partialorder %v1166, 0.0
        %vm1190 = vcmp.gt.f32.partialorder %v1081, 0.0
        %vm1191 = vcmp.gt.f32.partialorder %v1083, 0.0
        %vm1192 = vcmp.gt.f32.partialorder %v1170, 0.0
        %vm1193 = vcmp.gt.f32.partialorder %v1172, 0.0
        %vm1194 = vcmp.gt.f32.partialorder %v1087, 0.0
        %vm1195 = vcmp.gt.f32.partialorder %v1089, 0.0
        %vm1196 = vcmp.gt.f32.partialorder %v1176, 0.0
        %vm1197 = vcmp.gt.f32.partialorder %v1178, 0.0
        %vm1198 = vcmp.gt.f32.partialorder %v1093, 0.0
        %vm1199 = vcmp.gt.f32.partialorder %v1095, 0.0
        %vm1200 = vcmp.gt.f32.partialorder %v1182, 0.0
        %vm1201 = vcmp.gt.f32.partialorder %v1184, 0.0
        %v1202 = vmin.f32 %v1075, 0.0
        %v1203 = vmin.f32 %v1077, 0.0
        %v1204 = vmin.f32 %v1164, 0.0
        %v1205 = vmin.f32 %v1166, 0.0
        %v1206 = vmin.f32 %v1081, 0.0
        %v1207 = vmin.f32 %v1083, 0.0
        %v1208 = vmin.f32 %v1170, 0.0
        %v1209 = vmin.f32 %v1172, 0.0
        %v1210 = vmin.f32 %v1087, 0.0
        %v1211 = vmin.f32 %v1089, 0.0
        %v1212 = vmin.f32 %v1176, 0.0
        %v1213 = vmin.f32 %v1178, 0.0
        %v1214 = vmin.f32 %v1093, 0.0
        %v1215 = vmin.f32 %v1095, 0.0
        %v1216 = vmin.f32 %v1182, 0.0
        %v1217 = vmin.f32 %v1184, 0.0
        %v1218 = vmul.f32 %v1202, 1.442695
        %v1219 = vpow.pop %v1218
        %v1220 = vmul.f32 %v1203, 1.442695
        %v1221 = vpow.pop %v1220
        %v1222 = vmul.f32 %v1204, 1.442695
        %v1223 = vpow.pop %v1222
        %v1224 = vmul.f32 %v1205, 1.442695
        %v1225 = vpow.pop %v1224
        %v1226 = vmul.f32 %v1206, 1.442695
        %v1227 = vpow.pop %v1226
        %v1228 = vmul.f32 %v1207, 1.442695
        %v1229 = vpow.pop %v1228
        %v1230 = vmul.f32 %v1208, 1.442695
        %v1231 = vpow.pop %v1230
        %v1232 = vmul.f32 %v1209, 1.442695
        %v1233 = vpow.pop %v1232
        %v1234 = vmul.f32 %v1210, 1.442695
        %v1235 = vpow.pop %v1234
        %v1236 = vmul.f32 %v1211, 1.442695
        %v1237 = vpow.pop %v1236
        %v1238 = vmul.f32 %v1212, 1.442695
        %v1239 = vpow.pop %v1238
        %v1240 = vmul.f32 %v1213, 1.442695
        %v1241 = vpow.pop %v1240
        %v1242 = vmul.f32 %v1214, 1.442695
        %v1243 = vpow.pop %v1242
        %v1244 = vmul.f32 %v1215, 1.442695
        %v1245 = vpow.pop %v1244
        %v1246 = vmul.f32 %v1216, 1.442695
        %v1247 = vpow.pop %v1246
        %v1248 = vmul.f32 %v1217, 1.442695
        %v1249 = vpow.pop %v1248
        %v1250 = vsub.f32 %v1219, 1.0
        %v1251 = vsub.f32 %v1221, 1.0
        %v1252 = vsub.f32 %v1223, 1.0
        %v1253 = vsub.f32 %v1225, 1.0
        %v1254 = vsub.f32 %v1227, 1.0
        %v1255 = vsub.f32 %v1229, 1.0
        %v1256 = vsub.f32 %v1231, 1.0
        %v1257 = vsub.f32 %v1233, 1.0
        %v1258 = vsub.f32 %v1235, 1.0
        %v1259 = vsub.f32 %v1237, 1.0
        %v1260 = vsub.f32 %v1239, 1.0
        %v1261 = vsub.f32 %v1241, 1.0
        %v1262 = vsub.f32 %v1243, 1.0
        %v1263 = vsub.f32 %v1245, 1.0
        %v1264 = vsub.f32 %v1247, 1.0
        %v1265 = vsub.f32 %v1249, 1.0
        %v1266 = vsel %vm1186, %v1075, %v1250
        %v1267 = vsel %vm1187, %v1077, %v1251
        %v1268 = vsel %vm1188, %v1164, %v1252
        %v1269 = vsel %vm1189, %v1166, %v1253
        %v1270 = vsel %vm1190, %v1081, %v1254
        %v1271 = vsel %vm1191, %v1083, %v1255
        %v1272 = vsel %vm1192, %v1170, %v1256
        %v1273 = vsel %vm1193, %v1172, %v1257
        %v1274 = vsel %vm1194, %v1087, %v1258
        %v1275 = vsel %vm1195, %v1089, %v1259
        %v1276 = vsel %vm1196, %v1176, %v1260
        %v1277 = vsel %vm1197, %v1178, %v1261
        %v1278 = vsel %vm1198, %v1093, %v1262
        %v1279 = vsel %vm1199, %v1095, %v1263
        %v1280 = vsel %vm1200, %v1182, %v1264
        %v1281 = vsel %vm1201, %v1184, %v1265
        %v1282 = vld [vmem:[%s5] sm:$0xff]
        %v1283 = vld [vmem:[%s5 + $0x8] sm:$0xff]
        %v1284 = vld [vmem:[%s5 + $0x10] sm:$0xff]
        %v1285 = vld [vmem:[%s5 + $0x18] sm:$0xff]
        %v1287 = vsel %vm995, %v1282, 0
        %v1290 = vsel %vm995, %v1283, 0
        %v1293 = vsel %vm995, %v1284, 0
        %v1296 = vsel %vm995, %v1285, 0
        %1298 = vmatprep.subr.mxu0 0.0
        %1299 = vmatpush1.msra.mxu0 0.0
        %1300 = vmatprep.subr.mxu0 0.0
        %1301 = vmatpush1.msra.mxu0 0.0
        %1302 = vmatprep.subr.mxu0 0.0
        %1303 = vmatpush1.msra.mxu0 0.0
        %1304 = vmatprep.subr.mxu0 0.0
        %1305 = vmatpush1.msra.mxu0 0.0
        %1306 = vmatprep.subr.mxu0 0.0
        %1307 = vmatpush1.msra.mxu0 0.0
        %1308 = vmatprep.subr.mxu0 0.0
        %1309 = vmatpush1.msra.mxu0 0.0
        %1310 = vmatprep.subr.mxu0 0.0
        %1311 = vmatpush1.msra.mxu0 0.0
        %1312 = vmatprep.subr.mxu0 0.0
        %1313 = vmatpush1.msra.mxu0 0.0
        %1314 = vmatprep.subr.mxu0 0.0
        %1315 = vmatpush1.msra.mxu0 0.0
        %1316 = vmatprep.subr.mxu0 0.0
        %1317 = vmatpush1.msra.mxu0 0.0
        %1318 = vmatprep.subr.mxu0 0.0
        %1319 = vmatpush1.msra.mxu0 0.0
        %1320 = vmatprep.subr.mxu0 0.0
        %1321 = vmatpush1.msra.mxu0 0.0
        %1322 = vmatprep.subr.mxu0 %v1279
        %1323 = vmatpush1.msra.mxu0 %v1278
        %1324 = vmatprep.subr.mxu0 %v1275
        %1325 = vmatpush1.msra.mxu0 %v1274
        %1326 = vmatprep.subr.mxu0 %v1271
        %1327 = vmatpush1.msra.mxu0 %v1270
        %1328 = vmatprep.subr.mxu0 %v1267
        %1329 = vmatpush1.msra.mxu0 %v1266
        %1330 = vmatprep.subr.mxu0 0.0
        %1331 = vmatpush2.msra.mxu0 0.0
        %1332 = vmatprep.subr.mxu0 0.0
        %1333 = vmatpush2.msra.mxu0 0.0
        %1334 = vmatprep.subr.mxu0 0.0
        %1335 = vmatpush2.msra.mxu0 0.0
        %1336 = vmatprep.subr.mxu0 0.0
        %1337 = vmatpush2.msra.mxu0 0.0
        %1338 = vmatprep.subr.mxu0 0.0
        %1339 = vmatpush2.msra.mxu0 0.0
        %1340 = vmatprep.subr.mxu0 0.0
        %1341 = vmatpush2.msra.mxu0 0.0
        %1342 = vmatprep.subr.mxu0 0.0
        %1343 = vmatpush2.msra.mxu0 0.0
        %1344 = vmatprep.subr.mxu0 0.0
        %1345 = vmatpush2.msra.mxu0 0.0
        %1346 = vmatprep.subr.mxu0 0.0
        %1347 = vmatpush2.msra.mxu0 0.0
        %1348 = vmatprep.subr.mxu0 0.0
        %1349 = vmatpush2.msra.mxu0 0.0
        %1350 = vmatprep.subr.mxu0 0.0
        %1351 = vmatpush2.msra.mxu0 0.0
        %1352 = vmatprep.subr.mxu0 0.0
        %1353 = vmatpush2.msra.mxu0 0.0
        %1354 = vmatprep.subr.mxu0 0.0
        %1355 = vmatpush2.msra.mxu0 0.0
        %1356 = vmatprep.subr.mxu0 0.0
        %1357 = vmatpush2.msra.mxu0 0.0
        %1358 = vmatprep.subr.mxu0 0.0
        %1359 = vmatpush2.msra.mxu0 0.0
        %1360 = vmatprep.subr.mxu0 0.0
        %1361 = vmatpush2.msra.mxu0 0.0
        %1362 = vmatprep.mubr.f32.mxu0 0.0
        %1363 = vmatmul.mubr.f32.gmra.mxu0 %v1287
        %v1364 = vpop.f32.mrf.mxu0
        %v1365 = vadd.f32 0.0, %v1364
        %v1366 = vpop.f32.mrf.mxu0
        %v1367 = vadd.f32 0.0, %v1366
        %1368 = vmatprep.mubr.f32.mxu0 0.0
        %1369 = vmatmul.mubr.f32.gmra.mxu0 %v1290
        %v1370 = vpop.f32.mrf.mxu0
        %v1371 = vadd.f32 0.0, %v1370
        %v1372 = vpop.f32.mrf.mxu0
        %v1373 = vadd.f32 0.0, %v1372
        %1374 = vmatprep.mubr.f32.mxu0 0.0
        %1375 = vmatmul.mubr.f32.gmra.mxu0 %v1293
        %v1376 = vpop.f32.mrf.mxu0
        %v1377 = vadd.f32 0.0, %v1376
        %v1378 = vpop.f32.mrf.mxu0
        %v1379 = vadd.f32 0.0, %v1378
        %1380 = vmatprep.mubr.f32.mxu0 0.0
        %1381 = vmatmul.mubr.f32.gmra.mxu0 %v1296
        %v1382 = vpop.f32.mrf.mxu0
        %v1383 = vadd.f32 0.0, %v1382
        %v1384 = vpop.f32.mrf.mxu0
        %v1385 = vadd.f32 0.0, %v1384
        %1386 = vdwg.mxu0
        %1387 = vmatprep.subr.mxu0 0.0
        %1388 = vmatpush1.msra.mxu0 0.0
        %1389 = vmatprep.subr.mxu0 0.0
        %1390 = vmatpush1.msra.mxu0 0.0
        %1391 = vmatprep.subr.mxu0 0.0
        %1392 = vmatpush1.msra.mxu0 0.0
        %1393 = vmatprep.subr.mxu0 0.0
        %1394 = vmatpush1.msra.mxu0 0.0
        %1395 = vmatprep.subr.mxu0 0.0
        %1396 = vmatpush1.msra.mxu0 0.0
        %1397 = vmatprep.subr.mxu0 0.0
        %1398 = vmatpush1.msra.mxu0 0.0
        %1399 = vmatprep.subr.mxu0 0.0
        %1400 = vmatpush1.msra.mxu0 0.0
        %1401 = vmatprep.subr.mxu0 0.0
        %1402 = vmatpush1.msra.mxu0 0.0
        %1403 = vmatprep.subr.mxu0 0.0
        %1404 = vmatpush1.msra.mxu0 0.0
        %1405 = vmatprep.subr.mxu0 0.0
        %1406 = vmatpush1.msra.mxu0 0.0
        %1407 = vmatprep.subr.mxu0 0.0
        %1408 = vmatpush1.msra.mxu0 0.0
        %1409 = vmatprep.subr.mxu0 0.0
        %1410 = vmatpush1.msra.mxu0 0.0
        %1411 = vmatprep.subr.mxu0 %v1281
        %1412 = vmatpush1.msra.mxu0 %v1280
        %1413 = vmatprep.subr.mxu0 %v1277
        %1414 = vmatpush1.msra.mxu0 %v1276
        %1415 = vmatprep.subr.mxu0 %v1273
        %1416 = vmatpush1.msra.mxu0 %v1272
        %1417 = vmatprep.subr.mxu0 %v1269
        %1418 = vmatpush1.msra.mxu0 %v1268
        %1419 = vmatprep.subr.mxu0 0.0
        %1420 = vmatpush2.msra.mxu0 0.0
        %1421 = vmatprep.subr.mxu0 0.0
        %1422 = vmatpush2.msra.mxu0 0.0
        %1423 = vmatprep.subr.mxu0 0.0
        %1424 = vmatpush2.msra.mxu0 0.0
        %1425 = vmatprep.subr.mxu0 0.0
        %1426 = vmatpush2.msra.mxu0 0.0
        %1427 = vmatprep.subr.mxu0 0.0
        %1428 = vmatpush2.msra.mxu0 0.0
        %1429 = vmatprep.subr.mxu0 0.0
        %1430 = vmatpush2.msra.mxu0 0.0
        %1431 = vmatprep.subr.mxu0 0.0
        %1432 = vmatpush2.msra.mxu0 0.0
        %1433 = vmatprep.subr.mxu0 0.0
        %1434 = vmatpush2.msra.mxu0 0.0
        %1435 = vmatprep.subr.mxu0 0.0
        %1436 = vmatpush2.msra.mxu0 0.0
        %1437 = vmatprep.subr.mxu0 0.0
        %1438 = vmatpush2.msra.mxu0 0.0
        %1439 = vmatprep.subr.mxu0 0.0
        %1440 = vmatpush2.msra.mxu0 0.0
        %1441 = vmatprep.subr.mxu0 0.0
        %1442 = vmatpush2.msra.mxu0 0.0
        %1443 = vmatprep.subr.mxu0 0.0
        %1444 = vmatpush2.msra.mxu0 0.0
        %1445 = vmatprep.subr.mxu0 0.0
        %1446 = vmatpush2.msra.mxu0 0.0
        %1447 = vmatprep.subr.mxu0 0.0
        %1448 = vmatpush2.msra.mxu0 0.0
        %1449 = vmatprep.subr.mxu0 0.0
        %1450 = vmatpush2.msra.mxu0 0.0
        %1451 = vmatprep.mubr.f32.mxu0 0.0
        %1452 = vmatmul.mubr.f32.gmra.mxu0 %v1287
        %v1453 = vpop.f32.mrf.mxu0
        %v1454 = vadd.f32 0.0, %v1453
        %v1455 = vpop.f32.mrf.mxu0
        %v1456 = vadd.f32 0.0, %v1455
        %1457 = vmatprep.mubr.f32.mxu0 0.0
        %1458 = vmatmul.mubr.f32.gmra.mxu0 %v1290
        %v1459 = vpop.f32.mrf.mxu0
        %v1460 = vadd.f32 0.0, %v1459
        %v1461 = vpop.f32.mrf.mxu0
        %v1462 = vadd.f32 0.0, %v1461
        %1463 = vmatprep.mubr.f32.mxu0 0.0
        %1464 = vmatmul.mubr.f32.gmra.mxu0 %v1293
        %v1465 = vpop.f32.mrf.mxu0
        %v1466 = vadd.f32 0.0, %v1465
        %v1467 = vpop.f32.mrf.mxu0
        %v1468 = vadd.f32 0.0, %v1467
        %1469 = vmatprep.mubr.f32.mxu0 0.0
        %1470 = vmatmul.mubr.f32.gmra.mxu0 %v1296
        %v1471 = vpop.f32.mrf.mxu0
        %v1472 = vadd.f32 0.0, %v1471
        %v1473 = vpop.f32.mrf.mxu0
        %v1474 = vadd.f32 0.0, %v1473
        %1475 = vdwg.mxu0
        %v1476 = vadd.f32 %v712, %v1365
        %v1477 = vadd.f32 %v714, %v1367
        %v1478 = vadd.f32 %v825, %v1454
        %v1479 = vadd.f32 %v827, %v1456
        %v1480 = vadd.f32 %v718, %v1371
        %v1481 = vadd.f32 %v720, %v1373
        %v1482 = vadd.f32 %v831, %v1460
        %v1483 = vadd.f32 %v833, %v1462
        %v1484 = vadd.f32 %v724, %v1377
        %v1485 = vadd.f32 %v726, %v1379
        %v1486 = vadd.f32 %v837, %v1466
        %v1487 = vadd.f32 %v839, %v1468
        %v1488 = vadd.f32 %v730, %v1383
        %v1489 = vadd.f32 %v732, %v1385
        %v1490 = vadd.f32 %v843, %v1472
        %v1491 = vadd.f32 %v845, %v1474
        %v1492 = vld [vmem:[%s6] sm:$0xff]
        %v1493 = vld [vmem:[%s6 + $0x8] sm:$0xff]
        %v1494 = vld [vmem:[%s6 + $0x10] sm:$0xff]
        %v1495 = vld [vmem:[%s6 + $0x18] sm:$0xff]
        %v1496 = vld [vmem:[%s6 + $0x20] sm:$0xff]
        %v1497 = vld [vmem:[%s6 + $0x28] sm:$0xff]
        %v1498 = vld [vmem:[%s6 + $0x30] sm:$0xff]
        %v1499 = vld [vmem:[%s6 + $0x38] sm:$0xff]
        %v1500 = vld [vmem:[%s7] sm:$0xff]
        %v1501 = vld [vmem:[%s7 + $0x8] sm:$0xff]
        %v1502 = vld [vmem:[%s7 + $0x10] sm:$0xff]
        %v1503 = vld [vmem:[%s7 + $0x18] sm:$0xff]
        %v1504 = vld [vmem:[%s7 + $0x20] sm:$0xff]
        %v1505 = vld [vmem:[%s7 + $0x28] sm:$0xff]
        %v1506 = vld [vmem:[%s7 + $0x30] sm:$0xff]
        %v1507 = vld [vmem:[%s7 + $0x38] sm:$0xff]
        %1509 = vset.pattern.permute.xlu0 0
        %1510 = vperm.xlu0 %1509, %v1500
        %v1511 = vpop.permute.xlu0 %1510
        %1514 = vset.pattern.permute.xlu0 0
        %1515 = vperm.xlu0 %1514, %v1501
        %v1516 = vpop.permute.xlu0 %1515
        %1519 = vset.pattern.permute.xlu0 0
        %1520 = vperm.xlu0 %1519, %v1502
        %v1521 = vpop.permute.xlu0 %1520
        %1524 = vset.pattern.permute.xlu0 0
        %1525 = vperm.xlu0 %1524, %v1503
        %v1526 = vpop.permute.xlu0 %1525
        %1529 = vset.pattern.permute.xlu0 0
        %1530 = vperm.xlu0 %1529, %v1504
        %v1531 = vpop.permute.xlu0 %1530
        %1534 = vset.pattern.permute.xlu0 0
        %1535 = vperm.xlu0 %1534, %v1505
        %v1536 = vpop.permute.xlu0 %1535
        %1539 = vset.pattern.permute.xlu0 0
        %1540 = vperm.xlu0 %1539, %v1506
        %v1541 = vpop.permute.xlu0 %1540
        %1544 = vset.pattern.permute.xlu0 0
        %1545 = vperm.xlu0 %1544, %v1507
        %v1546 = vpop.permute.xlu0 %1545
        %v1549 = vsel %vm995, %v1492, 0
        %v1552 = vsel %vm995, %v1493, 0
        %v1555 = vsel %vm995, %v1494, 0
        %v1558 = vsel %vm995, %v1495, 0
        %v1561 = vsel %vm995, %v1496, 0
        %v1564 = vsel %vm995, %v1497, 0
        %v1567 = vsel %vm995, %v1498, 0
        %v1570 = vsel %vm995, %v1499, 0
        %1572 = vmatprep.subr.mxu0 0.0
        %1573 = vmatpush1.msra.mxu0 0.0
        %1574 = vmatprep.subr.mxu0 0.0
        %1575 = vmatpush1.msra.mxu0 0.0
        %1576 = vmatprep.subr.mxu0 0.0
        %1577 = vmatpush1.msra.mxu0 0.0
        %1578 = vmatprep.subr.mxu0 0.0
        %1579 = vmatpush1.msra.mxu0 0.0
        %1580 = vmatprep.subr.mxu0 0.0
        %1581 = vmatpush1.msra.mxu0 0.0
        %1582 = vmatprep.subr.mxu0 0.0
        %1583 = vmatpush1.msra.mxu0 0.0
        %1584 = vmatprep.subr.mxu0 0.0
        %1585 = vmatpush1.msra.mxu0 0.0
        %1586 = vmatprep.subr.mxu0 0.0
        %1587 = vmatpush1.msra.mxu0 0.0
        %1588 = vmatprep.subr.mxu0 0.0
        %1589 = vmatpush1.msra.mxu0 0.0
        %1590 = vmatprep.subr.mxu0 0.0
        %1591 = vmatpush1.msra.mxu0 0.0
        %1592 = vmatprep.subr.mxu0 0.0
        %1593 = vmatpush1.msra.mxu0 0.0
        %1594 = vmatprep.subr.mxu0 0.0
        %1595 = vmatpush1.msra.mxu0 0.0
        %1596 = vmatprep.subr.mxu0 %v1489
        %1597 = vmatpush1.msra.mxu0 %v1488
        %1598 = vmatprep.subr.mxu0 %v1485
        %1599 = vmatpush1.msra.mxu0 %v1484
        %1600 = vmatprep.subr.mxu0 %v1481
        %1601 = vmatpush1.msra.mxu0 %v1480
        %1602 = vmatprep.subr.mxu0 %v1477
        %1603 = vmatpush1.msra.mxu0 %v1476
        %1604 = vmatprep.subr.mxu0 0.0
        %1605 = vmatpush2.msra.mxu0 0.0
        %1606 = vmatprep.subr.mxu0 0.0
        %1607 = vmatpush2.msra.mxu0 0.0
        %1608 = vmatprep.subr.mxu0 0.0
        %1609 = vmatpush2.msra.mxu0 0.0
        %1610 = vmatprep.subr.mxu0 0.0
        %1611 = vmatpush2.msra.mxu0 0.0
        %1612 = vmatprep.subr.mxu0 0.0
        %1613 = vmatpush2.msra.mxu0 0.0
        %1614 = vmatprep.subr.mxu0 0.0
        %1615 = vmatpush2.msra.mxu0 0.0
        %1616 = vmatprep.subr.mxu0 0.0
        %1617 = vmatpush2.msra.mxu0 0.0
        %1618 = vmatprep.subr.mxu0 0.0
        %1619 = vmatpush2.msra.mxu0 0.0
        %1620 = vmatprep.subr.mxu0 0.0
        %1621 = vmatpush2.msra.mxu0 0.0
        %1622 = vmatprep.subr.mxu0 0.0
        %1623 = vmatpush2.msra.mxu0 0.0
        %1624 = vmatprep.subr.mxu0 0.0
        %1625 = vmatpush2.msra.mxu0 0.0
        %1626 = vmatprep.subr.mxu0 0.0
        %1627 = vmatpush2.msra.mxu0 0.0
        %1628 = vmatprep.subr.mxu0 0.0
        %1629 = vmatpush2.msra.mxu0 0.0
        %1630 = vmatprep.subr.mxu0 0.0
        %1631 = vmatpush2.msra.mxu0 0.0
        %1632 = vmatprep.subr.mxu0 0.0
        %1633 = vmatpush2.msra.mxu0 0.0
        %1634 = vmatprep.subr.mxu0 0.0
        %1635 = vmatpush2.msra.mxu0 0.0
        %1636 = vmatprep.mubr.f32.mxu0 0.0
        %1637 = vmatmul.mubr.f32.gmra.mxu0 %v1549
        %v1638 = vpop.f32.mrf.mxu0
        %v1639 = vadd.f32 %v1511, %v1638
        %v1640 = vpop.f32.mrf.mxu0
        %v1641 = vadd.f32 %v1511, %v1640
        %1642 = vmatprep.mubr.f32.mxu0 0.0
        %1643 = vmatmul.mubr.f32.gmra.mxu0 %v1552
        %v1644 = vpop.f32.mrf.mxu0
        %v1645 = vadd.f32 %v1516, %v1644
        %v1646 = vpop.f32.mrf.mxu0
        %v1647 = vadd.f32 %v1516, %v1646
        %1648 = vmatprep.mubr.f32.mxu0 0.0
        %1649 = vmatmul.mubr.f32.gmra.mxu0 %v1555
        %v1650 = vpop.f32.mrf.mxu0
        %v1651 = vadd.f32 %v1521, %v1650
        %v1652 = vpop.f32.mrf.mxu0
        %v1653 = vadd.f32 %v1521, %v1652
        %1654 = vmatprep.mubr.f32.mxu0 0.0
        %1655 = vmatmul.mubr.f32.gmra.mxu0 %v1558
        %v1656 = vpop.f32.mrf.mxu0
        %v1657 = vadd.f32 %v1526, %v1656
        %v1658 = vpop.f32.mrf.mxu0
        %v1659 = vadd.f32 %v1526, %v1658
        %1660 = vmatprep.mubr.f32.mxu0 0.0
        %1661 = vmatmul.mubr.f32.gmra.mxu0 %v1561
        %v1662 = vpop.f32.mrf.mxu0
        %v1663 = vadd.f32 %v1531, %v1662
        %v1664 = vpop.f32.mrf.mxu0
        %v1665 = vadd.f32 %v1531, %v1664
        %1666 = vmatprep.mubr.f32.mxu0 0.0
        %1667 = vmatmul.mubr.f32.gmra.mxu0 %v1564
        %v1668 = vpop.f32.mrf.mxu0
        %v1669 = vadd.f32 %v1536, %v1668
        %v1670 = vpop.f32.mrf.mxu0
        %v1671 = vadd.f32 %v1536, %v1670
        %1672 = vmatprep.mubr.f32.mxu0 0.0
        %1673 = vmatmul.mubr.f32.gmra.mxu0 %v1567
        %v1674 = vpop.f32.mrf.mxu0
        %v1675 = vadd.f32 %v1541, %v1674
        %v1676 = vpop.f32.mrf.mxu0
        %v1677 = vadd.f32 %v1541, %v1676
        %1678 = vmatprep.mubr.f32.mxu0 0.0
        %1679 = vmatmul.mubr.f32.gmra.mxu0 %v1570
        %v1680 = vpop.f32.mrf.mxu0
        %v1681 = vadd.f32 %v1546, %v1680
        %v1682 = vpop.f32.mrf.mxu0
        %v1683 = vadd.f32 %v1546, %v1682
        %1684 = vdwg.mxu0
        %1685 = vmatprep.subr.mxu0 0.0
        %1686 = vmatpush1.msra.mxu0 0.0
        %1687 = vmatprep.subr.mxu0 0.0
        %1688 = vmatpush1.msra.mxu0 0.0
        %1689 = vmatprep.subr.mxu0 0.0
        %1690 = vmatpush1.msra.mxu0 0.0
        %1691 = vmatprep.subr.mxu0 0.0
        %1692 = vmatpush1.msra.mxu0 0.0
        %1693 = vmatprep.subr.mxu0 0.0
        %1694 = vmatpush1.msra.mxu0 0.0
        %1695 = vmatprep.subr.mxu0 0.0
        %1696 = vmatpush1.msra.mxu0 0.0
        %1697 = vmatprep.subr.mxu0 0.0
        %1698 = vmatpush1.msra.mxu0 0.0
        %1699 = vmatprep.subr.mxu0 0.0
        %1700 = vmatpush1.msra.mxu0 0.0
        %1701 = vmatprep.subr.mxu0 0.0
        %1702 = vmatpush1.msra.mxu0 0.0
        %1703 = vmatprep.subr.mxu0 0.0
        %1704 = vmatpush1.msra.mxu0 0.0
        %1705 = vmatprep.subr.mxu0 0.0
        %1706 = vmatpush1.msra.mxu0 0.0
        %1707 = vmatprep.subr.mxu0 0.0
        %1708 = vmatpush1.msra.mxu0 0.0
        %1709 = vmatprep.subr.mxu0 %v1491
        %1710 = vmatpush1.msra.mxu0 %v1490
        %1711 = vmatprep.subr.mxu0 %v1487
        %1712 = vmatpush1.msra.mxu0 %v1486
        %1713 = vmatprep.subr.mxu0 %v1483
        %1714 = vmatpush1.msra.mxu0 %v1482
        %1715 = vmatprep.subr.mxu0 %v1479
        %1716 = vmatpush1.msra.mxu0 %v1478
        %1717 = vmatprep.subr.mxu0 0.0
        %1718 = vmatpush2.msra.mxu0 0.0
        %1719 = vmatprep.subr.mxu0 0.0
        %1720 = vmatpush2.msra.mxu0 0.0
        %1721 = vmatprep.subr.mxu0 0.0
        %1722 = vmatpush2.msra.mxu0 0.0
        %1723 = vmatprep.subr.mxu0 0.0
        %1724 = vmatpush2.msra.mxu0 0.0
        %1725 = vmatprep.subr.mxu0 0.0
        %1726 = vmatpush2.msra.mxu0 0.0
        %1727 = vmatprep.subr.mxu0 0.0
        %1728 = vmatpush2.msra.mxu0 0.0
        %1729 = vmatprep.subr.mxu0 0.0
        %1730 = vmatpush2.msra.mxu0 0.0
        %1731 = vmatprep.subr.mxu0 0.0
        %1732 = vmatpush2.msra.mxu0 0.0
        %1733 = vmatprep.subr.mxu0 0.0
        %1734 = vmatpush2.msra.mxu0 0.0
        %1735 = vmatprep.subr.mxu0 0.0
        %1736 = vmatpush2.msra.mxu0 0.0
        %1737 = vmatprep.subr.mxu0 0.0
        %1738 = vmatpush2.msra.mxu0 0.0
        %1739 = vmatprep.subr.mxu0 0.0
        %1740 = vmatpush2.msra.mxu0 0.0
        %1741 = vmatprep.subr.mxu0 0.0
        %1742 = vmatpush2.msra.mxu0 0.0
        %1743 = vmatprep.subr.mxu0 0.0
        %1744 = vmatpush2.msra.mxu0 0.0
        %1745 = vmatprep.subr.mxu0 0.0
        %1746 = vmatpush2.msra.mxu0 0.0
        %1747 = vmatprep.subr.mxu0 0.0
        %1748 = vmatpush2.msra.mxu0 0.0
        %1749 = vmatprep.mubr.f32.mxu0 0.0
        %1750 = vmatmul.mubr.f32.gmra.mxu0 %v1549
        %v1751 = vpop.f32.mrf.mxu0
        %v1752 = vadd.f32 %v1511, %v1751
        %v1753 = vpop.f32.mrf.mxu0
        %v1754 = vadd.f32 %v1511, %v1753
        %1755 = vmatprep.mubr.f32.mxu0 0.0
        %1756 = vmatmul.mubr.f32.gmra.mxu0 %v1552
        %v1757 = vpop.f32.mrf.mxu0
        %v1758 = vadd.f32 %v1516, %v1757
        %v1759 = vpop.f32.mrf.mxu0
        %v1760 = vadd.f32 %v1516, %v1759
        %1761 = vmatprep.mubr.f32.mxu0 0.0
        %1762 = vmatmul.mubr.f32.gmra.mxu0 %v1555
        %v1763 = vpop.f32.mrf.mxu0
        %v1764 = vadd.f32 %v1521, %v1763
        %v1765 = vpop.f32.mrf.mxu0
        %v1766 = vadd.f32 %v1521, %v1765
        %1767 = vmatprep.mubr.f32.mxu0 0.0
        %1768 = vmatmul.mubr.f32.gmra.mxu0 %v1558
        %v1769 = vpop.f32.mrf.mxu0
        %v1770 = vadd.f32 %v1526, %v1769
        %v1771 = vpop.f32.mrf.mxu0
        %v1772 = vadd.f32 %v1526, %v1771
        %1773 = vmatprep.mubr.f32.mxu0 0.0
        %1774 = vmatmul.mubr.f32.gmra.mxu0 %v1561
        %v1775 = vpop.f32.mrf.mxu0
        %v1776 = vadd.f32 %v1531, %v1775
        %v1777 = vpop.f32.mrf.mxu0
        %v1778 = vadd.f32 %v1531, %v1777
        %1779 = vmatprep.mubr.f32.mxu0 0.0
        %1780 = vmatmul.mubr.f32.gmra.mxu0 %v1564
        %v1781 = vpop.f32.mrf.mxu0
        %v1782 = vadd.f32 %v1536, %v1781
        %v1783 = vpop.f32.mrf.mxu0
        %v1784 = vadd.f32 %v1536, %v1783
        %1785 = vmatprep.mubr.f32.mxu0 0.0
        %1786 = vmatmul.mubr.f32.gmra.mxu0 %v1567
        %v1787 = vpop.f32.mrf.mxu0
        %v1788 = vadd.f32 %v1541, %v1787
        %v1789 = vpop.f32.mrf.mxu0
        %v1790 = vadd.f32 %v1541, %v1789
        %1791 = vmatprep.mubr.f32.mxu0 0.0
        %1792 = vmatmul.mubr.f32.gmra.mxu0 %v1570
        %v1793 = vpop.f32.mrf.mxu0
        %v1794 = vadd.f32 %v1546, %v1793
        %v1795 = vpop.f32.mrf.mxu0
        %v1796 = vadd.f32 %v1546, %v1795
        %1797 = vdwg.mxu0
        %vm1798 = vcmp.gt.f32.partialorder %v1663, 0.0
        %vm1799 = vcmp.gt.f32.partialorder %v1665, 0.0
        %vm1800 = vcmp.gt.f32.partialorder %v1776, 0.0
        %vm1801 = vcmp.gt.f32.partialorder %v1778, 0.0
        %vm1802 = vcmp.gt.f32.partialorder %v1669, 0.0
        %vm1803 = vcmp.gt.f32.partialorder %v1671, 0.0
        %vm1804 = vcmp.gt.f32.partialorder %v1782, 0.0
        %vm1805 = vcmp.gt.f32.partialorder %v1784, 0.0
        %vm1806 = vcmp.gt.f32.partialorder %v1675, 0.0
        %vm1807 = vcmp.gt.f32.partialorder %v1677, 0.0
        %vm1808 = vcmp.gt.f32.partialorder %v1788, 0.0
        %vm1809 = vcmp.gt.f32.partialorder %v1790, 0.0
        %vm1810 = vcmp.gt.f32.partialorder %v1681, 0.0
        %vm1811 = vcmp.gt.f32.partialorder %v1683, 0.0
        %vm1812 = vcmp.gt.f32.partialorder %v1794, 0.0
        %vm1813 = vcmp.gt.f32.partialorder %v1796, 0.0
        %v1814 = vmin.f32 %v1663, 0.0
        %v1815 = vmin.f32 %v1665, 0.0
        %v1816 = vmin.f32 %v1776, 0.0
        %v1817 = vmin.f32 %v1778, 0.0
        %v1818 = vmin.f32 %v1669, 0.0
        %v1819 = vmin.f32 %v1671, 0.0
        %v1820 = vmin.f32 %v1782, 0.0
        %v1821 = vmin.f32 %v1784, 0.0
        %v1822 = vmin.f32 %v1675, 0.0
        %v1823 = vmin.f32 %v1677, 0.0
        %v1824 = vmin.f32 %v1788, 0.0
        %v1825 = vmin.f32 %v1790, 0.0
        %v1826 = vmin.f32 %v1681, 0.0
        %v1827 = vmin.f32 %v1683, 0.0
        %v1828 = vmin.f32 %v1794, 0.0
        %v1829 = vmin.f32 %v1796, 0.0
        %v1830 = vmul.f32 %v1814, 1.442695
        %v1831 = vpow.pop %v1830
        %v1832 = vmul.f32 %v1815, 1.442695
        %v1833 = vpow.pop %v1832
        %v1834 = vmul.f32 %v1816, 1.442695
        %v1835 = vpow.pop %v1834
        %v1836 = vmul.f32 %v1817, 1.442695
        %v1837 = vpow.pop %v1836
        %v1838 = vmul.f32 %v1818, 1.442695
        %v1839 = vpow.pop %v1838
        %v1840 = vmul.f32 %v1819, 1.442695
        %v1841 = vpow.pop %v1840
        %v1842 = vmul.f32 %v1820, 1.442695
        %v1843 = vpow.pop %v1842
        %v1844 = vmul.f32 %v1821, 1.442695
        %v1845 = vpow.pop %v1844
        %v1846 = vmul.f32 %v1822, 1.442695
        %v1847 = vpow.pop %v1846
        %v1848 = vmul.f32 %v1823, 1.442695
        %v1849 = vpow.pop %v1848
        %v1850 = vmul.f32 %v1824, 1.442695
        %v1851 = vpow.pop %v1850
        %v1852 = vmul.f32 %v1825, 1.442695
        %v1853 = vpow.pop %v1852
        %v1854 = vmul.f32 %v1826, 1.442695
        %v1855 = vpow.pop %v1854
        %v1856 = vmul.f32 %v1827, 1.442695
        %v1857 = vpow.pop %v1856
        %v1858 = vmul.f32 %v1828, 1.442695
        %v1859 = vpow.pop %v1858
        %v1860 = vmul.f32 %v1829, 1.442695
        %v1861 = vpow.pop %v1860
        %v1862 = vsub.f32 %v1831, 1.0
        %v1863 = vsub.f32 %v1833, 1.0
        %v1864 = vsub.f32 %v1835, 1.0
        %v1865 = vsub.f32 %v1837, 1.0
        %v1866 = vsub.f32 %v1839, 1.0
        %v1867 = vsub.f32 %v1841, 1.0
        %v1868 = vsub.f32 %v1843, 1.0
        %v1869 = vsub.f32 %v1845, 1.0
        %v1870 = vsub.f32 %v1847, 1.0
        %v1871 = vsub.f32 %v1849, 1.0
        %v1872 = vsub.f32 %v1851, 1.0
        %v1873 = vsub.f32 %v1853, 1.0
        %v1874 = vsub.f32 %v1855, 1.0
        %v1875 = vsub.f32 %v1857, 1.0
        %v1876 = vsub.f32 %v1859, 1.0
        %v1877 = vsub.f32 %v1861, 1.0
        %v1878 = vsel %vm1798, %v1663, %v1862
        %v1879 = vsel %vm1799, %v1665, %v1863
        %v1880 = vsel %vm1800, %v1776, %v1864
        %v1881 = vsel %vm1801, %v1778, %v1865
        %v1882 = vsel %vm1802, %v1669, %v1866
        %v1883 = vsel %vm1803, %v1671, %v1867
        %v1884 = vsel %vm1804, %v1782, %v1868
        %v1885 = vsel %vm1805, %v1784, %v1869
        %v1886 = vsel %vm1806, %v1675, %v1870
        %v1887 = vsel %vm1807, %v1677, %v1871
        %v1888 = vsel %vm1808, %v1788, %v1872
        %v1889 = vsel %vm1809, %v1790, %v1873
        %v1890 = vsel %vm1810, %v1681, %v1874
        %v1891 = vsel %vm1811, %v1683, %v1875
        %v1892 = vsel %vm1812, %v1794, %v1876
        %v1893 = vsel %vm1813, %v1796, %v1877
        %v1894 = vld [vmem:[%s8] sm:$0xff]
        %v1895 = vld [vmem:[%s8 + $0x8] sm:$0xff]
        %v1896 = vld [vmem:[%s8 + $0x10] sm:$0xff]
        %v1897 = vld [vmem:[%s8 + $0x18] sm:$0xff]
        %v1898 = vld [vmem:[%s9] sm:$0xff]
        %v1899 = vld [vmem:[%s9 + $0x8] sm:$0xff]
        %v1900 = vld [vmem:[%s9 + $0x10] sm:$0xff]
        %v1901 = vld [vmem:[%s9 + $0x18] sm:$0xff]
        %1903 = vset.pattern.permute.xlu0 0
        %1904 = vperm.xlu0 %1903, %v1898
        %v1905 = vpop.permute.xlu0 %1904
        %1908 = vset.pattern.permute.xlu0 0
        %1909 = vperm.xlu0 %1908, %v1899
        %v1910 = vpop.permute.xlu0 %1909
        %1913 = vset.pattern.permute.xlu0 0
        %1914 = vperm.xlu0 %1913, %v1900
        %v1915 = vpop.permute.xlu0 %1914
        %1918 = vset.pattern.permute.xlu0 0
        %1919 = vperm.xlu0 %1918, %v1901
        %v1920 = vpop.permute.xlu0 %1919
        %v1923 = vsel %vm995, %v1894, 0
        %v1926 = vsel %vm995, %v1895, 0
        %v1929 = vsel %vm995, %v1896, 0
        %v1932 = vsel %vm995, %v1897, 0
        %1934 = vmatprep.subr.mxu0 0.0
        %1935 = vmatpush1.msra.mxu0 0.0
        %1936 = vmatprep.subr.mxu0 0.0
        %1937 = vmatpush1.msra.mxu0 0.0
        %1938 = vmatprep.subr.mxu0 0.0
        %1939 = vmatpush1.msra.mxu0 0.0
        %1940 = vmatprep.subr.mxu0 0.0
        %1941 = vmatpush1.msra.mxu0 0.0
        %1942 = vmatprep.subr.mxu0 0.0
        %1943 = vmatpush1.msra.mxu0 0.0
        %1944 = vmatprep.subr.mxu0 0.0
        %1945 = vmatpush1.msra.mxu0 0.0
        %1946 = vmatprep.subr.mxu0 0.0
        %1947 = vmatpush1.msra.mxu0 0.0
        %1948 = vmatprep.subr.mxu0 0.0
        %1949 = vmatpush1.msra.mxu0 0.0
        %1950 = vmatprep.subr.mxu0 0.0
        %1951 = vmatpush1.msra.mxu0 0.0
        %1952 = vmatprep.subr.mxu0 0.0
        %1953 = vmatpush1.msra.mxu0 0.0
        %1954 = vmatprep.subr.mxu0 0.0
        %1955 = vmatpush1.msra.mxu0 0.0
        %1956 = vmatprep.subr.mxu0 0.0
        %1957 = vmatpush1.msra.mxu0 0.0
        %1958 = vmatprep.subr.mxu0 %v1891
        %1959 = vmatpush1.msra.mxu0 %v1890
        %1960 = vmatprep.subr.mxu0 %v1887
        %1961 = vmatpush1.msra.mxu0 %v1886
        %1962 = vmatprep.subr.mxu0 %v1883
        %1963 = vmatpush1.msra.mxu0 %v1882
        %1964 = vmatprep.subr.mxu0 %v1879
        %1965 = vmatpush1.msra.mxu0 %v1878
        %1966 = vmatprep.subr.mxu0 0.0
        %1967 = vmatpush2.msra.mxu0 0.0
        %1968 = vmatprep.subr.mxu0 0.0
        %1969 = vmatpush2.msra.mxu0 0.0
        %1970 = vmatprep.subr.mxu0 0.0
        %1971 = vmatpush2.msra.mxu0 0.0
        %1972 = vmatprep.subr.mxu0 0.0
        %1973 = vmatpush2.msra.mxu0 0.0
        %1974 = vmatprep.subr.mxu0 0.0
        %1975 = vmatpush2.msra.mxu0 0.0
        %1976 = vmatprep.subr.mxu0 0.0
        %1977 = vmatpush2.msra.mxu0 0.0
        %1978 = vmatprep.subr.mxu0 0.0
        %1979 = vmatpush2.msra.mxu0 0.0
        %1980 = vmatprep.subr.mxu0 0.0
        %1981 = vmatpush2.msra.mxu0 0.0
        %1982 = vmatprep.subr.mxu0 0.0
        %1983 = vmatpush2.msra.mxu0 0.0
        %1984 = vmatprep.subr.mxu0 0.0
        %1985 = vmatpush2.msra.mxu0 0.0
        %1986 = vmatprep.subr.mxu0 0.0
        %1987 = vmatpush2.msra.mxu0 0.0
        %1988 = vmatprep.subr.mxu0 0.0
        %1989 = vmatpush2.msra.mxu0 0.0
        %1990 = vmatprep.subr.mxu0 0.0
        %1991 = vmatpush2.msra.mxu0 0.0
        %1992 = vmatprep.subr.mxu0 0.0
        %1993 = vmatpush2.msra.mxu0 0.0
        %1994 = vmatprep.subr.mxu0 0.0
        %1995 = vmatpush2.msra.mxu0 0.0
        %1996 = vmatprep.subr.mxu0 0.0
        %1997 = vmatpush2.msra.mxu0 0.0
        %1998 = vmatprep.mubr.f32.mxu0 0.0
        %1999 = vmatmul.mubr.f32.gmra.mxu0 %v1923
        %v2000 = vpop.f32.mrf.mxu0
        %v2001 = vadd.f32 %v1905, %v2000
        %v2002 = vpop.f32.mrf.mxu0
        %v2003 = vadd.f32 %v1905, %v2002
        %2004 = vmatprep.mubr.f32.mxu0 0.0
        %2005 = vmatmul.mubr.f32.gmra.mxu0 %v1926
        %v2006 = vpop.f32.mrf.mxu0
        %v2007 = vadd.f32 %v1910, %v2006
        %v2008 = vpop.f32.mrf.mxu0
        %v2009 = vadd.f32 %v1910, %v2008
        %2010 = vmatprep.mubr.f32.mxu0 0.0
        %2011 = vmatmul.mubr.f32.gmra.mxu0 %v1929
        %v2012 = vpop.f32.mrf.mxu0
        %v2013 = vadd.f32 %v1915, %v2012
        %v2014 = vpop.f32.mrf.mxu0
        %v2015 = vadd.f32 %v1915, %v2014
        %2016 = vmatprep.mubr.f32.mxu0 0.0
        %2017 = vmatmul.mubr.f32.gmra.mxu0 %v1932
        %v2018 = vpop.f32.mrf.mxu0
        %v2019 = vadd.f32 %v1920, %v2018
        %v2020 = vpop.f32.mrf.mxu0
        %v2021 = vadd.f32 %v1920, %v2020
        %2022 = vdwg.mxu0
        %2023 = vmatprep.subr.mxu0 0.0
        %2024 = vmatpush1.msra.mxu0 0.0
        %2025 = vmatprep.subr.mxu0 0.0
        %2026 = vmatpush1.msra.mxu0 0.0
        %2027 = vmatprep.subr.mxu0 0.0
        %2028 = vmatpush1.msra.mxu0 0.0
        %2029 = vmatprep.subr.mxu0 0.0
        %2030 = vmatpush1.msra.mxu0 0.0
        %2031 = vmatprep.subr.mxu0 0.0
        %2032 = vmatpush1.msra.mxu0 0.0
        %2033 = vmatprep.subr.mxu0 0.0
        %2034 = vmatpush1.msra.mxu0 0.0
        %2035 = vmatprep.subr.mxu0 0.0
        %2036 = vmatpush1.msra.mxu0 0.0
        %2037 = vmatprep.subr.mxu0 0.0
        %2038 = vmatpush1.msra.mxu0 0.0
        %2039 = vmatprep.subr.mxu0 0.0
        %2040 = vmatpush1.msra.mxu0 0.0
        %2041 = vmatprep.subr.mxu0 0.0
        %2042 = vmatpush1.msra.mxu0 0.0
        %2043 = vmatprep.subr.mxu0 0.0
        %2044 = vmatpush1.msra.mxu0 0.0
        %2045 = vmatprep.subr.mxu0 0.0
        %2046 = vmatpush1.msra.mxu0 0.0
        %2047 = vmatprep.subr.mxu0 %v1893
        %2048 = vmatpush1.msra.mxu0 %v1892
        %2049 = vmatprep.subr.mxu0 %v1889
        %2050 = vmatpush1.msra.mxu0 %v1888
        %2051 = vmatprep.subr.mxu0 %v1885
        %2052 = vmatpush1.msra.mxu0 %v1884
        %2053 = vmatprep.subr.mxu0 %v1881
        %2054 = vmatpush1.msra.mxu0 %v1880
        %2055 = vmatprep.subr.mxu0 0.0
        %2056 = vmatpush2.msra.mxu0 0.0
        %2057 = vmatprep.subr.mxu0 0.0
        %2058 = vmatpush2.msra.mxu0 0.0
        %2059 = vmatprep.subr.mxu0 0.0
        %2060 = vmatpush2.msra.mxu0 0.0
        %2061 = vmatprep.subr.mxu0 0.0
        %2062 = vmatpush2.msra.mxu0 0.0
        %2063 = vmatprep.subr.mxu0 0.0
        %2064 = vmatpush2.msra.mxu0 0.0
        %2065 = vmatprep.subr.mxu0 0.0
        %2066 = vmatpush2.msra.mxu0 0.0
        %2067 = vmatprep.subr.mxu0 0.0
        %2068 = vmatpush2.msra.mxu0 0.0
        %2069 = vmatprep.subr.mxu0 0.0
        %2070 = vmatpush2.msra.mxu0 0.0
        %2071 = vmatprep.subr.mxu0 0.0
        %2072 = vmatpush2.msra.mxu0 0.0
        %2073 = vmatprep.subr.mxu0 0.0
        %2074 = vmatpush2.msra.mxu0 0.0
        %2075 = vmatprep.subr.mxu0 0.0
        %2076 = vmatpush2.msra.mxu0 0.0
        %2077 = vmatprep.subr.mxu0 0.0
        %2078 = vmatpush2.msra.mxu0 0.0
        %2079 = vmatprep.subr.mxu0 0.0
        %2080 = vmatpush2.msra.mxu0 0.0
        %2081 = vmatprep.subr.mxu0 0.0
        %2082 = vmatpush2.msra.mxu0 0.0
        %2083 = vmatprep.subr.mxu0 0.0
        %2084 = vmatpush2.msra.mxu0 0.0
        %2085 = vmatprep.subr.mxu0 0.0
        %2086 = vmatpush2.msra.mxu0 0.0
        %2087 = vmatprep.mubr.f32.mxu0 0.0
        %2088 = vmatmul.mubr.f32.gmra.mxu0 %v1923
        %v2089 = vpop.f32.mrf.mxu0
        %v2090 = vadd.f32 %v1905, %v2089
        %v2091 = vpop.f32.mrf.mxu0
        %v2092 = vadd.f32 %v1905, %v2091
        %2093 = vmatprep.mubr.f32.mxu0 0.0
        %2094 = vmatmul.mubr.f32.gmra.mxu0 %v1926
        %v2095 = vpop.f32.mrf.mxu0
        %v2096 = vadd.f32 %v1910, %v2095
        %v2097 = vpop.f32.mrf.mxu0
        %v2098 = vadd.f32 %v1910, %v2097
        %2099 = vmatprep.mubr.f32.mxu0 0.0
        %2100 = vmatmul.mubr.f32.gmra.mxu0 %v1929
        %v2101 = vpop.f32.mrf.mxu0
        %v2102 = vadd.f32 %v1915, %v2101
        %v2103 = vpop.f32.mrf.mxu0
        %v2104 = vadd.f32 %v1915, %v2103
        %2105 = vmatprep.mubr.f32.mxu0 0.0
        %2106 = vmatmul.mubr.f32.gmra.mxu0 %v1932
        %v2107 = vpop.f32.mrf.mxu0
        %v2108 = vadd.f32 %v1920, %v2107
        %v2109 = vpop.f32.mrf.mxu0
        %v2110 = vadd.f32 %v1920, %v2109
        %2111 = vdwg.mxu0
        %vm2112 = vcmp.gt.f32.partialorder %v2001, 0.0
        %vm2113 = vcmp.gt.f32.partialorder %v2003, 0.0
        %vm2114 = vcmp.gt.f32.partialorder %v2090, 0.0
        %vm2115 = vcmp.gt.f32.partialorder %v2092, 0.0
        %vm2116 = vcmp.gt.f32.partialorder %v2007, 0.0
        %vm2117 = vcmp.gt.f32.partialorder %v2009, 0.0
        %vm2118 = vcmp.gt.f32.partialorder %v2096, 0.0
        %vm2119 = vcmp.gt.f32.partialorder %v2098, 0.0
        %vm2120 = vcmp.gt.f32.partialorder %v2013, 0.0
        %vm2121 = vcmp.gt.f32.partialorder %v2015, 0.0
        %vm2122 = vcmp.gt.f32.partialorder %v2102, 0.0
        %vm2123 = vcmp.gt.f32.partialorder %v2104, 0.0
        %vm2124 = vcmp.gt.f32.partialorder %v2019, 0.0
        %vm2125 = vcmp.gt.f32.partialorder %v2021, 0.0
        %vm2126 = vcmp.gt.f32.partialorder %v2108, 0.0
        %vm2127 = vcmp.gt.f32.partialorder %v2110, 0.0
        %v2128 = vmin.f32 %v2001, 0.0
        %v2129 = vmin.f32 %v2003, 0.0
        %v2130 = vmin.f32 %v2090, 0.0
        %v2131 = vmin.f32 %v2092, 0.0
        %v2132 = vmin.f32 %v2007, 0.0
        %v2133 = vmin.f32 %v2009, 0.0
        %v2134 = vmin.f32 %v2096, 0.0
        %v2135 = vmin.f32 %v2098, 0.0
        %v2136 = vmin.f32 %v2013, 0.0
        %v2137 = vmin.f32 %v2015, 0.0
        %v2138 = vmin.f32 %v2102, 0.0
        %v2139 = vmin.f32 %v2104, 0.0
        %v2140 = vmin.f32 %v2019, 0.0
        %v2141 = vmin.f32 %v2021, 0.0
        %v2142 = vmin.f32 %v2108, 0.0
        %v2143 = vmin.f32 %v2110, 0.0
        %v2144 = vmul.f32 %v2128, 1.442695
        %v2145 = vpow.pop %v2144
        %v2146 = vmul.f32 %v2129, 1.442695
        %v2147 = vpow.pop %v2146
        %v2148 = vmul.f32 %v2130, 1.442695
        %v2149 = vpow.pop %v2148
        %v2150 = vmul.f32 %v2131, 1.442695
        %v2151 = vpow.pop %v2150
        %v2152 = vmul.f32 %v2132, 1.442695
        %v2153 = vpow.pop %v2152
        %v2154 = vmul.f32 %v2133, 1.442695
        %v2155 = vpow.pop %v2154
        %v2156 = vmul.f32 %v2134, 1.442695
        %v2157 = vpow.pop %v2156
        %v2158 = vmul.f32 %v2135, 1.442695
        %v2159 = vpow.pop %v2158
        %v2160 = vmul.f32 %v2136, 1.442695
        %v2161 = vpow.pop %v2160
        %v2162 = vmul.f32 %v2137, 1.442695
        %v2163 = vpow.pop %v2162
        %v2164 = vmul.f32 %v2138, 1.442695
        %v2165 = vpow.pop %v2164
        %v2166 = vmul.f32 %v2139, 1.442695
        %v2167 = vpow.pop %v2166
        %v2168 = vmul.f32 %v2140, 1.442695
        %v2169 = vpow.pop %v2168
        %v2170 = vmul.f32 %v2141, 1.442695
        %v2171 = vpow.pop %v2170
        %v2172 = vmul.f32 %v2142, 1.442695
        %v2173 = vpow.pop %v2172
        %v2174 = vmul.f32 %v2143, 1.442695
        %v2175 = vpow.pop %v2174
        %v2176 = vsub.f32 %v2145, 1.0
        %v2177 = vsub.f32 %v2147, 1.0
        %v2178 = vsub.f32 %v2149, 1.0
        %v2179 = vsub.f32 %v2151, 1.0
        %v2180 = vsub.f32 %v2153, 1.0
        %v2181 = vsub.f32 %v2155, 1.0
        %v2182 = vsub.f32 %v2157, 1.0
        %v2183 = vsub.f32 %v2159, 1.0
        %v2184 = vsub.f32 %v2161, 1.0
        %v2185 = vsub.f32 %v2163, 1.0
        %v2186 = vsub.f32 %v2165, 1.0
        %v2187 = vsub.f32 %v2167, 1.0
        %v2188 = vsub.f32 %v2169, 1.0
        %v2189 = vsub.f32 %v2171, 1.0
        %v2190 = vsub.f32 %v2173, 1.0
        %v2191 = vsub.f32 %v2175, 1.0
        %v2192 = vsel %vm2112, %v2001, %v2176
        %v2193 = vsel %vm2113, %v2003, %v2177
        %v2194 = vsel %vm2114, %v2090, %v2178
        %v2195 = vsel %vm2115, %v2092, %v2179
        %v2196 = vsel %vm2116, %v2007, %v2180
        %v2197 = vsel %vm2117, %v2009, %v2181
        %v2198 = vsel %vm2118, %v2096, %v2182
        %v2199 = vsel %vm2119, %v2098, %v2183
        %v2200 = vsel %vm2120, %v2013, %v2184
        %v2201 = vsel %vm2121, %v2015, %v2185
        %v2202 = vsel %vm2122, %v2102, %v2186
        %v2203 = vsel %vm2123, %v2104, %v2187
        %v2204 = vsel %vm2124, %v2019, %v2188
        %v2205 = vsel %vm2125, %v2021, %v2189
        %v2206 = vsel %vm2126, %v2108, %v2190
        %v2207 = vsel %vm2127, %v2110, %v2191
        %v2208 = vld [vmem:[%s10] sm:$0xff]
        %v2209 = vld [vmem:[%s10 + $0x8] sm:$0xff]
        %v2210 = vld [vmem:[%s10 + $0x10] sm:$0xff]
        %v2211 = vld [vmem:[%s10 + $0x18] sm:$0xff]
        %v2213 = vsel %vm995, %v2208, 0
        %v2216 = vsel %vm995, %v2209, 0
        %v2219 = vsel %vm995, %v2210, 0
        %v2222 = vsel %vm995, %v2211, 0
        %2224 = vmatprep.subr.mxu0 0.0
        %2225 = vmatpush1.msra.mxu0 0.0
        %2226 = vmatprep.subr.mxu0 0.0
        %2227 = vmatpush1.msra.mxu0 0.0
        %2228 = vmatprep.subr.mxu0 0.0
        %2229 = vmatpush1.msra.mxu0 0.0
        %2230 = vmatprep.subr.mxu0 0.0
        %2231 = vmatpush1.msra.mxu0 0.0
        %2232 = vmatprep.subr.mxu0 0.0
        %2233 = vmatpush1.msra.mxu0 0.0
        %2234 = vmatprep.subr.mxu0 0.0
        %2235 = vmatpush1.msra.mxu0 0.0
        %2236 = vmatprep.subr.mxu0 0.0
        %2237 = vmatpush1.msra.mxu0 0.0
        %2238 = vmatprep.subr.mxu0 0.0
        %2239 = vmatpush1.msra.mxu0 0.0
        %2240 = vmatprep.subr.mxu0 0.0
        %2241 = vmatpush1.msra.mxu0 0.0
        %2242 = vmatprep.subr.mxu0 0.0
        %2243 = vmatpush1.msra.mxu0 0.0
        %2244 = vmatprep.subr.mxu0 0.0
        %2245 = vmatpush1.msra.mxu0 0.0
        %2246 = vmatprep.subr.mxu0 0.0
        %2247 = vmatpush1.msra.mxu0 0.0
        %2248 = vmatprep.subr.mxu0 %v2205
        %2249 = vmatpush1.msra.mxu0 %v2204
        %2250 = vmatprep.subr.mxu0 %v2201
        %2251 = vmatpush1.msra.mxu0 %v2200
        %2252 = vmatprep.subr.mxu0 %v2197
        %2253 = vmatpush1.msra.mxu0 %v2196
        %2254 = vmatprep.subr.mxu0 %v2193
        %2255 = vmatpush1.msra.mxu0 %v2192
        %2256 = vmatprep.subr.mxu0 0.0
        %2257 = vmatpush2.msra.mxu0 0.0
        %2258 = vmatprep.subr.mxu0 0.0
        %2259 = vmatpush2.msra.mxu0 0.0
        %2260 = vmatprep.subr.mxu0 0.0
        %2261 = vmatpush2.msra.mxu0 0.0
        %2262 = vmatprep.subr.mxu0 0.0
        %2263 = vmatpush2.msra.mxu0 0.0
        %2264 = vmatprep.subr.mxu0 0.0
        %2265 = vmatpush2.msra.mxu0 0.0
        %2266 = vmatprep.subr.mxu0 0.0
        %2267 = vmatpush2.msra.mxu0 0.0
        %2268 = vmatprep.subr.mxu0 0.0
        %2269 = vmatpush2.msra.mxu0 0.0
        %2270 = vmatprep.subr.mxu0 0.0
        %2271 = vmatpush2.msra.mxu0 0.0
        %2272 = vmatprep.subr.mxu0 0.0
        %2273 = vmatpush2.msra.mxu0 0.0
        %2274 = vmatprep.subr.mxu0 0.0
        %2275 = vmatpush2.msra.mxu0 0.0
        %2276 = vmatprep.subr.mxu0 0.0
        %2277 = vmatpush2.msra.mxu0 0.0
        %2278 = vmatprep.subr.mxu0 0.0
        %2279 = vmatpush2.msra.mxu0 0.0
        %2280 = vmatprep.subr.mxu0 0.0
        %2281 = vmatpush2.msra.mxu0 0.0
        %2282 = vmatprep.subr.mxu0 0.0
        %2283 = vmatpush2.msra.mxu0 0.0
        %2284 = vmatprep.subr.mxu0 0.0
        %2285 = vmatpush2.msra.mxu0 0.0
        %2286 = vmatprep.subr.mxu0 0.0
        %2287 = vmatpush2.msra.mxu0 0.0
        %2288 = vmatprep.mubr.f32.mxu0 0.0
        %2289 = vmatmul.mubr.f32.gmra.mxu0 %v2213
        %v2290 = vpop.f32.mrf.mxu0
        %v2291 = vadd.f32 0.0, %v2290
        %v2292 = vpop.f32.mrf.mxu0
        %v2293 = vadd.f32 0.0, %v2292
        %2294 = vmatprep.mubr.f32.mxu0 0.0
        %2295 = vmatmul.mubr.f32.gmra.mxu0 %v2216
        %v2296 = vpop.f32.mrf.mxu0
        %v2297 = vadd.f32 0.0, %v2296
        %v2298 = vpop.f32.mrf.mxu0
        %v2299 = vadd.f32 0.0, %v2298
        %2300 = vmatprep.mubr.f32.mxu0 0.0
        %2301 = vmatmul.mubr.f32.gmra.mxu0 %v2219
        %v2302 = vpop.f32.mrf.mxu0
        %v2303 = vadd.f32 0.0, %v2302
        %v2304 = vpop.f32.mrf.mxu0
        %v2305 = vadd.f32 0.0, %v2304
        %2306 = vmatprep.mubr.f32.mxu0 0.0
        %2307 = vmatmul.mubr.f32.gmra.mxu0 %v2222
        %v2308 = vpop.f32.mrf.mxu0
        %v2309 = vadd.f32 0.0, %v2308
        %v2310 = vpop.f32.mrf.mxu0
        %v2311 = vadd.f32 0.0, %v2310
        %2312 = vdwg.mxu0
        %2313 = vmatprep.subr.mxu0 0.0
        %2314 = vmatpush1.msra.mxu0 0.0
        %2315 = vmatprep.subr.mxu0 0.0
        %2316 = vmatpush1.msra.mxu0 0.0
        %2317 = vmatprep.subr.mxu0 0.0
        %2318 = vmatpush1.msra.mxu0 0.0
        %2319 = vmatprep.subr.mxu0 0.0
        %2320 = vmatpush1.msra.mxu0 0.0
        %2321 = vmatprep.subr.mxu0 0.0
        %2322 = vmatpush1.msra.mxu0 0.0
        %2323 = vmatprep.subr.mxu0 0.0
        %2324 = vmatpush1.msra.mxu0 0.0
        %2325 = vmatprep.subr.mxu0 0.0
        %2326 = vmatpush1.msra.mxu0 0.0
        %2327 = vmatprep.subr.mxu0 0.0
        %2328 = vmatpush1.msra.mxu0 0.0
        %2329 = vmatprep.subr.mxu0 0.0
        %2330 = vmatpush1.msra.mxu0 0.0
        %2331 = vmatprep.subr.mxu0 0.0
        %2332 = vmatpush1.msra.mxu0 0.0
        %2333 = vmatprep.subr.mxu0 0.0
        %2334 = vmatpush1.msra.mxu0 0.0
        %2335 = vmatprep.subr.mxu0 0.0
        %2336 = vmatpush1.msra.mxu0 0.0
        %2337 = vmatprep.subr.mxu0 %v2207
        %2338 = vmatpush1.msra.mxu0 %v2206
        %2339 = vmatprep.subr.mxu0 %v2203
        %2340 = vmatpush1.msra.mxu0 %v2202
        %2341 = vmatprep.subr.mxu0 %v2199
        %2342 = vmatpush1.msra.mxu0 %v2198
        %2343 = vmatprep.subr.mxu0 %v2195
        %2344 = vmatpush1.msra.mxu0 %v2194
        %2345 = vmatprep.subr.mxu0 0.0
        %2346 = vmatpush2.msra.mxu0 0.0
        %2347 = vmatprep.subr.mxu0 0.0
        %2348 = vmatpush2.msra.mxu0 0.0
        %2349 = vmatprep.subr.mxu0 0.0
        %2350 = vmatpush2.msra.mxu0 0.0
        %2351 = vmatprep.subr.mxu0 0.0
        %2352 = vmatpush2.msra.mxu0 0.0
        %2353 = vmatprep.subr.mxu0 0.0
        %2354 = vmatpush2.msra.mxu0 0.0
        %2355 = vmatprep.subr.mxu0 0.0
        %2356 = vmatpush2.msra.mxu0 0.0
        %2357 = vmatprep.subr.mxu0 0.0
        %2358 = vmatpush2.msra.mxu0 0.0
        %2359 = vmatprep.subr.mxu0 0.0
        %2360 = vmatpush2.msra.mxu0 0.0
        %2361 = vmatprep.subr.mxu0 0.0
        %2362 = vmatpush2.msra.mxu0 0.0
        %2363 = vmatprep.subr.mxu0 0.0
        %2364 = vmatpush2.msra.mxu0 0.0
        %2365 = vmatprep.subr.mxu0 0.0
        %2366 = vmatpush2.msra.mxu0 0.0
        %2367 = vmatprep.subr.mxu0 0.0
        %2368 = vmatpush2.msra.mxu0 0.0
        %2369 = vmatprep.subr.mxu0 0.0
        %2370 = vmatpush2.msra.mxu0 0.0
        %2371 = vmatprep.subr.mxu0 0.0
        %2372 = vmatpush2.msra.mxu0 0.0
        %2373 = vmatprep.subr.mxu0 0.0
        %2374 = vmatpush2.msra.mxu0 0.0
        %2375 = vmatprep.subr.mxu0 0.0
        %2376 = vmatpush2.msra.mxu0 0.0
        %2377 = vmatprep.mubr.f32.mxu0 0.0
        %2378 = vmatmul.mubr.f32.gmra.mxu0 %v2213
        %v2379 = vpop.f32.mrf.mxu0
        %v2380 = vadd.f32 0.0, %v2379
        %v2381 = vpop.f32.mrf.mxu0
        %v2382 = vadd.f32 0.0, %v2381
        %2383 = vmatprep.mubr.f32.mxu0 0.0
        %2384 = vmatmul.mubr.f32.gmra.mxu0 %v2216
        %v2385 = vpop.f32.mrf.mxu0
        %v2386 = vadd.f32 0.0, %v2385
        %v2387 = vpop.f32.mrf.mxu0
        %v2388 = vadd.f32 0.0, %v2387
        %2389 = vmatprep.mubr.f32.mxu0 0.0
        %2390 = vmatmul.mubr.f32.gmra.mxu0 %v2219
        %v2391 = vpop.f32.mrf.mxu0
        %v2392 = vadd.f32 0.0, %v2391
        %v2393 = vpop.f32.mrf.mxu0
        %v2394 = vadd.f32 0.0, %v2393
        %2395 = vmatprep.mubr.f32.mxu0 0.0
        %2396 = vmatmul.mubr.f32.gmra.mxu0 %v2222
        %v2397 = vpop.f32.mrf.mxu0
        %v2398 = vadd.f32 0.0, %v2397
        %v2399 = vpop.f32.mrf.mxu0
        %v2400 = vadd.f32 0.0, %v2399
        %2401 = vdwg.mxu0
        %v2402 = vadd.f32 %v1639, %v2291
        %v2403 = vadd.f32 %v1641, %v2293
        %v2404 = vadd.f32 %v1752, %v2380
        %v2405 = vadd.f32 %v1754, %v2382
        %v2406 = vadd.f32 %v1645, %v2297
        %v2407 = vadd.f32 %v1647, %v2299
        %v2408 = vadd.f32 %v1758, %v2386
        %v2409 = vadd.f32 %v1760, %v2388
        %v2410 = vadd.f32 %v1651, %v2303
        %v2411 = vadd.f32 %v1653, %v2305
        %v2412 = vadd.f32 %v1764, %v2392
        %v2413 = vadd.f32 %v1766, %v2394
        %v2414 = vadd.f32 %v1657, %v2309
        %v2415 = vadd.f32 %v1659, %v2311
        %v2416 = vadd.f32 %v1770, %v2398
        %v2417 = vadd.f32 %v1772, %v2400
        %v2418 = vld [vmem:[%s11] sm:$0xff]
        %v2419 = vld [vmem:[%s11 + $0x8] sm:$0xff]
        %v2420 = vld [vmem:[%s11 + $0x10] sm:$0xff]
        %v2421 = vld [vmem:[%s11 + $0x18] sm:$0xff]
        %v2422 = vld [vmem:[%s11 + $0x20] sm:$0x1]
        %v2423 = vld [vmem:[%s12] sm:$0xff]
        %v2424 = vld [vmem:[%s12 + $0x8] sm:$0xff]
        %v2425 = vld [vmem:[%s12 + $0x10] sm:$0xff]
        %v2426 = vld [vmem:[%s12 + $0x18] sm:$0xff]
        %v2427 = vld [vmem:[%s12 + $0x20] sm:$0x1]
        %2429 = vset.pattern.permute.xlu0 0
        %2430 = vperm.xlu0 %2429, %v2423
        %v2431 = vpop.permute.xlu0 %2430
        %2434 = vset.pattern.permute.xlu0 0
        %2435 = vperm.xlu0 %2434, %v2424
        %v2436 = vpop.permute.xlu0 %2435
        %2439 = vset.pattern.permute.xlu0 0
        %2440 = vperm.xlu0 %2439, %v2425
        %v2441 = vpop.permute.xlu0 %2440
        %2444 = vset.pattern.permute.xlu0 0
        %2445 = vperm.xlu0 %2444, %v2426
        %v2446 = vpop.permute.xlu0 %2445
        %2449 = vset.pattern.permute.xlu0 0
        %2450 = vperm.xlu0 %2449, %v2427
        %v2451 = vpop.permute.xlu0 %2450
        %v2454 = vsel %vm995, %v2418, 0
        %v2457 = vsel %vm995, %v2419, 0
        %v2460 = vsel %vm995, %v2420, 0
        %v2463 = vsel %vm995, %v2421, 0
        %v2466 = vsel %vm995, %v2422, 0
        %2468 = vmatprep.subr.mxu0 0.0
        %2469 = vmatpush1.msra.mxu0 0.0
        %2470 = vmatprep.subr.mxu0 0.0
        %2471 = vmatpush1.msra.mxu0 0.0
        %2472 = vmatprep.subr.mxu0 0.0
        %2473 = vmatpush1.msra.mxu0 0.0
        %2474 = vmatprep.subr.mxu0 0.0
        %2475 = vmatpush1.msra.mxu0 0.0
        %2476 = vmatprep.subr.mxu0 0.0
        %2477 = vmatpush1.msra.mxu0 0.0
        %2478 = vmatprep.subr.mxu0 0.0
        %2479 = vmatpush1.msra.mxu0 0.0
        %2480 = vmatprep.subr.mxu0 0.0
        %2481 = vmatpush1.msra.mxu0 0.0
        %2482 = vmatprep.subr.mxu0 0.0
        %2483 = vmatpush1.msra.mxu0 0.0
        %2484 = vmatprep.subr.mxu0 0.0
        %2485 = vmatpush1.msra.mxu0 0.0
        %2486 = vmatprep.subr.mxu0 0.0
        %2487 = vmatpush1.msra.mxu0 0.0
        %2488 = vmatprep.subr.mxu0 0.0
        %2489 = vmatpush1.msra.mxu0 0.0
        %2490 = vmatprep.subr.mxu0 0.0
        %2491 = vmatpush1.msra.mxu0 0.0
        %2492 = vmatprep.subr.mxu0 %v2415
        %2493 = vmatpush1.msra.mxu0 %v2414
        %2494 = vmatprep.subr.mxu0 %v2411
        %2495 = vmatpush1.msra.mxu0 %v2410
        %2496 = vmatprep.subr.mxu0 %v2407
        %2497 = vmatpush1.msra.mxu0 %v2406
        %2498 = vmatprep.subr.mxu0 %v2403
        %2499 = vmatpush1.msra.mxu0 %v2402
        %2500 = vmatprep.subr.mxu0 0.0
        %2501 = vmatpush2.msra.mxu0 0.0
        %2502 = vmatprep.subr.mxu0 0.0
        %2503 = vmatpush2.msra.mxu0 0.0
        %2504 = vmatprep.subr.mxu0 0.0
        %2505 = vmatpush2.msra.mxu0 0.0
        %2506 = vmatprep.subr.mxu0 0.0
        %2507 = vmatpush2.msra.mxu0 0.0
        %2508 = vmatprep.subr.mxu0 0.0
        %2509 = vmatpush2.msra.mxu0 0.0
        %2510 = vmatprep.subr.mxu0 0.0
        %2511 = vmatpush2.msra.mxu0 0.0
        %2512 = vmatprep.subr.mxu0 0.0
        %2513 = vmatpush2.msra.mxu0 0.0
        %2514 = vmatprep.subr.mxu0 0.0
        %2515 = vmatpush2.msra.mxu0 0.0
        %2516 = vmatprep.subr.mxu0 0.0
        %2517 = vmatpush2.msra.mxu0 0.0
        %2518 = vmatprep.subr.mxu0 0.0
        %2519 = vmatpush2.msra.mxu0 0.0
        %2520 = vmatprep.subr.mxu0 0.0
        %2521 = vmatpush2.msra.mxu0 0.0
        %2522 = vmatprep.subr.mxu0 0.0
        %2523 = vmatpush2.msra.mxu0 0.0
        %2524 = vmatprep.subr.mxu0 0.0
        %2525 = vmatpush2.msra.mxu0 0.0
        %2526 = vmatprep.subr.mxu0 0.0
        %2527 = vmatpush2.msra.mxu0 0.0
        %2528 = vmatprep.subr.mxu0 0.0
        %2529 = vmatpush2.msra.mxu0 0.0
        %2530 = vmatprep.subr.mxu0 0.0
        %2531 = vmatpush2.msra.mxu0 0.0
        %2532 = vmatprep.mubr.f32.mxu0 0.0
        %2533 = vmatmul.mubr.f32.gmra.mxu0 %v2454
        %v2534 = vpop.f32.mrf.mxu0
        %v2535 = vadd.f32 %v2431, %v2534
        %v2536 = vpop.f32.mrf.mxu0
        %v2537 = vadd.f32 %v2431, %v2536
        %2538 = vmatprep.mubr.f32.mxu0 0.0
        %2539 = vmatmul.mubr.f32.gmra.mxu0 %v2457
        %v2540 = vpop.f32.mrf.mxu0
        %v2541 = vadd.f32 %v2436, %v2540
        %v2542 = vpop.f32.mrf.mxu0
        %v2543 = vadd.f32 %v2436, %v2542
        %2544 = vmatprep.mubr.f32.mxu0 0.0
        %2545 = vmatmul.mubr.f32.gmra.mxu0 %v2460
        %v2546 = vpop.f32.mrf.mxu0
        %v2547 = vadd.f32 %v2441, %v2546
        %v2548 = vpop.f32.mrf.mxu0
        %v2549 = vadd.f32 %v2441, %v2548
        %2550 = vmatprep.mubr.f32.mxu0 0.0
        %2551 = vmatmul.mubr.f32.gmra.mxu0 %v2463
        %v2552 = vpop.f32.mrf.mxu0
        %v2553 = vadd.f32 %v2446, %v2552
        %v2554 = vpop.f32.mrf.mxu0
        %v2555 = vadd.f32 %v2446, %v2554
        %2556 = vmatprep.mubr.f32.mxu0 0.0
        %2557 = vmatmul.mubr.f32.gmra.mxu0 %v2466
        %v2558 = vpop.f32.mrf.mxu0
        %v2559 = vadd.f32 %v2451, %v2558
        %v2560 = vpop.f32.mrf.mxu0
        %v2561 = vadd.f32 %v2451, %v2560
        %2562 = vdwg.mxu0
        %2563 = vmatprep.subr.mxu0 0.0
        %2564 = vmatpush1.msra.mxu0 0.0
        %2565 = vmatprep.subr.mxu0 0.0
        %2566 = vmatpush1.msra.mxu0 0.0
        %2567 = vmatprep.subr.mxu0 0.0
        %2568 = vmatpush1.msra.mxu0 0.0
        %2569 = vmatprep.subr.mxu0 0.0
        %2570 = vmatpush1.msra.mxu0 0.0
        %2571 = vmatprep.subr.mxu0 0.0
        %2572 = vmatpush1.msra.mxu0 0.0
        %2573 = vmatprep.subr.mxu0 0.0
        %2574 = vmatpush1.msra.mxu0 0.0
        %2575 = vmatprep.subr.mxu0 0.0
        %2576 = vmatpush1.msra.mxu0 0.0
        %2577 = vmatprep.subr.mxu0 0.0
        %2578 = vmatpush1.msra.mxu0 0.0
        %2579 = vmatprep.subr.mxu0 0.0
        %2580 = vmatpush1.msra.mxu0 0.0
        %2581 = vmatprep.subr.mxu0 0.0
        %2582 = vmatpush1.msra.mxu0 0.0
        %2583 = vmatprep.subr.mxu0 0.0
        %2584 = vmatpush1.msra.mxu0 0.0
        %2585 = vmatprep.subr.mxu0 0.0
        %2586 = vmatpush1.msra.mxu0 0.0
        %2587 = vmatprep.subr.mxu0 %v2417
        %2588 = vmatpush1.msra.mxu0 %v2416
        %2589 = vmatprep.subr.mxu0 %v2413
        %2590 = vmatpush1.msra.mxu0 %v2412
        %2591 = vmatprep.subr.mxu0 %v2409
        %2592 = vmatpush1.msra.mxu0 %v2408
        %2593 = vmatprep.subr.mxu0 %v2405
        %2594 = vmatpush1.msra.mxu0 %v2404
        %2595 = vmatprep.subr.mxu0 0.0
        %2596 = vmatpush2.msra.mxu0 0.0
        %2597 = vmatprep.subr.mxu0 0.0
        %2598 = vmatpush2.msra.mxu0 0.0
        %2599 = vmatprep.subr.mxu0 0.0
        %2600 = vmatpush2.msra.mxu0 0.0
        %2601 = vmatprep.subr.mxu0 0.0
        %2602 = vmatpush2.msra.mxu0 0.0
        %2603 = vmatprep.subr.mxu0 0.0
        %2604 = vmatpush2.msra.mxu0 0.0
        %2605 = vmatprep.subr.mxu0 0.0
        %2606 = vmatpush2.msra.mxu0 0.0
        %2607 = vmatprep.subr.mxu0 0.0
        %2608 = vmatpush2.msra.mxu0 0.0
        %2609 = vmatprep.subr.mxu0 0.0
        %2610 = vmatpush2.msra.mxu0 0.0
        %2611 = vmatprep.subr.mxu0 0.0
        %2612 = vmatpush2.msra.mxu0 0.0
        %2613 = vmatprep.subr.mxu0 0.0
        %2614 = vmatpush2.msra.mxu0 0.0
        %2615 = vmatprep.subr.mxu0 0.0
        %2616 = vmatpush2.msra.mxu0 0.0
        %2617 = vmatprep.subr.mxu0 0.0
        %2618 = vmatpush2.msra.mxu0 0.0
        %2619 = vmatprep.subr.mxu0 0.0
        %2620 = vmatpush2.msra.mxu0 0.0
        %2621 = vmatprep.subr.mxu0 0.0
        %2622 = vmatpush2.msra.mxu0 0.0
        %2623 = vmatprep.subr.mxu0 0.0
        %2624 = vmatpush2.msra.mxu0 0.0
        %2625 = vmatprep.subr.mxu0 0.0
        %2626 = vmatpush2.msra.mxu0 0.0
        %2627 = vmatprep.mubr.f32.mxu0 0.0
        %2628 = vmatmul.mubr.f32.gmra.mxu0 %v2454
        %v2629 = vpop.f32.mrf.mxu0
        %v2630 = vadd.f32 %v2431, %v2629
        %v2631 = vpop.f32.mrf.mxu0
        %v2632 = vadd.f32 %v2431, %v2631
        %2633 = vmatprep.mubr.f32.mxu0 0.0
        %2634 = vmatmul.mubr.f32.gmra.mxu0 %v2457
        %v2635 = vpop.f32.mrf.mxu0
        %v2636 = vadd.f32 %v2436, %v2635
        %v2637 = vpop.f32.mrf.mxu0
        %v2638 = vadd.f32 %v2436, %v2637
        %2639 = vmatprep.mubr.f32.mxu0 0.0
        %2640 = vmatmul.mubr.f32.gmra.mxu0 %v2460
        %v2641 = vpop.f32.mrf.mxu0
        %v2642 = vadd.f32 %v2441, %v2641
        %v2643 = vpop.f32.mrf.mxu0
        %v2644 = vadd.f32 %v2441, %v2643
        %2645 = vmatprep.mubr.f32.mxu0 0.0
        %2646 = vmatmul.mubr.f32.gmra.mxu0 %v2463
        %v2647 = vpop.f32.mrf.mxu0
        %v2648 = vadd.f32 %v2446, %v2647
        %v2649 = vpop.f32.mrf.mxu0
        %v2650 = vadd.f32 %v2446, %v2649
        %2651 = vmatprep.mubr.f32.mxu0 0.0
        %2652 = vmatmul.mubr.f32.gmra.mxu0 %v2466
        %v2653 = vpop.f32.mrf.mxu0
        %v2654 = vadd.f32 %v2451, %v2653
        %v2655 = vpop.f32.mrf.mxu0
        %v2656 = vadd.f32 %v2451, %v2655
        %2657 = vdwg.mxu0
        %vm2658 = vcmp.gt.f32.partialorder %v2535, 0.0
        %vm2659 = vcmp.gt.f32.partialorder %v2537, 0.0
        %vm2660 = vcmp.gt.f32.partialorder %v2630, 0.0
        %vm2661 = vcmp.gt.f32.partialorder %v2632, 0.0
        %vm2662 = vcmp.gt.f32.partialorder %v2541, 0.0
        %vm2663 = vcmp.gt.f32.partialorder %v2543, 0.0
        %vm2664 = vcmp.gt.f32.partialorder %v2636, 0.0
        %vm2665 = vcmp.gt.f32.partialorder %v2638, 0.0
        %vm2666 = vcmp.gt.f32.partialorder %v2547, 0.0
        %vm2667 = vcmp.gt.f32.partialorder %v2549, 0.0
        %vm2668 = vcmp.gt.f32.partialorder %v2642, 0.0
        %vm2669 = vcmp.gt.f32.partialorder %v2644, 0.0
        %vm2670 = vcmp.gt.f32.partialorder %v2553, 0.0
        %vm2671 = vcmp.gt.f32.partialorder %v2555, 0.0
        %vm2672 = vcmp.gt.f32.partialorder %v2648, 0.0
        %vm2673 = vcmp.gt.f32.partialorder %v2650, 0.0
        %v2674 = vmin.f32 %v2535, 0.0
        %v2675 = vmin.f32 %v2537, 0.0
        %v2676 = vmin.f32 %v2630, 0.0
        %v2677 = vmin.f32 %v2632, 0.0
        %v2678 = vmin.f32 %v2541, 0.0
        %v2679 = vmin.f32 %v2543, 0.0
        %v2680 = vmin.f32 %v2636, 0.0
        %v2681 = vmin.f32 %v2638, 0.0
        %v2682 = vmin.f32 %v2547, 0.0
        %v2683 = vmin.f32 %v2549, 0.0
        %v2684 = vmin.f32 %v2642, 0.0
        %v2685 = vmin.f32 %v2644, 0.0
        %v2686 = vmin.f32 %v2553, 0.0
        %v2687 = vmin.f32 %v2555, 0.0
        %v2688 = vmin.f32 %v2648, 0.0
        %v2689 = vmin.f32 %v2650, 0.0
        %v2690 = vmul.f32 %v2674, 1.442695
        %v2691 = vpow.pop %v2690
        %v2692 = vmul.f32 %v2675, 1.442695
        %v2693 = vpow.pop %v2692
        %v2694 = vmul.f32 %v2676, 1.442695
        %v2695 = vpow.pop %v2694
        %v2696 = vmul.f32 %v2677, 1.442695
        %v2697 = vpow.pop %v2696
        %v2698 = vmul.f32 %v2678, 1.442695
        %v2699 = vpow.pop %v2698
        %v2700 = vmul.f32 %v2679, 1.442695
        %v2701 = vpow.pop %v2700
        %v2702 = vmul.f32 %v2680, 1.442695
        %v2703 = vpow.pop %v2702
        %v2704 = vmul.f32 %v2681, 1.442695
        %v2705 = vpow.pop %v2704
        %v2706 = vmul.f32 %v2682, 1.442695
        %v2707 = vpow.pop %v2706
        %v2708 = vmul.f32 %v2683, 1.442695
        %v2709 = vpow.pop %v2708
        %v2710 = vmul.f32 %v2684, 1.442695
        %v2711 = vpow.pop %v2710
        %v2712 = vmul.f32 %v2685, 1.442695
        %v2713 = vpow.pop %v2712
        %v2714 = vmul.f32 %v2686, 1.442695
        %v2715 = vpow.pop %v2714
        %v2716 = vmul.f32 %v2687, 1.442695
        %v2717 = vpow.pop %v2716
        %v2718 = vmul.f32 %v2688, 1.442695
        %v2719 = vpow.pop %v2718
        %v2720 = vmul.f32 %v2689, 1.442695
        %v2721 = vpow.pop %v2720
        %v2722 = vsub.f32 %v2691, 1.0
        %v2723 = vsub.f32 %v2693, 1.0
        %v2724 = vsub.f32 %v2695, 1.0
        %v2725 = vsub.f32 %v2697, 1.0
        %v2726 = vsub.f32 %v2699, 1.0
        %v2727 = vsub.f32 %v2701, 1.0
        %v2728 = vsub.f32 %v2703, 1.0
        %v2729 = vsub.f32 %v2705, 1.0
        %v2730 = vsub.f32 %v2707, 1.0
        %v2731 = vsub.f32 %v2709, 1.0
        %v2732 = vsub.f32 %v2711, 1.0
        %v2733 = vsub.f32 %v2713, 1.0
        %v2734 = vsub.f32 %v2715, 1.0
        %v2735 = vsub.f32 %v2717, 1.0
        %v2736 = vsub.f32 %v2719, 1.0
        %v2737 = vsub.f32 %v2721, 1.0
        %v2738 = vsel %vm2658, %v2535, %v2722
        %v2739 = vsel %vm2659, %v2537, %v2723
        %v2740 = vsel %vm2660, %v2630, %v2724
        %v2741 = vsel %vm2661, %v2632, %v2725
        %v2742 = vsel %vm2662, %v2541, %v2726
        %v2743 = vsel %vm2663, %v2543, %v2727
        %v2744 = vsel %vm2664, %v2636, %v2728
        %v2745 = vsel %vm2665, %v2638, %v2729
        %v2746 = vsel %vm2666, %v2547, %v2730
        %v2747 = vsel %vm2667, %v2549, %v2731
        %v2748 = vsel %vm2668, %v2642, %v2732
        %v2749 = vsel %vm2669, %v2644, %v2733
        %v2750 = vsel %vm2670, %v2553, %v2734
        %v2751 = vsel %vm2671, %v2555, %v2735
        %v2752 = vsel %vm2672, %v2648, %v2736
        %v2753 = vsel %vm2673, %v2650, %v2737
        %v2754 = vld [vmem:[%s13] sm:$0xff]
        %v2755 = vld [vmem:[%s13 + $0x8] sm:$0xff]
        %v2756 = vld [vmem:[%s13 + $0x10] sm:$0xff]
        %v2757 = vld [vmem:[%s13 + $0x18] sm:$0xff]
        %v2758 = vld [vmem:[%s14] sm:$0xff]
        %v2759 = vld [vmem:[%s14 + $0x8] sm:$0xff]
        %v2760 = vld [vmem:[%s14 + $0x10] sm:$0xff]
        %v2761 = vld [vmem:[%s14 + $0x18] sm:$0xff]
        %2763 = vset.pattern.permute.xlu0 0
        %2764 = vperm.xlu0 %2763, %v2758
        %v2765 = vpop.permute.xlu0 %2764
        %2768 = vset.pattern.permute.xlu0 0
        %2769 = vperm.xlu0 %2768, %v2759
        %v2770 = vpop.permute.xlu0 %2769
        %2773 = vset.pattern.permute.xlu0 0
        %2774 = vperm.xlu0 %2773, %v2760
        %v2775 = vpop.permute.xlu0 %2774
        %2778 = vset.pattern.permute.xlu0 0
        %2779 = vperm.xlu0 %2778, %v2761
        %v2780 = vpop.permute.xlu0 %2779
        %v2783 = vsel %vm995, %v2754, 0
        %v2786 = vsel %vm995, %v2755, 0
        %v2789 = vsel %vm995, %v2756, 0
        %v2792 = vsel %vm995, %v2757, 0
        %2794 = vmatprep.subr.mxu0 0.0
        %2795 = vmatpush1.msra.mxu0 0.0
        %2796 = vmatprep.subr.mxu0 0.0
        %2797 = vmatpush1.msra.mxu0 0.0
        %2798 = vmatprep.subr.mxu0 0.0
        %2799 = vmatpush1.msra.mxu0 0.0
        %2800 = vmatprep.subr.mxu0 0.0
        %2801 = vmatpush1.msra.mxu0 0.0
        %2802 = vmatprep.subr.mxu0 0.0
        %2803 = vmatpush1.msra.mxu0 0.0
        %2804 = vmatprep.subr.mxu0 0.0
        %2805 = vmatpush1.msra.mxu0 0.0
        %2806 = vmatprep.subr.mxu0 0.0
        %2807 = vmatpush1.msra.mxu0 0.0
        %2808 = vmatprep.subr.mxu0 0.0
        %2809 = vmatpush1.msra.mxu0 0.0
        %2810 = vmatprep.subr.mxu0 0.0
        %2811 = vmatpush1.msra.mxu0 0.0
        %2812 = vmatprep.subr.mxu0 0.0
        %2813 = vmatpush1.msra.mxu0 0.0
        %2814 = vmatprep.subr.mxu0 0.0
        %2815 = vmatpush1.msra.mxu0 0.0
        %2816 = vmatprep.subr.mxu0 0.0
        %2817 = vmatpush1.msra.mxu0 0.0
        %2818 = vmatprep.subr.mxu0 %v2751
        %2819 = vmatpush1.msra.mxu0 %v2750
        %2820 = vmatprep.subr.mxu0 %v2747
        %2821 = vmatpush1.msra.mxu0 %v2746
        %2822 = vmatprep.subr.mxu0 %v2743
        %2823 = vmatpush1.msra.mxu0 %v2742
        %2824 = vmatprep.subr.mxu0 %v2739
        %2825 = vmatpush1.msra.mxu0 %v2738
        %2826 = vmatprep.subr.mxu0 0.0
        %2827 = vmatpush2.msra.mxu0 0.0
        %2828 = vmatprep.subr.mxu0 0.0
        %2829 = vmatpush2.msra.mxu0 0.0
        %2830 = vmatprep.subr.mxu0 0.0
        %2831 = vmatpush2.msra.mxu0 0.0
        %2832 = vmatprep.subr.mxu0 0.0
        %2833 = vmatpush2.msra.mxu0 0.0
        %2834 = vmatprep.subr.mxu0 0.0
        %2835 = vmatpush2.msra.mxu0 0.0
        %2836 = vmatprep.subr.mxu0 0.0
        %2837 = vmatpush2.msra.mxu0 0.0
        %2838 = vmatprep.subr.mxu0 0.0
        %2839 = vmatpush2.msra.mxu0 0.0
        %2840 = vmatprep.subr.mxu0 0.0
        %2841 = vmatpush2.msra.mxu0 0.0
        %2842 = vmatprep.subr.mxu0 0.0
        %2843 = vmatpush2.msra.mxu0 0.0
        %2844 = vmatprep.subr.mxu0 0.0
        %2845 = vmatpush2.msra.mxu0 0.0
        %2846 = vmatprep.subr.mxu0 0.0
        %2847 = vmatpush2.msra.mxu0 0.0
        %2848 = vmatprep.subr.mxu0 0.0
        %2849 = vmatpush2.msra.mxu0 0.0
        %2850 = vmatprep.subr.mxu0 0.0
        %2851 = vmatpush2.msra.mxu0 0.0
        %2852 = vmatprep.subr.mxu0 0.0
        %2853 = vmatpush2.msra.mxu0 0.0
        %2854 = vmatprep.subr.mxu0 0.0
        %2855 = vmatpush2.msra.mxu0 0.0
        %2856 = vmatprep.subr.mxu0 0.0
        %2857 = vmatpush2.msra.mxu0 0.0
        %2858 = vmatprep.mubr.f32.mxu0 0.0
        %2859 = vmatmul.mubr.f32.gmra.mxu0 %v2783
        %v2860 = vpop.f32.mrf.mxu0
        %v2861 = vadd.f32 %v2765, %v2860
        %v2862 = vpop.f32.mrf.mxu0
        %v2863 = vadd.f32 %v2765, %v2862
        %2864 = vmatprep.mubr.f32.mxu0 0.0
        %2865 = vmatmul.mubr.f32.gmra.mxu0 %v2786
        %v2866 = vpop.f32.mrf.mxu0
        %v2867 = vadd.f32 %v2770, %v2866
        %v2868 = vpop.f32.mrf.mxu0
        %v2869 = vadd.f32 %v2770, %v2868
        %2870 = vmatprep.mubr.f32.mxu0 0.0
        %2871 = vmatmul.mubr.f32.gmra.mxu0 %v2789
        %v2872 = vpop.f32.mrf.mxu0
        %v2873 = vadd.f32 %v2775, %v2872
        %v2874 = vpop.f32.mrf.mxu0
        %v2875 = vadd.f32 %v2775, %v2874
        %2876 = vmatprep.mubr.f32.mxu0 0.0
        %2877 = vmatmul.mubr.f32.gmra.mxu0 %v2792
        %v2878 = vpop.f32.mrf.mxu0
        %v2879 = vadd.f32 %v2780, %v2878
        %v2880 = vpop.f32.mrf.mxu0
        %v2881 = vadd.f32 %v2780, %v2880
        %2882 = vdwg.mxu0
        %2883 = vmatprep.subr.mxu0 0.0
        %2884 = vmatpush1.msra.mxu0 0.0
        %2885 = vmatprep.subr.mxu0 0.0
        %2886 = vmatpush1.msra.mxu0 0.0
        %2887 = vmatprep.subr.mxu0 0.0
        %2888 = vmatpush1.msra.mxu0 0.0
        %2889 = vmatprep.subr.mxu0 0.0
        %2890 = vmatpush1.msra.mxu0 0.0
        %2891 = vmatprep.subr.mxu0 0.0
        %2892 = vmatpush1.msra.mxu0 0.0
        %2893 = vmatprep.subr.mxu0 0.0
        %2894 = vmatpush1.msra.mxu0 0.0
        %2895 = vmatprep.subr.mxu0 0.0
        %2896 = vmatpush1.msra.mxu0 0.0
        %2897 = vmatprep.subr.mxu0 0.0
        %2898 = vmatpush1.msra.mxu0 0.0
        %2899 = vmatprep.subr.mxu0 0.0
        %2900 = vmatpush1.msra.mxu0 0.0
        %2901 = vmatprep.subr.mxu0 0.0
        %2902 = vmatpush1.msra.mxu0 0.0
        %2903 = vmatprep.subr.mxu0 0.0
        %2904 = vmatpush1.msra.mxu0 0.0
        %2905 = vmatprep.subr.mxu0 0.0
        %2906 = vmatpush1.msra.mxu0 0.0
        %2907 = vmatprep.subr.mxu0 %v2753
        %2908 = vmatpush1.msra.mxu0 %v2752
        %2909 = vmatprep.subr.mxu0 %v2749
        %2910 = vmatpush1.msra.mxu0 %v2748
        %2911 = vmatprep.subr.mxu0 %v2745
        %2912 = vmatpush1.msra.mxu0 %v2744
        %2913 = vmatprep.subr.mxu0 %v2741
        %2914 = vmatpush1.msra.mxu0 %v2740
        %2915 = vmatprep.subr.mxu0 0.0
        %2916 = vmatpush2.msra.mxu0 0.0
        %2917 = vmatprep.subr.mxu0 0.0
        %2918 = vmatpush2.msra.mxu0 0.0
        %2919 = vmatprep.subr.mxu0 0.0
        %2920 = vmatpush2.msra.mxu0 0.0
        %2921 = vmatprep.subr.mxu0 0.0
        %2922 = vmatpush2.msra.mxu0 0.0
        %2923 = vmatprep.subr.mxu0 0.0
        %2924 = vmatpush2.msra.mxu0 0.0
        %2925 = vmatprep.subr.mxu0 0.0
        %2926 = vmatpush2.msra.mxu0 0.0
        %2927 = vmatprep.subr.mxu0 0.0
        %2928 = vmatpush2.msra.mxu0 0.0
        %2929 = vmatprep.subr.mxu0 0.0
        %2930 = vmatpush2.msra.mxu0 0.0
        %2931 = vmatprep.subr.mxu0 0.0
        %2932 = vmatpush2.msra.mxu0 0.0
        %2933 = vmatprep.subr.mxu0 0.0
        %2934 = vmatpush2.msra.mxu0 0.0
        %2935 = vmatprep.subr.mxu0 0.0
        %2936 = vmatpush2.msra.mxu0 0.0
        %2937 = vmatprep.subr.mxu0 0.0
        %2938 = vmatpush2.msra.mxu0 0.0
        %2939 = vmatprep.subr.mxu0 0.0
        %2940 = vmatpush2.msra.mxu0 0.0
        %2941 = vmatprep.subr.mxu0 0.0
        %2942 = vmatpush2.msra.mxu0 0.0
        %2943 = vmatprep.subr.mxu0 0.0
        %2944 = vmatpush2.msra.mxu0 0.0
        %2945 = vmatprep.subr.mxu0 0.0
        %2946 = vmatpush2.msra.mxu0 0.0
        %2947 = vmatprep.mubr.f32.mxu0 0.0
        %2948 = vmatmul.mubr.f32.gmra.mxu0 %v2783
        %v2949 = vpop.f32.mrf.mxu0
        %v2950 = vadd.f32 %v2765, %v2949
        %v2951 = vpop.f32.mrf.mxu0
        %v2952 = vadd.f32 %v2765, %v2951
        %2953 = vmatprep.mubr.f32.mxu0 0.0
        %2954 = vmatmul.mubr.f32.gmra.mxu0 %v2786
        %v2955 = vpop.f32.mrf.mxu0
        %v2956 = vadd.f32 %v2770, %v2955
        %v2957 = vpop.f32.mrf.mxu0
        %v2958 = vadd.f32 %v2770, %v2957
        %2959 = vmatprep.mubr.f32.mxu0 0.0
        %2960 = vmatmul.mubr.f32.gmra.mxu0 %v2789
        %v2961 = vpop.f32.mrf.mxu0
        %v2962 = vadd.f32 %v2775, %v2961
        %v2963 = vpop.f32.mrf.mxu0
        %v2964 = vadd.f32 %v2775, %v2963
        %2965 = vmatprep.mubr.f32.mxu0 0.0
        %2966 = vmatmul.mubr.f32.gmra.mxu0 %v2792
        %v2967 = vpop.f32.mrf.mxu0
        %v2968 = vadd.f32 %v2780, %v2967
        %v2969 = vpop.f32.mrf.mxu0
        %v2970 = vadd.f32 %v2780, %v2969
        %2971 = vdwg.mxu0
        %vm2972 = vcmp.gt.f32.partialorder %v2861, 0.0
        %vm2973 = vcmp.gt.f32.partialorder %v2863, 0.0
        %vm2974 = vcmp.gt.f32.partialorder %v2950, 0.0
        %vm2975 = vcmp.gt.f32.partialorder %v2952, 0.0
        %vm2976 = vcmp.gt.f32.partialorder %v2867, 0.0
        %vm2977 = vcmp.gt.f32.partialorder %v2869, 0.0
        %vm2978 = vcmp.gt.f32.partialorder %v2956, 0.0
        %vm2979 = vcmp.gt.f32.partialorder %v2958, 0.0
        %vm2980 = vcmp.gt.f32.partialorder %v2873, 0.0
        %vm2981 = vcmp.gt.f32.partialorder %v2875, 0.0
        %vm2982 = vcmp.gt.f32.partialorder %v2962, 0.0
        %vm2983 = vcmp.gt.f32.partialorder %v2964, 0.0
        %vm2984 = vcmp.gt.f32.partialorder %v2879, 0.0
        %vm2985 = vcmp.gt.f32.partialorder %v2881, 0.0
        %vm2986 = vcmp.gt.f32.partialorder %v2968, 0.0
        %vm2987 = vcmp.gt.f32.partialorder %v2970, 0.0
        %v2988 = vmin.f32 %v2861, 0.0
        %v2989 = vmin.f32 %v2863, 0.0
        %v2990 = vmin.f32 %v2950, 0.0
        %v2991 = vmin.f32 %v2952, 0.0
        %v2992 = vmin.f32 %v2867, 0.0
        %v2993 = vmin.f32 %v2869, 0.0
        %v2994 = vmin.f32 %v2956, 0.0
        %v2995 = vmin.f32 %v2958, 0.0
        %v2996 = vmin.f32 %v2873, 0.0
        %v2997 = vmin.f32 %v2875, 0.0
        %v2998 = vmin.f32 %v2962, 0.0
        %v2999 = vmin.f32 %v2964, 0.0
        %v3000 = vmin.f32 %v2879, 0.0
        %v3001 = vmin.f32 %v2881, 0.0
        %v3002 = vmin.f32 %v2968, 0.0
        %v3003 = vmin.f32 %v2970, 0.0
        %v3004 = vmul.f32 %v2988, 1.442695
        %v3005 = vpow.pop %v3004
        %v3006 = vmul.f32 %v2989, 1.442695
        %v3007 = vpow.pop %v3006
        %v3008 = vmul.f32 %v2990, 1.442695
        %v3009 = vpow.pop %v3008
        %v3010 = vmul.f32 %v2991, 1.442695
        %v3011 = vpow.pop %v3010
        %v3012 = vmul.f32 %v2992, 1.442695
        %v3013 = vpow.pop %v3012
        %v3014 = vmul.f32 %v2993, 1.442695
        %v3015 = vpow.pop %v3014
        %v3016 = vmul.f32 %v2994, 1.442695
        %v3017 = vpow.pop %v3016
        %v3018 = vmul.f32 %v2995, 1.442695
        %v3019 = vpow.pop %v3018
        %v3020 = vmul.f32 %v2996, 1.442695
        %v3021 = vpow.pop %v3020
        %v3022 = vmul.f32 %v2997, 1.442695
        %v3023 = vpow.pop %v3022
        %v3024 = vmul.f32 %v2998, 1.442695
        %v3025 = vpow.pop %v3024
        %v3026 = vmul.f32 %v2999, 1.442695
        %v3027 = vpow.pop %v3026
        %v3028 = vmul.f32 %v3000, 1.442695
        %v3029 = vpow.pop %v3028
        %v3030 = vmul.f32 %v3001, 1.442695
        %v3031 = vpow.pop %v3030
        %v3032 = vmul.f32 %v3002, 1.442695
        %v3033 = vpow.pop %v3032
        %v3034 = vmul.f32 %v3003, 1.442695
        %v3035 = vpow.pop %v3034
        %v3036 = vsub.f32 %v3005, 1.0
        %v3037 = vsub.f32 %v3007, 1.0
        %v3038 = vsub.f32 %v3009, 1.0
        %v3039 = vsub.f32 %v3011, 1.0
        %v3040 = vsub.f32 %v3013, 1.0
        %v3041 = vsub.f32 %v3015, 1.0
        %v3042 = vsub.f32 %v3017, 1.0
        %v3043 = vsub.f32 %v3019, 1.0
        %v3044 = vsub.f32 %v3021, 1.0
        %v3045 = vsub.f32 %v3023, 1.0
        %v3046 = vsub.f32 %v3025, 1.0
        %v3047 = vsub.f32 %v3027, 1.0
        %v3048 = vsub.f32 %v3029, 1.0
        %v3049 = vsub.f32 %v3031, 1.0
        %v3050 = vsub.f32 %v3033, 1.0
        %v3051 = vsub.f32 %v3035, 1.0
        %v3052 = vsel %vm2972, %v2861, %v3036
        %v3053 = vsel %vm2973, %v2863, %v3037
        %v3054 = vsel %vm2974, %v2950, %v3038
        %v3055 = vsel %vm2975, %v2952, %v3039
        %v3056 = vsel %vm2976, %v2867, %v3040
        %v3057 = vsel %vm2977, %v2869, %v3041
        %v3058 = vsel %vm2978, %v2956, %v3042
        %v3059 = vsel %vm2979, %v2958, %v3043
        %v3060 = vsel %vm2980, %v2873, %v3044
        %v3061 = vsel %vm2981, %v2875, %v3045
        %v3062 = vsel %vm2982, %v2962, %v3046
        %v3063 = vsel %vm2983, %v2964, %v3047
        %v3064 = vsel %vm2984, %v2879, %v3048
        %v3065 = vsel %vm2985, %v2881, %v3049
        %v3066 = vsel %vm2986, %v2968, %v3050
        %v3067 = vsel %vm2987, %v2970, %v3051
        %v3068 = vld [vmem:[%s15] sm:$0x1]
        %v3070 = vsel %vm995, %v3068, 0
        %3072 = vmatprep.subr.mxu0 0.0
        %3073 = vmatpush1.msra.mxu0 0.0
        %3074 = vmatprep.subr.mxu0 0.0
        %3075 = vmatpush1.msra.mxu0 0.0
        %3076 = vmatprep.subr.mxu0 0.0
        %3077 = vmatpush1.msra.mxu0 0.0
        %3078 = vmatprep.subr.mxu0 0.0
        %3079 = vmatpush1.msra.mxu0 0.0
        %3080 = vmatprep.subr.mxu0 0.0
        %3081 = vmatpush1.msra.mxu0 0.0
        %3082 = vmatprep.subr.mxu0 0.0
        %3083 = vmatpush1.msra.mxu0 0.0
        %3084 = vmatprep.subr.mxu0 0.0
        %3085 = vmatpush1.msra.mxu0 0.0
        %3086 = vmatprep.subr.mxu0 0.0
        %3087 = vmatpush1.msra.mxu0 0.0
        %3088 = vmatprep.subr.mxu0 0.0
        %3089 = vmatpush1.msra.mxu0 0.0
        %3090 = vmatprep.subr.mxu0 0.0
        %3091 = vmatpush1.msra.mxu0 0.0
        %3092 = vmatprep.subr.mxu0 0.0
        %3093 = vmatpush1.msra.mxu0 0.0
        %3094 = vmatprep.subr.mxu0 0.0
        %3095 = vmatpush1.msra.mxu0 0.0
        %3096 = vmatprep.subr.mxu0 %v3065
        %3097 = vmatpush1.msra.mxu0 %v3064
        %3098 = vmatprep.subr.mxu0 %v3061
        %3099 = vmatpush1.msra.mxu0 %v3060
        %3100 = vmatprep.subr.mxu0 %v3057
        %3101 = vmatpush1.msra.mxu0 %v3056
        %3102 = vmatprep.subr.mxu0 %v3053
        %3103 = vmatpush1.msra.mxu0 %v3052
        %3104 = vmatprep.subr.mxu0 0.0
        %3105 = vmatpush2.msra.mxu0 0.0
        %3106 = vmatprep.subr.mxu0 0.0
        %3107 = vmatpush2.msra.mxu0 0.0
        %3108 = vmatprep.subr.mxu0 0.0
        %3109 = vmatpush2.msra.mxu0 0.0
        %3110 = vmatprep.subr.mxu0 0.0
        %3111 = vmatpush2.msra.mxu0 0.0
        %3112 = vmatprep.subr.mxu0 0.0
        %3113 = vmatpush2.msra.mxu0 0.0
        %3114 = vmatprep.subr.mxu0 0.0
        %3115 = vmatpush2.msra.mxu0 0.0
        %3116 = vmatprep.subr.mxu0 0.0
        %3117 = vmatpush2.msra.mxu0 0.0
        %3118 = vmatprep.subr.mxu0 0.0
        %3119 = vmatpush2.msra.mxu0 0.0
        %3120 = vmatprep.subr.mxu0 0.0
        %3121 = vmatpush2.msra.mxu0 0.0
        %3122 = vmatprep.subr.mxu0 0.0
        %3123 = vmatpush2.msra.mxu0 0.0
        %3124 = vmatprep.subr.mxu0 0.0
        %3125 = vmatpush2.msra.mxu0 0.0
        %3126 = vmatprep.subr.mxu0 0.0
        %3127 = vmatpush2.msra.mxu0 0.0
        %3128 = vmatprep.subr.mxu0 0.0
        %3129 = vmatpush2.msra.mxu0 0.0
        %3130 = vmatprep.subr.mxu0 0.0
        %3131 = vmatpush2.msra.mxu0 0.0
        %3132 = vmatprep.subr.mxu0 0.0
        %3133 = vmatpush2.msra.mxu0 0.0
        %3134 = vmatprep.subr.mxu0 0.0
        %3135 = vmatpush2.msra.mxu0 0.0
        %3136 = vmatprep.mubr.f32.mxu0 0.0
        %3137 = vmatmul.mubr.f32.gmra.mxu0 %v3070
        %v3138 = vpop.f32.mrf.mxu0
        %v3139 = vadd.f32 0.0, %v3138
        %v3140 = vpop.f32.mrf.mxu0
        %v3141 = vadd.f32 0.0, %v3140
        %3142 = vdwg.mxu0
        %3143 = vmatprep.subr.mxu0 0.0
        %3144 = vmatpush1.msra.mxu0 0.0
        %3145 = vmatprep.subr.mxu0 0.0
        %3146 = vmatpush1.msra.mxu0 0.0
        %3147 = vmatprep.subr.mxu0 0.0
        %3148 = vmatpush1.msra.mxu0 0.0
        %3149 = vmatprep.subr.mxu0 0.0
        %3150 = vmatpush1.msra.mxu0 0.0
        %3151 = vmatprep.subr.mxu0 0.0
        %3152 = vmatpush1.msra.mxu0 0.0
        %3153 = vmatprep.subr.mxu0 0.0
        %3154 = vmatpush1.msra.mxu0 0.0
        %3155 = vmatprep.subr.mxu0 0.0
        %3156 = vmatpush1.msra.mxu0 0.0
        %3157 = vmatprep.subr.mxu0 0.0
        %3158 = vmatpush1.msra.mxu0 0.0
        %3159 = vmatprep.subr.mxu0 0.0
        %3160 = vmatpush1.msra.mxu0 0.0
        %3161 = vmatprep.subr.mxu0 0.0
        %3162 = vmatpush1.msra.mxu0 0.0
        %3163 = vmatprep.subr.mxu0 0.0
        %3164 = vmatpush1.msra.mxu0 0.0
        %3165 = vmatprep.subr.mxu0 0.0
        %3166 = vmatpush1.msra.mxu0 0.0
        %3167 = vmatprep.subr.mxu0 %v3067
        %3168 = vmatpush1.msra.mxu0 %v3066
        %3169 = vmatprep.subr.mxu0 %v3063
        %3170 = vmatpush1.msra.mxu0 %v3062
        %3171 = vmatprep.subr.mxu0 %v3059
        %3172 = vmatpush1.msra.mxu0 %v3058
        %3173 = vmatprep.subr.mxu0 %v3055
        %3174 = vmatpush1.msra.mxu0 %v3054
        %3175 = vmatprep.subr.mxu0 0.0
        %3176 = vmatpush2.msra.mxu0 0.0
        %3177 = vmatprep.subr.mxu0 0.0
        %3178 = vmatpush2.msra.mxu0 0.0
        %3179 = vmatprep.subr.mxu0 0.0
        %3180 = vmatpush2.msra.mxu0 0.0
        %3181 = vmatprep.subr.mxu0 0.0
        %3182 = vmatpush2.msra.mxu0 0.0
        %3183 = vmatprep.subr.mxu0 0.0
        %3184 = vmatpush2.msra.mxu0 0.0
        %3185 = vmatprep.subr.mxu0 0.0
        %3186 = vmatpush2.msra.mxu0 0.0
        %3187 = vmatprep.subr.mxu0 0.0
        %3188 = vmatpush2.msra.mxu0 0.0
        %3189 = vmatprep.subr.mxu0 0.0
        %3190 = vmatpush2.msra.mxu0 0.0
        %3191 = vmatprep.subr.mxu0 0.0
        %3192 = vmatpush2.msra.mxu0 0.0
        %3193 = vmatprep.subr.mxu0 0.0
        %3194 = vmatpush2.msra.mxu0 0.0
        %3195 = vmatprep.subr.mxu0 0.0
        %3196 = vmatpush2.msra.mxu0 0.0
        %3197 = vmatprep.subr.mxu0 0.0
        %3198 = vmatpush2.msra.mxu0 0.0
        %3199 = vmatprep.subr.mxu0 0.0
        %3200 = vmatpush2.msra.mxu0 0.0
        %3201 = vmatprep.subr.mxu0 0.0
        %3202 = vmatpush2.msra.mxu0 0.0
        %3203 = vmatprep.subr.mxu0 0.0
        %3204 = vmatpush2.msra.mxu0 0.0
        %3205 = vmatprep.subr.mxu0 0.0
        %3206 = vmatpush2.msra.mxu0 0.0
        %3207 = vmatprep.mubr.f32.mxu0 0.0
        %3208 = vmatmul.mubr.f32.gmra.mxu0 %v3070
        %v3209 = vpop.f32.mrf.mxu0
        %v3210 = vadd.f32 0.0, %v3209
        %v3211 = vpop.f32.mrf.mxu0
        %v3212 = vadd.f32 0.0, %v3211
        %3213 = vdwg.mxu0
        %v3214 = vadd.f32 %v2559, %v3139
        %v3215 = vadd.f32 %v2561, %v3141
        %v3216 = vadd.f32 %v2654, %v3210
        %v3217 = vadd.f32 %v2656, %v3212
        %v3218 = vxor.u32 %v3214, 2147483648
        %v3219 = vxor.u32 %v3215, 2147483648
        %v3220 = vxor.u32 %v3216, 2147483648
        %v3221 = vxor.u32 %v3217, 2147483648
        %v3222 = vmul.f32 %v3218, 1.442695
        %v3223 = vpow.pop %v3222
        %v3224 = vmul.f32 %v3219, 1.442695
        %v3225 = vpow.pop %v3224
        %v3226 = vmul.f32 %v3220, 1.442695
        %v3227 = vpow.pop %v3226
        %v3228 = vmul.f32 %v3221, 1.442695
        %v3229 = vpow.pop %v3228
        %v3230 = vadd.f32 %v3223, 1.0
        %v3231 = vadd.f32 %v3225, 1.0
        %v3232 = vadd.f32 %v3227, 1.0
        %v3233 = vadd.f32 %v3229, 1.0
        %v3234 = vrcp.pop %v3230
        %v3235 = vmul.f32 1.0, %v3234
        %v3236 = vrcp.pop %v3231
        %v3237 = vmul.f32 1.0, %v3236
        %v3238 = vrcp.pop %v3232
        %v3239 = vmul.f32 1.0, %v3238
        %v3240 = vrcp.pop %v3233
        %v3241 = vmul.f32 1.0, %v3240
        %v3246 = vcombine.low %v3235, %v3237
        %v3247 = vcombine.low %v3239, %v3241
        %v3249 = vunpack.c.l.s4 1966171168
        %v3250 = vunpack.c.0.s8 %v3249
        %v3251 = vlaneseq
        %v3252 = vshrl.u32 %v3251, 7
        %v3253 = vsub.s32 %v3250, %v3252
        %v3254 = vrot.slane %v3246, %v3253
        %v3256 = vunpack.c.l.s4 1966171168
        %v3257 = vunpack.c.0.s8 %v3256
        %v3258 = vlaneseq
        %v3259 = vshrl.u32 %v3258, 7
        %v3260 = vsub.s32 %v3257, %v3259
        %v3261 = vrot.slane %v3247, %v3260
        %v3262 = vcombine.low %v3254, %v3261
        %v3264 = vunpack.c.l.s4 1966171168
        %v3265 = vunpack.c.0.s8 %v3264
        %v3266 = vlaneseq
        %v3267 = vshrl.u32 %v3266, 7
        %v3268 = vsub.s32 %v3265, %v3267
        %v3269 = vrot.slane %v3262, %v3268
        %v3271 = vlaneseq
        %vm3272 = vcmp.ge.s32.totalorder %v3271, 0
        %vm3273 = vcmp.lt.s32.totalorder %v3271, 512
        %vm3274 = vmand %vm3272, %vm3273
        %3275 = vst.msk [vmem:[%s553] sm:$0xf] %vm3274, %v3269
        %s3276 = sand.u32 %s379, 1
        %s3277 = scalar_lea.sflag [#allocation4], %s3276
        %s3278 = sand.u32 %s379, 1
        %s3279 = smul.addr %s3278, 4
        %s3280 = scalar_lea.vmem [#allocation3], %s3279
        // Predicated region
        $region108: #{tpu_custom_call.1} parent=102 // pred_check
          %p3281 = pneg %p389
        $region109: #{tpu_custom_call.1} parent=102 // pred_check_branch
          %3283 = sbr.rel (%p3281) target = $region111
        $region110: #{tpu_custom_call.1} parent=102 // pred_region
          %s3284 = smul.u32 4, %s30
          %s3286 = ssub.s32 64, 64
          %3287 = vsyncadd %s3277, %s3286
          %s3288 = smul.addr %s3284, 16
          %s3289 = scalar_lea.hbm %s16, %s3288
          %s3291 = sshll.u32 %s3280, 4
          %s3292 = int_to_ptr.vmem [resolvable:$true] %s3291
          %3294 = dma.vmem_to_hbm [thread:$0]  %s3292, 64, %s3289, %s3277
        $region111: #{tpu_custom_call.1} parent=102 // pred_fallthru
          _
      $region103: #{tpu_custom_call.1} parent=5 // pred_fallthru
        _
      %p3295 = scmp.le.s32.totalorder 2, %s25
      // Predicated region
      $region112: #{tpu_custom_call.1} parent=5 // pred_check
        %p3296 = pneg %p3295
      $region113: #{tpu_custom_call.1} parent=5 // pred_check_branch
        %3298 = sbr.rel (%p3296) target = $region115
      $region114: #{tpu_custom_call.1} parent=5 // pred_region
        %s3299 = ssub.s32 %s25, 2
        // Predicated region
        $region116: #{tpu_custom_call.1} parent=114 // pred_check
          %p3300 = pneg %p395
        $region117: #{tpu_custom_call.1} parent=114 // pred_check_branch
          %3302 = sbr.rel (%p3300) target = $region119
        $region118: #{tpu_custom_call.1} parent=114 // pred_region
          %s3303 = sand.u32 %s380, 1
          %s3304 = scalar_lea.sflag [#allocation4], %s3303
          %s3305 = sand.u32 %s380, 1
          %s3306 = smul.addr %s3305, 4
          %s3307 = scalar_lea.vmem [#allocation3], %s3306
          %3308 = dma.done %s3304, 64
        $region119: #{tpu_custom_call.1} parent=114 // pred_fallthru
          _
      $region115: #{tpu_custom_call.1} parent=5 // pred_fallthru
        _
    $region6: #{tpu_custom_call.1} parent=1 // loop_footer
      %s29 = sadd.s32 1, %s25
    $region7: #{tpu_custom_call.1} parent=1 // loop_footer_branch
      %24 = sbr.rel target = $region3
    $region8: #{tpu_custom_call.1} parent=1 // loop_exit
      _
    %3309 = vsyncpa [#allocation4], 1
    %s3310 = scalar_lea.sflag [#allocation4], 1
    %3311 = vsyncpa %s3310, 1

</llo_original>
